<compile_context>
chip_gen: v7x
topology: tpu7x:2x2x1
jax: 0.10.0
libtpu: 0.0.40
codegen_flags: <defaults>
</compile_context>

<pallas_src>
from functools import partial

import jax
import jax.numpy as jnp
from jax.experimental import pallas as pl
from jax.experimental.pallas import tpu as pltpu


def _round_up(x, m):
    return (x + m - 1) // m * m


# ---------------------------------------------------------------------------
# Tiled matmul + bias (+ ReLU) kernel  (used for the conv im2col matmuls)
# ---------------------------------------------------------------------------
def _mm_bias_act_kernel(x_ref, w_ref, b_ref, o_ref, acc_ref, *, relu):
    k = pl.program_id(1)

    @pl.when(k == 0)
    def _():
        acc_ref[...] = jnp.zeros_like(acc_ref)

    acc_ref[...] += jnp.dot(x_ref[...], w_ref[...],
                            preferred_element_type=jnp.float32)

    @pl.when(k == pl.num_programs(1) - 1)
    def _():
        y = acc_ref[...] + b_ref[...]
        if relu:
            y = jnp.maximum(y, 0.0)
        o_ref[...] = y.astype(o_ref.dtype)


def matmul_bias_act(x, w, b, *, relu, out_dtype=jnp.bfloat16,
                    tm=128, tk_max=1024):
    """y = relu?(x @ w + b).  x: (M,K), w: (K,N) bf16, b: (1,N) f32."""
    M, K = x.shape
    K2, N = w.shape
    assert K == K2

    TM = min(tm, _round_up(M, 16))
    Mp = _round_up(M, TM)
    if Mp != M:
        x = jnp.pad(x, ((0, Mp - M), (0, 0)))
    TK = tk_max if (K > tk_max and K % tk_max == 0) else K
    grid = (Mp // TM, K // TK)

    out_bytes = Mp * N * jnp.dtype(out_dtype).itemsize
    cost = pl.CostEstimate(
        flops=2 * Mp * K * N,
        transcendentals=0,
        bytes_accessed=Mp * K * 2 + K * N * 2 + N * 4 + out_bytes,
    )

    out = pl.pallas_call(
        partial(_mm_bias_act_kernel, relu=relu),
        out_shape=jax.ShapeDtypeStruct((Mp, N), out_dtype),
        grid_spec=pltpu.PrefetchScalarGridSpec(
            num_scalar_prefetch=0,
            grid=grid,
            in_specs=[
                pl.BlockSpec((TM, TK), lambda i, k: (i, k)),
                pl.BlockSpec((TK, N), lambda i, k: (k, 0)),
                pl.BlockSpec((1, N), lambda i, k: (0, 0)),
            ],
            out_specs=pl.BlockSpec((TM, N), lambda i, k: (i, 0)),
            scratch_shapes=[pltpu.VMEM((TM, N), jnp.float32)],
        ),
        compiler_params=pltpu.CompilerParams(
            dimension_semantics=("parallel", "arbitrary"),
            vmem_limit_bytes=32 * 1024 * 1024,
        ),
        cost_estimate=cost,
    )(x.astype(jnp.bfloat16), w.astype(jnp.bfloat16), b.astype(jnp.float32))
    return out[:M] if Mp != M else out


# ---------------------------------------------------------------------------
# Fused fc1 + ReLU + fc2 + softmax head
# ---------------------------------------------------------------------------
def _fc_head_kernel(x_ref, w1_ref, b1_ref, w2_ref, b2_ref, o_ref, acc_ref):
    k = pl.program_id(1)

    @pl.when(k == 0)
    def _():
        acc_ref[...] = jnp.zeros_like(acc_ref)

    acc_ref[...] += jnp.dot(x_ref[...], w1_ref[...],
                            preferred_element_type=jnp.float32)

    @pl.when(k == pl.num_programs(1) - 1)
    def _():
        h = jnp.maximum(acc_ref[...] + b1_ref[...], 0.0)            # fc1 + ReLU
        logits = jnp.dot(h, w2_ref[...],
                         preferred_element_type=jnp.float32) + b2_ref[...]
        m = jnp.max(logits, axis=-1, keepdims=True)                 # stable softmax
        e = jnp.exp(logits - m)                                     # padded lanes -> 0
        s = jnp.sum(e, axis=-1, keepdims=True)
        o_ref[...] = (e / s).astype(o_ref.dtype)


def fc_head(x, w1, b1, w2p, b2p, *, tm=128, tk_max=1024):
    """softmax(relu(x @ w1 + b1) @ w2p + b2p).  w2p/b2p are 128-lane padded."""
    M, K = x.shape
    N = w1.shape[1]            # 128
    Np = w2p.shape[1]          # 128 (padded logits)

    TM = min(tm, _round_up(M, 16))
    Mp = _round_up(M, TM)
    if Mp != M:
        x = jnp.pad(x, ((0, Mp - M), (0, 0)))
    TK = tk_max if (K > tk_max and K % tk_max == 0) else K
    grid = (Mp // TM, K // TK)

    cost = pl.CostEstimate(
        flops=2 * Mp * K * N + 2 * Mp * N * Np,
        transcendentals=Mp * Np,
        bytes_accessed=(Mp * K * 2 + K * N * 2 + N * 4
                        + N * Np * 4 + Np * 4 + Mp * Np * 4),
    )

    out = pl.pallas_call(
        _fc_head_kernel,
        out_shape=jax.ShapeDtypeStruct((Mp, Np), jnp.float32),
        grid_spec=pltpu.PrefetchScalarGridSpec(
            num_scalar_prefetch=0,
            grid=grid,
            in_specs=[
                pl.BlockSpec((TM, TK), lambda i, k: (i, k)),
                pl.BlockSpec((TK, N), lambda i, k: (k, 0)),
                pl.BlockSpec((1, N), lambda i, k: (0, 0)),
                pl.BlockSpec((N, Np), lambda i, k: (0, 0)),
                pl.BlockSpec((1, Np), lambda i, k: (0, 0)),
            ],
            out_specs=pl.BlockSpec((TM, Np), lambda i, k: (i, 0)),
            scratch_shapes=[pltpu.VMEM((TM, N), jnp.float32)],
        ),
        compiler_params=pltpu.CompilerParams(
            dimension_semantics=("parallel", "arbitrary"),
            vmem_limit_bytes=32 * 1024 * 1024,
        ),
        cost_estimate=cost,
    )(x.astype(jnp.bfloat16), w1.astype(jnp.bfloat16),
      b1.astype(jnp.float32), w2p.astype(jnp.float32), b2p.astype(jnp.float32))
    return out[:M] if Mp != M else out


# ---------------------------------------------------------------------------
# 2x2 max-pool kernel (lane-dense: last dim = Wo*C, tiled over rows)
# ---------------------------------------------------------------------------
def _maxpool4_kernel(x_ref, o_ref):
    o_ref[...] = jnp.maximum(
        jnp.maximum(x_ref[0], x_ref[1]),
        jnp.maximum(x_ref[2], x_ref[3]),
    )


def maxpool2x2(y):
    """2x2 max pool, stride 2.  y: (B, H, W, C) -> (B, H//2, W//2, C)."""
    B, H, W, C = y.shape
    Ho, Wo = H // 2, W // 2
    R, L = B * Ho, Wo * C                               # L = 12*64 = 768 (6x128)
    # JAX glue: stack the 4 taps of each 2x2 window on a leading axis.
    yr = y.reshape(B, Ho, 2, Wo, 2, C).transpose(2, 4, 0, 1, 3, 5)
    yr = yr.reshape(4, R, L)

    TR = min(256, _round_up(R, 8))
    Rp = _round_up(R, TR)
    if Rp != R:
        yr = jnp.pad(yr, ((0, 0), (0, Rp - R), (0, 0)))

    out = pl.pallas_call(
        _maxpool4_kernel,
        out_shape=jax.ShapeDtypeStruct((Rp, L), y.dtype),
        grid_spec=pltpu.PrefetchScalarGridSpec(
            num_scalar_prefetch=0,
            grid=(Rp // TR,),
            in_specs=[pl.BlockSpec((4, TR, L), lambda r: (0, r, 0))],
            out_specs=pl.BlockSpec((TR, L), lambda r: (r, 0)),
        ),
        compiler_params=pltpu.CompilerParams(
            dimension_semantics=("parallel",),
        ),
    )(yr)
    if Rp != R:
        out = out[:R]
    return out.reshape(B, Ho, Wo, C)


# ---------------------------------------------------------------------------
# Conv-as-matmul glue (im2col; see TODO at top for the fused-conv follow-up)
# ---------------------------------------------------------------------------
def _im2col(x, kh, kw):
    """x: (B,H,W,C) -> (B*Ho*Wo, kh*kw*C); feature order (dy, dx, cin)."""
    B, H, W, C = x.shape
    Ho, Wo = H - kh + 1, W - kw + 1
    cols = [x[:, dy:dy + Ho, dx:dx + Wo, :]
            for dy in range(kh) for dx in range(kw)]
    patches = jnp.concatenate(cols, axis=-1)            # (B, Ho, Wo, kh*kw*C)
    return patches.reshape(B * Ho * Wo, kh * kw * C), (B, Ho, Wo)


def conv2d_bias_relu(x, wmat, b2d, kh=3, kw=3):
    """Valid 3x3 conv, stride 1.  x: (B,H,W,Cin) bf16; wmat: (kh*kw*Cin, Cout)."""
    Cout = wmat.shape[-1]
    cols, (B, Ho, Wo) = _im2col(x, kh, kw)
    out = matmul_bias_act(cols, wmat, b2d, relu=True, out_dtype=jnp.bfloat16)
    return out.reshape(B, Ho, Wo, Cout)


# ---------------------------------------------------------------------------
# Parameters: PyTorch-style init, then one-time conversion to kernel layout
# ---------------------------------------------------------------------------
def prepare_params(raw):
    """Pre-transpose / pad weights once so the forward pass does no per-call
    weight transposes and no activation layout permutation before fc1."""
    p = {}
    # conv weights -> (kh*kw*cin, cout) with (dy, dx, cin) row order (im2col match)
    p["conv1_w"] = jnp.transpose(raw["conv1_w"], (2, 3, 1, 0)) \
        .reshape(9 * 1, 32).astype(jnp.bfloat16)
    p["conv1_b"] = raw["conv1_b"].reshape(1, 32).astype(jnp.float32)
    p["conv2_w"] = jnp.transpose(raw["conv2_w"], (2, 3, 1, 0)) \
        .reshape(9 * 32, 64).astype(jnp.bfloat16)
    p["conv2_b"] = raw["conv2_b"].reshape(1, 64).astype(jnp.float32)
    # fc1: torch flattens NCHW as (c, h, w); our activations flatten NHWC as
    # (h, w, c) -> permute the weight rows once instead of the activation.
    w1 = raw["fc1_w"].reshape(128, 64, 12, 12)
    p["fc1_w"] = jnp.transpose(w1, (2, 3, 1, 0)).reshape(9216, 128) \
        .astype(jnp.bfloat16)
    p["fc1_b"] = raw["fc1_b"].reshape(1, 128).astype(jnp.float32)
    # fc2: transpose to (in, out) and pad N from 10 -> 128 lanes; padded bias
    # is -1e30 so the padded logits vanish under softmax.
    w2 = jnp.transpose(raw["fc2_w"], (1, 0))                       # (128, 10)
    p["fc2_w"] = jnp.pad(w2, ((0, 0), (0, 118))).astype(jnp.float32)
    b2 = jnp.pad(raw["fc2_b"], (0, 118), constant_values=-1e30)
    p["fc2_b"] = b2.reshape(1, 128).astype(jnp.float32)
    return p


def init_params(key):
    ks = jax.random.split(key, 8)

    def u(k, shape, fan_in):
        bound = 1.0 / float(fan_in) ** 0.5
        return jax.random.uniform(k, shape, jnp.float32, -bound, bound)

    raw = {
        "conv1_w": u(ks[0], (32, 1, 3, 3), 1 * 3 * 3),
        "conv1_b": u(ks[1], (32,), 1 * 3 * 3),
        "conv2_w": u(ks[2], (64, 32, 3, 3), 32 * 3 * 3),
        "conv2_b": u(ks[3], (64,), 32 * 3 * 3),
        "fc1_w": u(ks[4], (128, 9216), 9216),
        "fc1_b": u(ks[5], (128,), 9216),
        "fc2_w": u(ks[6], (10, 128), 128),
        "fc2_b": u(ks[7], (10,), 128),
    }
    return prepare_params(raw)


# ---------------------------------------------------------------------------
# Forward pass (mirrors Net1.forward)
# ---------------------------------------------------------------------------
@jax.jit
def net_forward(params, x_nchw):
    # x_nchw: (B, 1, 28, 28) float32, same convention as the PyTorch module.
    x = jnp.transpose(x_nchw, (0, 2, 3, 1)).astype(jnp.bfloat16)   # NCHW -> NHWC

    x = conv2d_bias_relu(x, params["conv1_w"], params["conv1_b"])  # (B,26,26,32)
    x = conv2d_bias_relu(x, params["conv2_w"], params["conv2_b"])  # (B,24,24,64)
    x = maxpool2x2(x)                                              # (B,12,12,64)

    # dropout1 / dropout2 are identity at inference time.
    B = x.shape[0]
    x = x.reshape(B, 12 * 12 * 64)                                 # (h, w, c) order

    # Fused fc1 + ReLU + fc2 + softmax (128-lane padded logits); keep first 10.
    probs = fc_head(x, params["fc1_w"], params["fc1_b"],
                    params["fc2_w"], params["fc2_b"])              # (B, 128) f32
    return probs[:, :10]


if __name__ == "__main__":
    key = jax.random.PRNGKey(0)
    pkey, xkey = jax.random.split(key)
    params = init_params(pkey)

    # fc1 expects 9216 = 64*12*12 features => 28x28 single-channel input.
    x = jax.random.normal(xkey, (2, 1, 28, 28), jnp.float32)

    out = jax.block_until_ready(net_forward(params, x))
    assert out.shape == (2, 10) and out.dtype == jnp.float32
    assert bool(jnp.all(jnp.isfinite(out)))
    assert bool(jnp.all(jnp.abs(jnp.sum(out, axis=-1) - 1.0) < 1e-3))  # softmax rows
    print("KERNEL_OK")
</pallas_src>

<mosaic_0001>
module attributes {stable_mosaic.version = 11 : i64} {
  func.func @_mm_bias_act_kernel(%arg0: i32, %arg1: i32, %arg2: memref<128x9xbf16, #tpu.memory_space<vmem>>, %arg3: memref<9x32xbf16, #tpu.memory_space<vmem>>, %arg4: memref<1x32xf32, #tpu.memory_space<vmem>>, %arg5: memref<128x32xbf16, #tpu.memory_space<vmem>>, %arg6: memref<128x32xf32, #tpu.memory_space<vmem>>) attributes {dimension_semantics = [#tpu.dimension_semantics<parallel>, #tpu.dimension_semantics<arbitrary>], iteration_bounds = array<i64: 11, 1>, scalar_prefetch = 0 : i64, scratch_operands = 1 : i64, tpu.core_type = #tpu.core_type<tc>, window_params = [{transform_indices = @transform_0, window_bounds = array<i64: 128, 9>}, {transform_indices = @transform_1, window_bounds = array<i64: 9, 32>}, {pipeline_mode = #tpu.pipeline_mode<synchronous>, transform_indices = @transform_2, window_bounds = array<i64: 1, 32>}, {transform_indices = @transform_3, window_bounds = array<i64: 128, 32>}]} {
    %c0_i32 = arith.constant 0 : i32
    %0 = arith.cmpi eq, %arg1, %c0_i32 : i32
    %1 = arith.extui %0 : i1 to i32
    %c0_i32_0 = arith.constant 0 : i32
    %2 = arith.cmpi ne, %1, %c0_i32_0 : i32
    scf.if %2 {
      %cst_10 = arith.constant 0.000000e+00 : f32
      %12 = vector.broadcast %cst_10 : f32 to vector<128x32xf32>
      %c0_11 = arith.constant 0 : index
      %c0_12 = arith.constant 0 : index
      %13 = vector.load %arg6[%c0_11, %c0_12] : memref<128x32xf32, #tpu.memory_space<vmem>>, vector<128x32xf32>
      tpu.vector_store %arg6[%c0_11, %c0_12], %12 {strides = array<i32>} : memref<128x32xf32, #tpu.memory_space<vmem>>, vector<128x32xf32>,
    } else {
    }
    %c0 = arith.constant 0 : index
    %c0_1 = arith.constant 0 : index
    %3 = vector.load %arg6[%c0, %c0_1] : memref<128x32xf32, #tpu.memory_space<vmem>>, vector<128x32xf32>
    %c0_2 = arith.constant 0 : index
    %c0_3 = arith.constant 0 : index
    %4 = vector.load %arg2[%c0_2, %c0_3] : memref<128x9xbf16, #tpu.memory_space<vmem>>, vector<128x9xbf16>
    %c0_4 = arith.constant 0 : index
    %c0_5 = arith.constant 0 : index
    %5 = vector.load %arg3[%c0_4, %c0_5] : memref<9x32xbf16, #tpu.memory_space<vmem>>, vector<9x32xbf16>
    %cst = arith.constant dense<0.000000e+00> : vector<128x32xf32>
    %6 = tpu.matmul %4, %5, %cst {dimension_numbers = #tpu.dot_dimension_numbers<[1], [0], [0], [1], [0, 0, 1, 1], [], []>} : vector<128x9xbf16>, vector<9x32xbf16>, vector<128x32xf32> -> vector<128x32xf32>
    %7 = arith.addf %3, %6 : vector<128x32xf32>
    %c0_6 = arith.constant 0 : index
    %c0_7 = arith.constant 0 : index
    %8 = vector.load %arg6[%c0_6, %c0_7] : memref<128x32xf32, #tpu.memory_space<vmem>>, vector<128x32xf32>
    tpu.vector_store %arg6[%c0_6, %c0_7], %7 {strides = array<i32>} : memref<128x32xf32, #tpu.memory_space<vmem>>, vector<128x32xf32>,
    %c0_i32_8 = arith.constant 0 : i32
    %9 = arith.cmpi eq, %arg1, %c0_i32_8 : i32
    %10 = arith.extui %9 : i1 to i32
    %c0_i32_9 = arith.constant 0 : i32
    %11 = arith.cmpi ne, %10, %c0_i32_9 : i32
    scf.if %11 {
      %c0_10 = arith.constant 0 : index
      %c0_11 = arith.constant 0 : index
      %12 = vector.load %arg6[%c0_10, %c0_11] : memref<128x32xf32, #tpu.memory_space<vmem>>, vector<128x32xf32>
      %c0_12 = arith.constant 0 : index
      %c0_13 = arith.constant 0 : index
      %13 = vector.load %arg4[%c0_12, %c0_13] : memref<1x32xf32, #tpu.memory_space<vmem>>, vector<1x32xf32>
      %14 = vector.broadcast %13 : vector<1x32xf32> to vector<128x32xf32>
      %15 = arith.addf %12, %14 : vector<128x32xf32>
      %cst_14 = arith.constant 0.000000e+00 : f32
      %16 = vector.broadcast %cst_14 : f32 to vector<128x32xf32>
      %17 = arith.maximumf %15, %16 : vector<128x32xf32>
      %18 = arith.truncf %17 : vector<128x32xf32> to vector<128x32xbf16>
      %c0_15 = arith.constant 0 : index
      %c0_16 = arith.constant 0 : index
      %19 = vector.load %arg5[%c0_15, %c0_16] : memref<128x32xbf16, #tpu.memory_space<vmem>>, vector<128x32xbf16>
      tpu.vector_store %arg5[%c0_15, %c0_16], %18 {strides = array<i32>} : memref<128x32xbf16, #tpu.memory_space<vmem>>, vector<128x32xbf16>,
    } else {
    }
    return
  }
  func.func @transform_0(%arg0: i32, %arg1: i32) -> (i32, i32) {
    %c0_i32 = arith.constant 0 : i32
    return %arg0, %arg1 : i32, i32
  }
  func.func @transform_1(%arg0: i32, %arg1: i32) -> (i32, i32) {
    %c0_i32 = arith.constant 0 : i32
    %c0_i32_0 = arith.constant 0 : i32
    return %arg1, %c0_i32 : i32, i32
  }
  func.func @transform_2(%arg0: i32, %arg1: i32) -> (i32, i32) {
    %c0_i32 = arith.constant 0 : i32
    %c0_i32_0 = arith.constant 0 : i32
    %c0_i32_1 = arith.constant 0 : i32
    return %c0_i32, %c0_i32_0 : i32, i32
  }
  func.func @transform_3(%arg0: i32, %arg1: i32) -> (i32, i32) {
    %c0_i32 = arith.constant 0 : i32
    %c0_i32_0 = arith.constant 0 : i32
    return %arg0, %c0_i32 : i32, i32
  }
}

module attributes {stable_mosaic.version = 11 : i64} {
  func.func @_mm_bias_act_kernel(%arg0: i32, %arg1: i32, %arg2: memref<128x288xbf16, #tpu.memory_space<vmem>>, %arg3: memref<288x64xbf16, #tpu.memory_space<vmem>>, %arg4: memref<1x64xf32, #tpu.memory_space<vmem>>, %arg5: memref<128x64xbf16, #tpu.memory_space<vmem>>, %arg6: memref<128x64xf32, #tpu.memory_space<vmem>>) attributes {dimension_semantics = [#tpu.dimension_semantics<parallel>, #tpu.dimension_semantics<arbitrary>], iteration_bounds = array<i64: 9, 1>, scalar_prefetch = 0 : i64, scratch_operands = 1 : i64, tpu.core_type = #tpu.core_type<tc>, window_params = [{transform_indices = @transform_0, window_bounds = array<i64: 128, 288>}, {transform_indices = @transform_1, window_bounds = array<i64: 288, 64>}, {pipeline_mode = #tpu.pipeline_mode<synchronous>, transform_indices = @transform_2, window_bounds = array<i64: 1, 64>}, {transform_indices = @transform_3, window_bounds = array<i64: 128, 64>}]} {
    %c0_i32 = arith.constant 0 : i32
    %0 = arith.cmpi eq, %arg1, %c0_i32 : i32
    %1 = arith.extui %0 : i1 to i32
    %c0_i32_0 = arith.constant 0 : i32
    %2 = arith.cmpi ne, %1, %c0_i32_0 : i32
    scf.if %2 {
      %cst_10 = arith.constant 0.000000e+00 : f32
      %12 = vector.broadcast %cst_10 : f32 to vector<128x64xf32>
      %c0_11 = arith.constant 0 : index
      %c0_12 = arith.constant 0 : index
      %13 = vector.load %arg6[%c0_11, %c0_12] : memref<128x64xf32, #tpu.memory_space<vmem>>, vector<128x64xf32>
      tpu.vector_store %arg6[%c0_11, %c0_12], %12 {strides = array<i32>} : memref<128x64xf32, #tpu.memory_space<vmem>>, vector<128x64xf32>,
    } else {
    }
    %c0 = arith.constant 0 : index
    %c0_1 = arith.constant 0 : index
    %3 = vector.load %arg6[%c0, %c0_1] : memref<128x64xf32, #tpu.memory_space<vmem>>, vector<128x64xf32>
    %c0_2 = arith.constant 0 : index
    %c0_3 = arith.constant 0 : index
    %4 = vector.load %arg2[%c0_2, %c0_3] : memref<128x288xbf16, #tpu.memory_space<vmem>>, vector<128x288xbf16>
    %c0_4 = arith.constant 0 : index
    %c0_5 = arith.constant 0 : index
    %5 = vector.load %arg3[%c0_4, %c0_5] : memref<288x64xbf16, #tpu.memory_space<vmem>>, vector<288x64xbf16>
    %cst = arith.constant dense<0.000000e+00> : vector<128x64xf32>
    %6 = tpu.matmul %4, %5, %cst {dimension_numbers = #tpu.dot_dimension_numbers<[1], [0], [0], [1], [0, 0, 1, 1], [], []>} : vector<128x288xbf16>, vector<288x64xbf16>, vector<128x64xf32> -> vector<128x64xf32>
    %7 = arith.addf %3, %6 : vector<128x64xf32>
    %c0_6 = arith.constant 0 : index
    %c0_7 = arith.constant 0 : index
    %8 = vector.load %arg6[%c0_6, %c0_7] : memref<128x64xf32, #tpu.memory_space<vmem>>, vector<128x64xf32>
    tpu.vector_store %arg6[%c0_6, %c0_7], %7 {strides = array<i32>} : memref<128x64xf32, #tpu.memory_space<vmem>>, vector<128x64xf32>,
    %c0_i32_8 = arith.constant 0 : i32
    %9 = arith.cmpi eq, %arg1, %c0_i32_8 : i32
    %10 = arith.extui %9 : i1 to i32
    %c0_i32_9 = arith.constant 0 : i32
    %11 = arith.cmpi ne, %10, %c0_i32_9 : i32
    scf.if %11 {
      %c0_10 = arith.constant 0 : index
      %c0_11 = arith.constant 0 : index
      %12 = vector.load %arg6[%c0_10, %c0_11] : memref<128x64xf32, #tpu.memory_space<vmem>>, vector<128x64xf32>
      %c0_12 = arith.constant 0 : index
      %c0_13 = arith.constant 0 : index
      %13 = vector.load %arg4[%c0_12, %c0_13] : memref<1x64xf32, #tpu.memory_space<vmem>>, vector<1x64xf32>
      %14 = vector.broadcast %13 : vector<1x64xf32> to vector<128x64xf32>
      %15 = arith.addf %12, %14 : vector<128x64xf32>
      %cst_14 = arith.constant 0.000000e+00 : f32
      %16 = vector.broadcast %cst_14 : f32 to vector<128x64xf32>
      %17 = arith.maximumf %15, %16 : vector<128x64xf32>
      %18 = arith.truncf %17 : vector<128x64xf32> to vector<128x64xbf16>
      %c0_15 = arith.constant 0 : index
      %c0_16 = arith.constant 0 : index
      %19 = vector.load %arg5[%c0_15, %c0_16] : memref<128x64xbf16, #tpu.memory_space<vmem>>, vector<128x64xbf16>
      tpu.vector_store %arg5[%c0_15, %c0_16], %18 {strides = array<i32>} : memref<128x64xbf16, #tpu.memory_space<vmem>>, vector<128x64xbf16>,
    } else {
    }
    return
  }
  func.func @transform_0(%arg0: i32, %arg1: i32) -> (i32, i32) {
    %c0_i32 = arith.constant 0 : i32
    return %arg0, %arg1 : i32, i32
  }
  func.func @transform_1(%arg0: i32, %arg1: i32) -> (i32, i32) {
    %c0_i32 = arith.constant 0 : i32
    %c0_i32_0 = arith.constant 0 : i32
    return %arg1, %c0_i32 : i32, i32
  }
  func.func @transform_2(%arg0: i32, %arg1: i32) -> (i32, i32) {
    %c0_i32 = arith.constant 0 : i32
    %c0_i32_0 = arith.constant 0 : i32
    %c0_i32_1 = arith.constant 0 : i32
    return %c0_i32, %c0_i32_0 : i32, i32
  }
  func.func @transform_3(%arg0: i32, %arg1: i32) -> (i32, i32) {
    %c0_i32 = arith.constant 0 : i32
    %c0_i32_0 = arith.constant 0 : i32
    return %arg0, %c0_i32 : i32, i32
  }
}

module attributes {stable_mosaic.version = 11 : i64} {
  func.func @_maxpool4_kernel(%arg0: i32, %arg1: memref<4x24x768xbf16, #tpu.memory_space<vmem>>, %arg2: memref<24x768xbf16, #tpu.memory_space<vmem>>) attributes {dimension_semantics = [#tpu.dimension_semantics<parallel>], iteration_bounds = array<i64: 1>, scalar_prefetch = 0 : i64, scratch_operands = 0 : i64, tpu.core_type = #tpu.core_type<tc>, window_params = [{transform_indices = @transform_0, window_bounds = array<i64: 4, 24, 768>}, {transform_indices = @transform_1, window_bounds = array<i64: 24, 768>}]} {
    %c0 = arith.constant 0 : index
    %c0_0 = arith.constant 0 : index
    %c0_1 = arith.constant 0 : index
    %0 = vector.load %arg1[%c0, %c0_0, %c0_1] : memref<4x24x768xbf16, #tpu.memory_space<vmem>>, vector<1x24x768xbf16>
    %1 = vector.shape_cast %0 : vector<1x24x768xbf16> to vector<24x768xbf16>
    %c1 = arith.constant 1 : index
    %c0_2 = arith.constant 0 : index
    %c0_3 = arith.constant 0 : index
    %2 = vector.load %arg1[%c1, %c0_2, %c0_3] : memref<4x24x768xbf16, #tpu.memory_space<vmem>>, vector<1x24x768xbf16>
    %3 = vector.shape_cast %2 : vector<1x24x768xbf16> to vector<24x768xbf16>
    %4 = arith.maximumf %1, %3 : vector<24x768xbf16>
    %c2 = arith.constant 2 : index
    %c0_4 = arith.constant 0 : index
    %c0_5 = arith.constant 0 : index
    %5 = vector.load %arg1[%c2, %c0_4, %c0_5] : memref<4x24x768xbf16, #tpu.memory_space<vmem>>, vector<1x24x768xbf16>
    %6 = vector.shape_cast %5 : vector<1x24x768xbf16> to vector<24x768xbf16>
    %c3 = arith.constant 3 : index
    %c0_6 = arith.constant 0 : index
    %c0_7 = arith.constant 0 : index
    %7 = vector.load %arg1[%c3, %c0_6, %c0_7] : memref<4x24x768xbf16, #tpu.memory_space<vmem>>, vector<1x24x768xbf16>
    %8 = vector.shape_cast %7 : vector<1x24x768xbf16> to vector<24x768xbf16>
    %9 = arith.maximumf %6, %8 : vector<24x768xbf16>
    %10 = arith.maximumf %4, %9 : vector<24x768xbf16>
    %c0_8 = arith.constant 0 : index
    %c0_9 = arith.constant 0 : index
    %11 = vector.load %arg2[%c0_8, %c0_9] : memref<24x768xbf16, #tpu.memory_space<vmem>>, vector<24x768xbf16>
    tpu.vector_store %arg2[%c0_8, %c0_9], %10 {strides = array<i32>} : memref<24x768xbf16, #tpu.memory_space<vmem>>, vector<24x768xbf16>,
    return
  }
  func.func @transform_0(%arg0: i32) -> (i32, i32, i32) {
    %c0_i32 = arith.constant 0 : i32
    %c0_i32_0 = arith.constant 0 : i32
    %c0_i32_1 = arith.constant 0 : i32
    return %c0_i32, %arg0, %c0_i32_0 : i32, i32, i32
  }
  func.func @transform_1(%arg0: i32) -> (i32, i32) {
    %c0_i32 = arith.constant 0 : i32
    %c0_i32_0 = arith.constant 0 : i32
    return %arg0, %c0_i32 : i32, i32
  }
}

module attributes {stable_mosaic.version = 11 : i64} {
  func.func @_fc_head_kernel(%arg0: i32, %arg1: i32, %arg2: memref<16x1024xbf16, #tpu.memory_space<vmem>>, %arg3: memref<1024x128xbf16, #tpu.memory_space<vmem>>, %arg4: memref<1x128xf32, #tpu.memory_space<vmem>>, %arg5: memref<128x128xf32, #tpu.memory_space<vmem>>, %arg6: memref<1x128xf32, #tpu.memory_space<vmem>>, %arg7: memref<16x128xf32, #tpu.memory_space<vmem>>, %arg8: memref<16x128xf32, #tpu.memory_space<vmem>>) attributes {dimension_semantics = [#tpu.dimension_semantics<parallel>, #tpu.dimension_semantics<arbitrary>], iteration_bounds = array<i64: 1, 9>, scalar_prefetch = 0 : i64, scratch_operands = 1 : i64, tpu.core_type = #tpu.core_type<tc>, window_params = [{transform_indices = @transform_0, window_bounds = array<i64: 16, 1024>}, {transform_indices = @transform_1, window_bounds = array<i64: 1024, 128>}, {pipeline_mode = #tpu.pipeline_mode<synchronous>, transform_indices = @transform_2, window_bounds = array<i64: 1, 128>}, {pipeline_mode = #tpu.pipeline_mode<synchronous>, transform_indices = @transform_3, window_bounds = array<i64: 128, 128>}, {pipeline_mode = #tpu.pipeline_mode<synchronous>, transform_indices = @transform_4, window_bounds = array<i64: 1, 128>}, {transform_indices = @transform_5, window_bounds = array<i64: 16, 128>}]} {
    %c0_i32 = arith.constant 0 : i32
    %0 = arith.cmpi eq, %arg1, %c0_i32 : i32
    %1 = arith.extui %0 : i1 to i32
    %c0_i32_0 = arith.constant 0 : i32
    %2 = arith.cmpi ne, %1, %c0_i32_0 : i32
    scf.if %2 {
      %cst_9 = arith.constant 0.000000e+00 : f32
      %12 = vector.broadcast %cst_9 : f32 to vector<16x128xf32>
      %c0_10 = arith.constant 0 : index
      %c0_11 = arith.constant 0 : index
      %13 = vector.load %arg8[%c0_10, %c0_11] : memref<16x128xf32, #tpu.memory_space<vmem>>, vector<16x128xf32>
      tpu.vector_store %arg8[%c0_10, %c0_11], %12 {strides = array<i32>} : memref<16x128xf32, #tpu.memory_space<vmem>>, vector<16x128xf32>,
    } else {
    }
    %c0 = arith.constant 0 : index
    %c0_1 = arith.constant 0 : index
    %3 = vector.load %arg8[%c0, %c0_1] : memref<16x128xf32, #tpu.memory_space<vmem>>, vector<16x128xf32>
    %c0_2 = arith.constant 0 : index
    %c0_3 = arith.constant 0 : index
    %4 = vector.load %arg2[%c0_2, %c0_3] : memref<16x1024xbf16, #tpu.memory_space<vmem>>, vector<16x1024xbf16>
    %c0_4 = arith.constant 0 : index
    %c0_5 = arith.constant 0 : index
    %5 = vector.load %arg3[%c0_4, %c0_5] : memref<1024x128xbf16, #tpu.memory_space<vmem>>, vector<1024x128xbf16>
    %cst = arith.constant dense<0.000000e+00> : vector<16x128xf32>
    %6 = tpu.matmul %4, %5, %cst {dimension_numbers = #tpu.dot_dimension_numbers<[1], [0], [0], [1], [0, 0, 1, 1], [], []>} : vector<16x1024xbf16>, vector<1024x128xbf16>, vector<16x128xf32> -> vector<16x128xf32>
    %7 = arith.addf %3, %6 : vector<16x128xf32>
    %c0_6 = arith.constant 0 : index
    %c0_7 = arith.constant 0 : index
    %8 = vector.load %arg8[%c0_6, %c0_7] : memref<16x128xf32, #tpu.memory_space<vmem>>, vector<16x128xf32>
    tpu.vector_store %arg8[%c0_6, %c0_7], %7 {strides = array<i32>} : memref<16x128xf32, #tpu.memory_space<vmem>>, vector<16x128xf32>,
    %c8_i32 = arith.constant 8 : i32
    %9 = arith.cmpi eq, %arg1, %c8_i32 : i32
    %10 = arith.extui %9 : i1 to i32
    %c0_i32_8 = arith.constant 0 : i32
    %11 = arith.cmpi ne, %10, %c0_i32_8 : i32
    scf.if %11 {
      %c0_9 = arith.constant 0 : index
      %c0_10 = arith.constant 0 : index
      %12 = vector.load %arg8[%c0_9, %c0_10] : memref<16x128xf32, #tpu.memory_space<vmem>>, vector<16x128xf32>
      %c0_11 = arith.constant 0 : index
      %c0_12 = arith.constant 0 : index
      %13 = vector.load %arg4[%c0_11, %c0_12] : memref<1x128xf32, #tpu.memory_space<vmem>>, vector<1x128xf32>
      %14 = vector.broadcast %13 : vector<1x128xf32> to vector<16x128xf32>
      %15 = arith.addf %12, %14 : vector<16x128xf32>
      %cst_13 = arith.constant 0.000000e+00 : f32
      %16 = vector.broadcast %cst_13 : f32 to vector<16x128xf32>
      %17 = arith.maximumf %15, %16 : vector<16x128xf32>
      %c0_14 = arith.constant 0 : index
      %c0_15 = arith.constant 0 : index
      %18 = vector.load %arg5[%c0_14, %c0_15] : memref<128x128xf32, #tpu.memory_space<vmem>>, vector<128x128xf32>
      %cst_16 = arith.constant dense<0.000000e+00> : vector<16x128xf32>
      %19 = tpu.matmul %17, %18, %cst_16 {dimension_numbers = #tpu.dot_dimension_numbers<[1], [0], [0], [1], [0, 0, 1, 1], [], []>} : vector<16x128xf32>, vector<128x128xf32>, vector<16x128xf32> -> vector<16x128xf32>
      %c0_17 = arith.constant 0 : index
      %c0_18 = arith.constant 0 : index
      %20 = vector.load %arg6[%c0_17, %c0_18] : memref<1x128xf32, #tpu.memory_space<vmem>>, vector<1x128xf32>
      %21 = vector.broadcast %20 : vector<1x128xf32> to vector<16x128xf32>
      %22 = arith.addf %19, %21 : vector<16x128xf32>
      %cst_19 = arith.constant dense<0xFF800000> : vector<16xf32>
      %23 = vector.multi_reduction <maximumf>, %22, %cst_19 [1] : vector<16x128xf32> to vector<16xf32>
      %24 = vector.shape_cast %23 : vector<16xf32> to vector<16x1xf32>
      %25 = vector.broadcast %24 : vector<16x1xf32> to vector<16x128xf32>
      %26 = arith.subf %22, %25 : vector<16x128xf32>
      %27 = math.exp %26 : vector<16x128xf32>
      %cst_20 = arith.constant dense<0.000000e+00> : vector<16xf32>
      %28 = vector.multi_reduction <add>, %27, %cst_20 [1] : vector<16x128xf32> to vector<16xf32>
      %29 = vector.shape_cast %28 : vector<16xf32> to vector<16x1xf32>
      %30 = vector.broadcast %29 : vector<16x1xf32> to vector<16x128xf32>
      %31 = arith.divf %27, %30 : vector<16x128xf32>
      %c0_21 = arith.constant 0 : index
      %c0_22 = arith.constant 0 : index
      %32 = vector.load %arg7[%c0_21, %c0_22] : memref<16x128xf32, #tpu.memory_space<vmem>>, vector<16x128xf32>
      tpu.vector_store %arg7[%c0_21, %c0_22], %31 {strides = array<i32>} : memref<16x128xf32, #tpu.memory_space<vmem>>, vector<16x128xf32>,
    } else {
    }
    return
  }
  func.func @transform_0(%arg0: i32, %arg1: i32) -> (i32, i32) {
    %c0_i32 = arith.constant 0 : i32
    return %arg0, %arg1 : i32, i32
  }
  func.func @transform_1(%arg0: i32, %arg1: i32) -> (i32, i32) {
    %c0_i32 = arith.constant 0 : i32
    %c0_i32_0 = arith.constant 0 : i32
    return %arg1, %c0_i32 : i32, i32
  }
  func.func @transform_2(%arg0: i32, %arg1: i32) -> (i32, i32) {
    %c0_i32 = arith.constant 0 : i32
    %c0_i32_0 = arith.constant 0 : i32
    %c0_i32_1 = arith.constant 0 : i32
    return %c0_i32, %c0_i32_0 : i32, i32
  }
  func.func @transform_3(%arg0: i32, %arg1: i32) -> (i32, i32) {
    %c0_i32 = arith.constant 0 : i32
    %c0_i32_0 = arith.constant 0 : i32
    %c0_i32_1 = arith.constant 0 : i32
    return %c0_i32, %c0_i32_0 : i32, i32
  }
  func.func @transform_4(%arg0: i32, %arg1: i32) -> (i32, i32) {
    %c0_i32 = arith.constant 0 : i32
    %c0_i32_0 = arith.constant 0 : i32
    %c0_i32_1 = arith.constant 0 : i32
    return %c0_i32, %c0_i32_0 : i32, i32
  }
  func.func @transform_5(%arg0: i32, %arg1: i32) -> (i32, i32) {
    %c0_i32 = arith.constant 0 : i32
    %c0_i32_0 = arith.constant 0 : i32
    return %arg0, %c0_i32 : i32, i32
  }
}

</mosaic_0001>

<llo_original>
// kernel: net_forward.4
$region0: #{net_forward.4}
  #allocation0 [shape = 'u32[]', space=smem, size = 0x4, offset = 0x4, fixed_abs, tag = 'smem constant byte address 0x4 - core index']
  #allocation1 [shape = 'u32[144,128]{1,0:T(1,128)}', space=vmem, size = 0x12000, scoped, tag = 'internal scratch']
  #allocation2 [shape = 'f32[128,32]{1,0:T(8,128)}', space=vmem, size = 0x10000, scoped, tag = 'scratch operand']
  %s0 = inlined_call_operand.vmem [shape: bf16[1408,9], index: 0, kind: input, shape index: {}]
  %s1 = inlined_call_operand.hbm [shape: bf16[9,32], index: 1, kind: input, shape index: {}]
  %s2 = inlined_call_operand.hbm [shape: f32[1,32], index: 2, kind: input, shape index: {}]
  %s3 = inlined_call_operand.vmem [shape: bf16[1408,32], index: 3, kind: output, shape index: {}]
  %s4 = sld [smem:[#allocation0]]
  $region61: #{net_forward.4} parent=0
    _
  %s6 = ssub.s32 1, %s4
  %s7 = scalar_select 0, %s6, %s4
  $region1: #{net_forward.4} parent=0
    #allocation3 [shape = 'u8[4096]{0}', space=vmem, size = 0x1000, scoped, tag = 'input window, operand 1, single buffered']
    #allocation4 [shape = 's32[2]{0}', space=sflag, size = 0x8, scoped, tag = 'scoped memory for net_forward.4']
    #allocation5 [shape = 'u8[512]{0}', space=vmem, size = 0x400, scoped, tag = 'input window, operand 2, single buffered']
    #allocation6 [shape = 's32[1]{0}', space=sflag, size = 0x4, scoped, tag = 'scoped memory for net_forward.4']
    %8 = vsyncpa [#allocation4], 0
    %9 = vsyncpa [#allocation6], 0
    loop: start=0, step=1, limit=13
    $region2: #{net_forward.4} parent=1 // loop_pre_header
      _
    $region3: #{net_forward.4} parent=1 // loop_header
      %s11 = sphi 0, %s15
      %p12 = scmp.ge.s32.totalorder %s11, 13
      %s18 = sphi 0, %s30
      %s19 = sphi 0, %s26
      %s20 = sphi 0, %s18
      %s21 = sphi 0, %s19
      %s22 = sphi 0, %s20
      %s23 = sphi 0, %s21
      %s35 = sphi 0, %s37
      %s38 = sphi 0, %s35
      %s39 = sphi 0, %s38
      %s55 = sphi 0, %s39
      %s61 = sphi 0, %s63
      %s64 = sphi 0, %s61
      %s65 = sphi 0, %s64
      %s81 = sphi 0, %s65
      %s85 = sphi 0, %s85
      %s87 = sphi 0, %s85
      %s88 = sphi 0, %s87
      %s102 = sphi 0, %s88
      %s108 = sphi 0, %s110
      %s111 = sphi 0, %s108
      %s112 = sphi 0, %s111
      %s128 = sphi 0, %s112
    $region4: #{net_forward.4} parent=1 // loop_header_branch
      %14 = sbr.rel (%p12) target = $region8
    $region5: #{net_forward.4} parent=1 // loop_body
      %s16 = ssub.s32 %s11, 1
      %s17 = ssub.s32 %s11, 2
      %s24 = sadd.s32 1, %s19
      %p25 = scmp.ge.s32.totalorder %s24, 1
      %s26 = scalar_select %p25, 0, %s24
      %s27 = sadd.s32 1, %s18
      %s28 = scalar_select %p25, %s27, %s18
      %p29 = scmp.ge.s32.totalorder %s28, 11
      %s30 = scalar_select %p29, 0, %s28
      %s31 = ssub.s32 %s18, %s30
      %s32 = ssub.s32 %s19, %s26
      %s33 = sor.u32 %s31, %s32
      %p34 = scmp.eq.s32.totalorder %s33, 0
      %s36 = sadd.s32 %s35, 1
      %s37 = scalar_select %p34, %s35, %s36
      %p40 = pneg %p34
      %p41 = scmp.eq.s32.totalorder %s11, 10
      %p42 = por %p40, %p41
      %p43 = scmp.ne.s32.totalorder %s35, %s38
      %p44 = scmp.eq.s32.totalorder %s11, 0
      %p45 = por %p43, %p44
      %p46 = scmp.ne.s32.totalorder %s35, %s38
      %p47 = scmp.eq.s32.totalorder %s16, 10
      %p48 = por %p46, %p47
      %p49 = scmp.ne.s32.totalorder %s38, %s39
      %p50 = scmp.eq.s32.totalorder %s16, 0
      %p51 = por %p49, %p50
      %p52 = scmp.ne.s32.totalorder %s38, %s39
      %p53 = scmp.eq.s32.totalorder %s17, 10
      %p54 = por %p52, %p53
      %p56 = scmp.ne.s32.totalorder %s39, %s55
      %p57 = scmp.eq.s32.totalorder %s17, 0
      %p58 = por %p56, %p57
      %s59 = ssub.s32 %s19, %s26
      %p60 = scmp.eq.s32.totalorder %s59, 0
      %s62 = sadd.s32 %s61, 1
      %s63 = scalar_select %p60, %s61, %s62
      %p66 = pneg %p60
      %p67 = scmp.eq.s32.totalorder %s11, 10
      %p68 = por %p66, %p67
      %p69 = scmp.ne.s32.totalorder %s61, %s64
      %p70 = scmp.eq.s32.totalorder %s11, 0
      %p71 = por %p69, %p70
      %p72 = scmp.ne.s32.totalorder %s61, %s64
      %p73 = scmp.eq.s32.totalorder %s16, 10
      %p74 = por %p72, %p73
      %p75 = scmp.ne.s32.totalorder %s64, %s65
      %p76 = scmp.eq.s32.totalorder %s16, 0
      %p77 = por %p75, %p76
      %p78 = scmp.ne.s32.totalorder %s64, %s65
      %p79 = scmp.eq.s32.totalorder %s17, 10
      %p80 = por %p78, %p79
      %p82 = scmp.ne.s32.totalorder %s65, %s81
      %p83 = scmp.eq.s32.totalorder %s17, 0
      %p84 = por %p82, %p83
      %s86 = sadd.s32 %s85, 1
      %p89 = scmp.eq.s32.totalorder %s11, 10
      %p90 = scmp.ne.s32.totalorder %s85, %s87
      %p91 = scmp.eq.s32.totalorder %s11, 0
      %p92 = por %p90, %p91
      %p93 = scmp.ne.s32.totalorder %s85, %s87
      %p94 = scmp.eq.s32.totalorder %s16, 10
      %p95 = por %p93, %p94
      %p96 = scmp.ne.s32.totalorder %s87, %s88
      %p97 = scmp.eq.s32.totalorder %s16, 0
      %p98 = por %p96, %p97
      %p99 = scmp.ne.s32.totalorder %s87, %s88
      %p100 = scmp.eq.s32.totalorder %s17, 10
      %p101 = por %p99, %p100
      %p103 = scmp.ne.s32.totalorder %s88, %s102
      %p104 = scmp.eq.s32.totalorder %s17, 0
      %p105 = por %p103, %p104
      %s106 = ssub.s32 %s18, %s30
      %p107 = scmp.eq.s32.totalorder %s106, 0
      %s109 = sadd.s32 %s108, 1
      %s110 = scalar_select %p107, %s108, %s109
      %p113 = pneg %p107
      %p114 = scmp.eq.s32.totalorder %s11, 10
      %p115 = por %p113, %p114
      %p116 = scmp.ne.s32.totalorder %s108, %s111
      %p117 = scmp.eq.s32.totalorder %s11, 0
      %p118 = por %p116, %p117
      %p119 = scmp.ne.s32.totalorder %s108, %s111
      %p120 = scmp.eq.s32.totalorder %s16, 10
      %p121 = por %p119, %p120
      %p122 = scmp.ne.s32.totalorder %s111, %s112
      %p123 = scmp.eq.s32.totalorder %s16, 0
      %p124 = por %p122, %p123
      %p125 = scmp.ne.s32.totalorder %s111, %s112
      %p126 = scmp.eq.s32.totalorder %s17, 10
      %p127 = por %p125, %p126
      %p129 = scmp.ne.s32.totalorder %s112, %s128
      %p130 = scmp.eq.s32.totalorder %s17, 0
      %p131 = por %p129, %p130
      %p132 = scmp.le.s32.totalorder 1, %s11
      %p133 = scmp.lt.s32.totalorder %s11, 12
      %p134 = pnand %p132, %p133
      %p135 = pneg %p134
      // Predicated region
      $region9: #{net_forward.4} parent=5 // pred_check
        _
      $region10: #{net_forward.4} parent=5 // pred_check_branch
        %137 = sbr.rel (%p134) target = $region12
      $region11: #{net_forward.4} parent=5 // pred_region
        %s138 = ssub.s32 %s11, 1
        // Predicated region
        $region13: #{net_forward.4} parent=11 // pred_check
          %p139 = pneg %p77
        $region14: #{net_forward.4} parent=11 // pred_check_branch
          %141 = sbr.rel (%p139) target = $region16
        $region15: #{net_forward.4} parent=11 // pred_region
          %s142 = smul.u32 2, %s21
          %s144 = ssub.s32 128, 128
          %145 = vsyncadd [#allocation4], %s144
          %s146 = smul.addr %s142, 64
          %s147 = scalar_lea.hbm %s1, %s146
          %s148 = sshll.u32 [#allocation3], 4
          %s149 = int_to_ptr.vmem [resolvable:$true] %s148
          %154 = dma.hbm_to_vmem [thread:$0]  %s147, 128, %s149, [#allocation4], 64, 64, 4
        $region16: #{net_forward.4} parent=11 // pred_fallthru
          _
        // Predicated region
        $region17: #{net_forward.4} parent=11 // pred_check
          %p155 = pneg %p98
        $region18: #{net_forward.4} parent=11 // pred_check_branch
          %157 = sbr.rel (%p155) target = $region20
        $region19: #{net_forward.4} parent=11 // pred_region
          %s159 = ssub.s32 16, 16
          %160 = vsyncadd [#allocation6], %s159
          %s162 = sshll.u32 [#allocation5], 4
          %s163 = int_to_ptr.vmem [resolvable:$true] %s162
          %165 = dma.hbm_to_vmem [thread:$0]  %s2, 16, %s163, [#allocation6]
        $region20: #{net_forward.4} parent=11 // pred_fallthru
          _
      $region12: #{net_forward.4} parent=5 // pred_fallthru
        _
      %p166 = scmp.lt.s32.totalorder %s11, 11
      // Predicated region
      $region21: #{net_forward.4} parent=5 // pred_check
        %p167 = pneg %p166
      $region22: #{net_forward.4} parent=5 // pred_check_branch
        %169 = sbr.rel (%p167) target = $region24
      $region23: #{net_forward.4} parent=5 // pred_region
        // Predicated region
        $region25: #{net_forward.4} parent=23 // pred_check
          %p170 = pneg %p45
        $region26: #{net_forward.4} parent=23 // pred_check_branch
          %172 = sbr.rel (%p170) target = $region28
        $region27: #{net_forward.4} parent=23 // pred_region
          %s173 = smul.u32 16, %s18
          %p174 = scmp.lt.s32.totalorder %s173, 175
          %s175 = scalar_select %p174, %s173, 175
          %p176 = scmp.lt.s32.totalorder %s19, 0
          %s177 = scalar_select %p176, %s19, 0
          %s178 = sadd.s32 %s177, %s175
          %s179 = smul.addr %s178, 4
          %s180 = scalar_lea.vmem %s0, %s179
          %s181 = smul.u32 16, %s18
        $region28: #{net_forward.4} parent=23 // pred_fallthru
          _
      $region24: #{net_forward.4} parent=5 // pred_fallthru
        _
      %p182 = scmp.le.s32.totalorder 1, %s11
      %p183 = scmp.lt.s32.totalorder %s11, 12
      %p184 = pnand %p182, %p183
      %p185 = pneg %p184
      // Predicated region
      $region29: #{net_forward.4} parent=5 // pred_check
        _
      $region30: #{net_forward.4} parent=5 // pred_check_branch
        %187 = sbr.rel (%p184) target = $region32
      $region31: #{net_forward.4} parent=5 // pred_region
        %s188 = ssub.s32 %s11, 1
        // Predicated region
        $region33: #{net_forward.4} parent=31 // pred_check
          %p189 = pneg %p77
        $region34: #{net_forward.4} parent=31 // pred_check_branch
          %191 = sbr.rel (%p189) target = $region36
        $region35: #{net_forward.4} parent=31 // pred_region
          %192 = dma.done [#allocation4], 128
        $region36: #{net_forward.4} parent=31 // pred_fallthru
          _
        // Predicated region
        $region37: #{net_forward.4} parent=31 // pred_check
          %p193 = pneg %p98
        $region38: #{net_forward.4} parent=31 // pred_check_branch
          %195 = sbr.rel (%p193) target = $region40
        $region39: #{net_forward.4} parent=31 // pred_region
          %196 = dma.done [#allocation6], 16
        $region40: #{net_forward.4} parent=31 // pred_fallthru
          _
        %s197 = smul.u32 16, %s20
        %p198 = scmp.lt.s32.totalorder %s197, 175
        %s199 = scalar_select %p198, %s197, 175
        %p200 = scmp.lt.s32.totalorder %s21, 0
        %s201 = scalar_select %p200, %s21, 0
        %s202 = sadd.s32 %s201, %s199
        %s203 = smul.addr %s202, 4
        %s204 = scalar_lea.vmem %s0, %s203
        %p205 = pneg %p51
        %p206 = pneg %p48
        %p207 = pneg %p77
        %p208 = pneg %p74
        %p209 = pneg %p98
        %p210 = pneg %p95
        %p211 = pneg %p124
        %p212 = pneg %p121
        %s213 = smul.u32 16, %s20
        %p214 = scmp.lt.s32.totalorder %s213, 175
        %s215 = scalar_select %p214, %s213, 175
        %s216 = smul.addr %s215, 4
        %s217 = scalar_lea.vmem %s3, %s216
        %s218 = smul.u32 16, %s20
        %p219 = scmp.lt.s32.totalorder %s218, 175
        %s220 = scalar_select %p219, %s218, 175
        %p221 = scmp.lt.s32.totalorder %s21, 0
        %s222 = scalar_select %p221, %s21, 0
        %s223 = sadd.s32 %s222, %s220
        %s224 = smul.addr %s223, 4
        %s225 = scalar_lea.vmem %s0, %s224
        %s226 = smul.u32 16, %s20
        %s227 = smul.u32 2, %s21
        %s228 = smul.u32 16, %s20
        %p229 = scmp.lt.s32.totalorder %s228, 175
        %s230 = scalar_select %p229, %s228, 175
        %s231 = smul.addr %s230, 4
        %s232 = scalar_lea.vmem %s3, %s231
        %s233 = smul.u32 16, %s20
        %p235 = scmp.eq.s32.totalorder %s21, 0
        // Predicated region
        $region41: #{net_forward.4} parent=31 // pred_check
          %p236 = pneg %p235
        $region42: #{net_forward.4} parent=31 // pred_check_branch
          %238 = sbr.rel (%p236) target = $region44
        $region43: #{net_forward.4} parent=31 // pred_region
          %vm239 = vcmask 261120
          %240 = vst.msk [vmem:[#allocation2] sm:$0xff] %vm239, 0.0
          %241 = vst.msk [vmem:[#allocation2 + $0x8] sm:$0xff] %vm239, 0.0
          %242 = vst.msk [vmem:[#allocation2 + $0x10] sm:$0xff] %vm239, 0.0
          %243 = vst.msk [vmem:[#allocation2 + $0x18] sm:$0xff] %vm239, 0.0
          %244 = vst.msk [vmem:[#allocation2 + $0x20] sm:$0xff] %vm239, 0.0
          %245 = vst.msk [vmem:[#allocation2 + $0x28] sm:$0xff] %vm239, 0.0
          %246 = vst.msk [vmem:[#allocation2 + $0x30] sm:$0xff] %vm239, 0.0
          %247 = vst.msk [vmem:[#allocation2 + $0x38] sm:$0xff] %vm239, 0.0
          %248 = vst.msk [vmem:[#allocation2 + $0x40] sm:$0xff] %vm239, 0.0
          %249 = vst.msk [vmem:[#allocation2 + $0x48] sm:$0xff] %vm239, 0.0
          %250 = vst.msk [vmem:[#allocation2 + $0x50] sm:$0xff] %vm239, 0.0
          %251 = vst.msk [vmem:[#allocation2 + $0x58] sm:$0xff] %vm239, 0.0
          %252 = vst.msk [vmem:[#allocation2 + $0x60] sm:$0xff] %vm239, 0.0
          %253 = vst.msk [vmem:[#allocation2 + $0x68] sm:$0xff] %vm239, 0.0
          %254 = vst.msk [vmem:[#allocation2 + $0x70] sm:$0xff] %vm239, 0.0
          %255 = vst.msk [vmem:[#allocation2 + $0x78] sm:$0xff] %vm239, 0.0
        $region44: #{net_forward.4} parent=31 // pred_fallthru
          _
        %v256 = vld [vmem:[#allocation2] sm:$0xff]
        %v257 = vld [vmem:[#allocation2 + $0x8] sm:$0xff]
        %v258 = vld [vmem:[#allocation2 + $0x10] sm:$0xff]
        %v259 = vld [vmem:[#allocation2 + $0x18] sm:$0xff]
        %v260 = vld [vmem:[#allocation2 + $0x20] sm:$0xff]
        %v261 = vld [vmem:[#allocation2 + $0x28] sm:$0xff]
        %v262 = vld [vmem:[#allocation2 + $0x30] sm:$0xff]
        %v263 = vld [vmem:[#allocation2 + $0x38] sm:$0xff]
        %v264 = vld [vmem:[#allocation2 + $0x40] sm:$0xff]
        %v265 = vld [vmem:[#allocation2 + $0x48] sm:$0xff]
        %v266 = vld [vmem:[#allocation2 + $0x50] sm:$0xff]
        %v267 = vld [vmem:[#allocation2 + $0x58] sm:$0xff]
        %v268 = vld [vmem:[#allocation2 + $0x60] sm:$0xff]
        %v269 = vld [vmem:[#allocation2 + $0x68] sm:$0xff]
        %v270 = vld [vmem:[#allocation2 + $0x70] sm:$0xff]
        %v271 = vld [vmem:[#allocation2 + $0x78] sm:$0xff]
        %v272 = vld [vmem:[%s225] sm:$0xf]
        %v273 = vld [vmem:[%s225 + $0x4] sm:$0xf]
        %v274 = vld [vmem:[%s225 + $0x8] sm:$0xf]
        %v275 = vld [vmem:[%s225 + $0xc] sm:$0xf]
        %v276 = vld [vmem:[%s225 + $0x10] sm:$0xf]
        %v277 = vld [vmem:[%s225 + $0x14] sm:$0xf]
        %v278 = vld [vmem:[%s225 + $0x18] sm:$0xf]
        %v279 = vld [vmem:[%s225 + $0x1c] sm:$0xf]
        %v280 = vld [vmem:[%s225 + $0x20] sm:$0xf]
        %v281 = vld [vmem:[%s225 + $0x24] sm:$0xf]
        %v282 = vld [vmem:[%s225 + $0x28] sm:$0xf]
        %v283 = vld [vmem:[%s225 + $0x2c] sm:$0xf]
        %v284 = vld [vmem:[%s225 + $0x30] sm:$0xf]
        %v285 = vld [vmem:[%s225 + $0x34] sm:$0xf]
        %v286 = vld [vmem:[%s225 + $0x38] sm:$0xf]
        %v287 = vld [vmem:[%s225 + $0x3c] sm:$0xf]
        %v288 = vld [vmem:[#allocation3] sm:$0xf]
        %v289 = vld [vmem:[#allocation3 + $0x4] sm:$0x1]
        %v306 = vunpack.c.l.b16 %v272
        %v307 = vunpack.c.l.b16 %v273
        %v308 = vunpack.c.l.b16 %v274
        %v309 = vunpack.c.l.b16 %v275
        %v310 = vunpack.c.l.b16 %v276
        %v311 = vunpack.c.l.b16 %v277
        %v312 = vunpack.c.l.b16 %v278
        %v313 = vunpack.c.l.b16 %v279
        %v314 = vunpack.c.l.b16 %v280
        %v315 = vunpack.c.l.b16 %v281
        %v316 = vunpack.c.l.b16 %v282
        %v317 = vunpack.c.l.b16 %v283
        %v318 = vunpack.c.l.b16 %v284
        %v319 = vunpack.c.l.b16 %v285
        %v320 = vunpack.c.l.b16 %v286
        %v321 = vunpack.c.l.b16 %v287
        %v322 = vpack.c.b16 %v307, %v306
        %v323 = vpack.c.b16 %v309, %v308
        %v324 = vpack.c.b16 %v311, %v310
        %v325 = vpack.c.b16 %v313, %v312
        %v326 = vpack.c.b16 %v315, %v314
        %v327 = vpack.c.b16 %v317, %v316
        %v328 = vpack.c.b16 %v319, %v318
        %v329 = vpack.c.b16 %v321, %v320
        %v332 = vunpack.c.l.b16 %v288
        %v333 = vunpack.c.l.b16 %v289
        %v334 = vpack.c.b16 %v333, %v332
        %vm335 = vcmask 72704
        %v337 = vsel %vm335, %v322, 0
        %v340 = vsel %vm335, %v323, 0
        %v343 = vsel %vm335, %v324, 0
        %v346 = vsel %vm335, %v325, 0
        %v349 = vsel %vm335, %v326, 0
        %v352 = vsel %vm335, %v327, 0
        %v355 = vsel %vm335, %v328, 0
        %v358 = vsel %vm335, %v329, 0
        %vm360 = vcmask 1043456
        %vm361 = vcmask 1044480
        %v362 = vsel %vm360, 4294967295, 65535
        %v363 = vsel %vm361, %v362, 0
        %v365 = vand.u32 %v334, %v363
        %367 = vmatprep.subr.bf16.mxu0 0
        %368 = vmatpush1.bf16.msra.mxu0 %v365
        %369 = vmatprep.subr.bf16.mxu0 0
        %370 = vmatpush1.bf16.msra.mxu0 0
        %371 = vmatprep.subr.bf16.mxu0 0
        %372 = vmatpush1.bf16.msra.mxu0 0
        %373 = vmatprep.subr.bf16.mxu0 0
        %374 = vmatpush1.bf16.msra.mxu0 0
        %375 = vmatprep.subr.bf16.mxu0 0
        %376 = vmatpush1.bf16.msra.mxu0 0
        %377 = vmatprep.subr.bf16.mxu0 0
        %378 = vmatpush1.bf16.msra.mxu0 0
        %379 = vmatprep.subr.bf16.mxu0 0
        %380 = vmatpush1.bf16.msra.mxu0 0
        %381 = vmatprep.subr.bf16.mxu0 0
        %382 = vmatpush1.bf16.msra.mxu0 0
        %383 = vmatprep.subr.bf16.mxu0 0
        %384 = vmatpush1.bf16.msra.mxu0 0
        %385 = vmatprep.subr.bf16.mxu0 0
        %386 = vmatpush1.bf16.msra.mxu0 0
        %387 = vmatprep.subr.bf16.mxu0 0
        %388 = vmatpush1.bf16.msra.mxu0 0
        %389 = vmatprep.subr.bf16.mxu0 0
        %390 = vmatpush1.bf16.msra.mxu0 0
        %391 = vmatprep.subr.bf16.mxu0 0
        %392 = vmatpush1.bf16.msra.mxu0 0
        %393 = vmatprep.subr.bf16.mxu0 0
        %394 = vmatpush1.bf16.msra.mxu0 0
        %395 = vmatprep.subr.bf16.mxu0 0
        %396 = vmatpush1.bf16.msra.mxu0 0
        %397 = vmatprep.subr.bf16.mxu0 0
        %398 = vmatpush1.bf16.msra.mxu0 0
        %399 = vmatprep.mubr.bf16.mxu0 0
        %400 = vmatmul.mubr.bf16.gmra.mrb[0].mxu0 %v337
        %v401 = vpop.f32.mrb[0].mxu0
        %v402 = vadd.f32 0.0, %v401
        %v403 = vpop.f32.mrb[0].mxu0
        %v404 = vpop.f32.mrb[0].mxu0
        %v405 = vadd.f32 0.0, %v404
        %v406 = vpop.f32.mrb[0].mxu0
        %407 = vmatprep.mubr.bf16.mxu0 0
        %408 = vmatmul.mubr.bf16.gmra.mrb[0].mxu0 %v340
        %v409 = vpop.f32.mrb[0].mxu0
        %v410 = vadd.f32 0.0, %v409
        %v411 = vpop.f32.mrb[0].mxu0
        %v412 = vpop.f32.mrb[0].mxu0
        %v413 = vadd.f32 0.0, %v412
        %v414 = vpop.f32.mrb[0].mxu0
        %415 = vmatprep.mubr.bf16.mxu0 0
        %416 = vmatmul.mubr.bf16.gmra.mrb[0].mxu0 %v343
        %v417 = vpop.f32.mrb[0].mxu0
        %v418 = vadd.f32 0.0, %v417
        %v419 = vpop.f32.mrb[0].mxu0
        %v420 = vpop.f32.mrb[0].mxu0
        %v421 = vadd.f32 0.0, %v420
        %v422 = vpop.f32.mrb[0].mxu0
        %423 = vmatprep.mubr.bf16.mxu0 0
        %424 = vmatmul.mubr.bf16.gmra.mrb[0].mxu0 %v346
        %v425 = vpop.f32.mrb[0].mxu0
        %v426 = vadd.f32 0.0, %v425
        %v427 = vpop.f32.mrb[0].mxu0
        %v428 = vpop.f32.mrb[0].mxu0
        %v429 = vadd.f32 0.0, %v428
        %v430 = vpop.f32.mrb[0].mxu0
        %431 = vmatprep.mubr.bf16.mxu0 0
        %432 = vmatmul.mubr.bf16.gmra.mrb[0].mxu0 %v349
        %v433 = vpop.f32.mrb[0].mxu0
        %v434 = vadd.f32 0.0, %v433
        %v435 = vpop.f32.mrb[0].mxu0
        %v436 = vpop.f32.mrb[0].mxu0
        %v437 = vadd.f32 0.0, %v436
        %v438 = vpop.f32.mrb[0].mxu0
        %439 = vmatprep.mubr.bf16.mxu0 0
        %440 = vmatmul.mubr.bf16.gmra.mrb[0].mxu0 %v352
        %v441 = vpop.f32.mrb[0].mxu0
        %v442 = vadd.f32 0.0, %v441
        %v443 = vpop.f32.mrb[0].mxu0
        %v444 = vpop.f32.mrb[0].mxu0
        %v445 = vadd.f32 0.0, %v444
        %v446 = vpop.f32.mrb[0].mxu0
        %447 = vmatprep.mubr.bf16.mxu0 0
        %448 = vmatmul.mubr.bf16.gmra.mrb[0].mxu0 %v355
        %v449 = vpop.f32.mrb[0].mxu0
        %v450 = vadd.f32 0.0, %v449
        %v451 = vpop.f32.mrb[0].mxu0
        %v452 = vpop.f32.mrb[0].mxu0
        %v453 = vadd.f32 0.0, %v452
        %v454 = vpop.f32.mrb[0].mxu0
        %455 = vmatprep.mubr.bf16.mxu0 0
        %456 = vmatmul.mubr.bf16.gmra.mrb[0].mxu0 %v358
        %v457 = vpop.f32.mrb[0].mxu0
        %v458 = vadd.f32 0.0, %v457
        %v459 = vpop.f32.mrb[0].mxu0
        %v460 = vpop.f32.mrb[0].mxu0
        %v461 = vadd.f32 0.0, %v460
        %v462 = vpop.f32.mrb[0].mxu0
        %463 = vdwg.mxu0
        %v464 = vadd.f32 %v256, %v402
        %v465 = vadd.f32 %v257, %v405
        %v466 = vadd.f32 %v258, %v410
        %v467 = vadd.f32 %v259, %v413
        %v468 = vadd.f32 %v260, %v418
        %v469 = vadd.f32 %v261, %v421
        %v470 = vadd.f32 %v262, %v426
        %v471 = vadd.f32 %v263, %v429
        %v472 = vadd.f32 %v264, %v434
        %v473 = vadd.f32 %v265, %v437
        %v474 = vadd.f32 %v266, %v442
        %v475 = vadd.f32 %v267, %v445
        %v476 = vadd.f32 %v268, %v450
        %v477 = vadd.f32 %v269, %v453
        %v478 = vadd.f32 %v270, %v458
        %v479 = vadd.f32 %v271, %v461
        %vm480 = vcmask 261120
        %481 = vst.msk [vmem:[#allocation2] sm:$0xff] %vm480, %v464
        %482 = vst.msk [vmem:[#allocation2 + $0x8] sm:$0xff] %vm480, %v465
        %483 = vst.msk [vmem:[#allocation2 + $0x10] sm:$0xff] %vm480, %v466
        %484 = vst.msk [vmem:[#allocation2 + $0x18] sm:$0xff] %vm480, %v467
        %485 = vst.msk [vmem:[#allocation2 + $0x20] sm:$0xff] %vm480, %v468
        %486 = vst.msk [vmem:[#allocation2 + $0x28] sm:$0xff] %vm480, %v469
        %487 = vst.msk [vmem:[#allocation2 + $0x30] sm:$0xff] %vm480, %v470
        %488 = vst.msk [vmem:[#allocation2 + $0x38] sm:$0xff] %vm480, %v471
        %489 = vst.msk [vmem:[#allocation2 + $0x40] sm:$0xff] %vm480, %v472
        %490 = vst.msk [vmem:[#allocation2 + $0x48] sm:$0xff] %vm480, %v473
        %491 = vst.msk [vmem:[#allocation2 + $0x50] sm:$0xff] %vm480, %v474
        %492 = vst.msk [vmem:[#allocation2 + $0x58] sm:$0xff] %vm480, %v475
        %493 = vst.msk [vmem:[#allocation2 + $0x60] sm:$0xff] %vm480, %v476
        %494 = vst.msk [vmem:[#allocation2 + $0x68] sm:$0xff] %vm480, %v477
        %495 = vst.msk [vmem:[#allocation2 + $0x70] sm:$0xff] %vm480, %v478
        %496 = vst.msk [vmem:[#allocation2 + $0x78] sm:$0xff] %vm480, %v479
        // Predicated region
        $region45: #{net_forward.4} parent=31 // pred_check
          %p497 = pneg %p235
        $region46: #{net_forward.4} parent=31 // pred_check_branch
          %499 = sbr.rel (%p497) target = $region48
        $region47: #{net_forward.4} parent=31 // pred_region
          %v500 = vld [vmem:[#allocation2] sm:$0xff]
          %v501 = vld [vmem:[#allocation2 + $0x8] sm:$0xff]
          %v502 = vld [vmem:[#allocation2 + $0x10] sm:$0xff]
          %v503 = vld [vmem:[#allocation2 + $0x18] sm:$0xff]
          %v504 = vld [vmem:[#allocation2 + $0x20] sm:$0xff]
          %v505 = vld [vmem:[#allocation2 + $0x28] sm:$0xff]
          %v506 = vld [vmem:[#allocation2 + $0x30] sm:$0xff]
          %v507 = vld [vmem:[#allocation2 + $0x38] sm:$0xff]
          %v508 = vld [vmem:[#allocation2 + $0x40] sm:$0xff]
          %v509 = vld [vmem:[#allocation2 + $0x48] sm:$0xff]
          %v510 = vld [vmem:[#allocation2 + $0x50] sm:$0xff]
          %v511 = vld [vmem:[#allocation2 + $0x58] sm:$0xff]
          %v512 = vld [vmem:[#allocation2 + $0x60] sm:$0xff]
          %v513 = vld [vmem:[#allocation2 + $0x68] sm:$0xff]
          %v514 = vld [vmem:[#allocation2 + $0x70] sm:$0xff]
          %v515 = vld [vmem:[#allocation2 + $0x78] sm:$0xff]
          %v516 = vld [vmem:[#allocation5] sm:$0x1]
          %v518 = vlaneseq
          %v519 = vshrl.u32 %v518, 7
          %v520 = vsub.s32 0, %v519
          %v521 = vrot.slane %v516, %v520
          %v523 = vadd.f32 %v500, %v521
          %v524 = vadd.f32 %v501, %v521
          %v525 = vadd.f32 %v502, %v521
          %v526 = vadd.f32 %v503, %v521
          %v527 = vadd.f32 %v504, %v521
          %v528 = vadd.f32 %v505, %v521
          %v529 = vadd.f32 %v506, %v521
          %v530 = vadd.f32 %v507, %v521
          %v531 = vadd.f32 %v508, %v521
          %v532 = vadd.f32 %v509, %v521
          %v533 = vadd.f32 %v510, %v521
          %v534 = vadd.f32 %v511, %v521
          %v535 = vadd.f32 %v512, %v521
          %v536 = vadd.f32 %v513, %v521
          %v537 = vadd.f32 %v514, %v521
          %v538 = vadd.f32 %v515, %v521
          %v539 = vmax.f32 %v523, 0.0
          %v540 = vmax.f32 %v524, 0.0
          %v541 = vmax.f32 %v525, 0.0
          %v542 = vmax.f32 %v526, 0.0
          %v543 = vmax.f32 %v527, 0.0
          %v544 = vmax.f32 %v528, 0.0
          %v545 = vmax.f32 %v529, 0.0
          %v546 = vmax.f32 %v530, 0.0
          %v547 = vmax.f32 %v531, 0.0
          %v548 = vmax.f32 %v532, 0.0
          %v549 = vmax.f32 %v533, 0.0
          %v550 = vmax.f32 %v534, 0.0
          %v551 = vmax.f32 %v535, 0.0
          %v552 = vmax.f32 %v536, 0.0
          %v553 = vmax.f32 %v537, 0.0
          %v554 = vmax.f32 %v538, 0.0
          %v555 = vpack.c.bf16 %v540, %v539
          %v556 = vpack.c.bf16 %v542, %v541
          %v557 = vpack.c.bf16 %v544, %v543
          %v558 = vpack.c.bf16 %v546, %v545
          %v559 = vpack.c.bf16 %v548, %v547
          %v560 = vpack.c.bf16 %v550, %v549
          %v561 = vpack.c.bf16 %v552, %v551
          %v562 = vpack.c.bf16 %v554, %v553
          %v571 = vunpack.c.l.b16 %v555
          %v572 = vunpack.c.h.b16 %v555
          %v573 = vunpack.c.l.b16 %v556
          %v574 = vunpack.c.h.b16 %v556
          %v575 = vunpack.c.l.b16 %v557
          %v576 = vunpack.c.h.b16 %v557
          %v577 = vunpack.c.l.b16 %v558
          %v578 = vunpack.c.h.b16 %v558
          %v579 = vunpack.c.l.b16 %v559
          %v580 = vunpack.c.h.b16 %v559
          %v581 = vunpack.c.l.b16 %v560
          %v582 = vunpack.c.h.b16 %v560
          %v583 = vunpack.c.l.b16 %v561
          %v584 = vunpack.c.h.b16 %v561
          %v585 = vunpack.c.l.b16 %v562
          %v586 = vunpack.c.h.b16 %v562
          %v587 = vpack.c.b16 %v571, %v571
          %v588 = vpack.c.b16 %v572, %v572
          %v589 = vpack.c.b16 %v573, %v573
          %v590 = vpack.c.b16 %v574, %v574
          %v591 = vpack.c.b16 %v575, %v575
          %v592 = vpack.c.b16 %v576, %v576
          %v593 = vpack.c.b16 %v577, %v577
          %v594 = vpack.c.b16 %v578, %v578
          %v595 = vpack.c.b16 %v579, %v579
          %v596 = vpack.c.b16 %v580, %v580
          %v597 = vpack.c.b16 %v581, %v581
          %v598 = vpack.c.b16 %v582, %v582
          %v599 = vpack.c.b16 %v583, %v583
          %v600 = vpack.c.b16 %v584, %v584
          %v601 = vpack.c.b16 %v585, %v585
          %v602 = vpack.c.b16 %v586, %v586
          %vm619 = vcmask 257024
          %620 = vst.msk [vmem:[%s232] sm:$0xf] %vm619, %v587
          %621 = vst.msk [vmem:[%s232 + $0x4] sm:$0xf] %vm619, %v588
          %622 = vst.msk [vmem:[%s232 + $0x8] sm:$0xf] %vm619, %v589
          %623 = vst.msk [vmem:[%s232 + $0xc] sm:$0xf] %vm619, %v590
          %624 = vst.msk [vmem:[%s232 + $0x10] sm:$0xf] %vm619, %v591
          %625 = vst.msk [vmem:[%s232 + $0x14] sm:$0xf] %vm619, %v592
          %626 = vst.msk [vmem:[%s232 + $0x18] sm:$0xf] %vm619, %v593
          %627 = vst.msk [vmem:[%s232 + $0x1c] sm:$0xf] %vm619, %v594
          %628 = vst.msk [vmem:[%s232 + $0x20] sm:$0xf] %vm619, %v595
          %629 = vst.msk [vmem:[%s232 + $0x24] sm:$0xf] %vm619, %v596
          %630 = vst.msk [vmem:[%s232 + $0x28] sm:$0xf] %vm619, %v597
          %631 = vst.msk [vmem:[%s232 + $0x2c] sm:$0xf] %vm619, %v598
          %632 = vst.msk [vmem:[%s232 + $0x30] sm:$0xf] %vm619, %v599
          %633 = vst.msk [vmem:[%s232 + $0x34] sm:$0xf] %vm619, %v600
          %634 = vst.msk [vmem:[%s232 + $0x38] sm:$0xf] %vm619, %v601
          %635 = vst.msk [vmem:[%s232 + $0x3c] sm:$0xf] %vm619, %v602
        $region48: #{net_forward.4} parent=31 // pred_fallthru
          _
        %s636 = smul.u32 16, %s20
        %p637 = scmp.lt.s32.totalorder %s636, 175
        %s638 = scalar_select %p637, %s636, 175
        %s639 = smul.addr %s638, 4
        %s640 = scalar_lea.vmem %s3, %s639
        // Predicated region
        $region49: #{net_forward.4} parent=31 // pred_check
          %p641 = pneg %p121
        $region50: #{net_forward.4} parent=31 // pred_check_branch
          %643 = sbr.rel (%p641) target = $region52
        $region51: #{net_forward.4} parent=31 // pred_region
          %s644 = smul.u32 16, %s20
        $region52: #{net_forward.4} parent=31 // pred_fallthru
          _
      $region32: #{net_forward.4} parent=5 // pred_fallthru
        _
      %p645 = scmp.le.s32.totalorder 2, %s11
      // Predicated region
      $region53: #{net_forward.4} parent=5 // pred_check
        %p646 = pneg %p645
      $region54: #{net_forward.4} parent=5 // pred_check_branch
        %648 = sbr.rel (%p646) target = $region56
      $region55: #{net_forward.4} parent=5 // pred_region
        %s649 = ssub.s32 %s11, 2
        // Predicated region
        $region57: #{net_forward.4} parent=55 // pred_check
          %p650 = pneg %p127
        $region58: #{net_forward.4} parent=55 // pred_check_branch
          %652 = sbr.rel (%p650) target = $region60
        $region59: #{net_forward.4} parent=55 // pred_region
          %s653 = smul.u32 16, %s22
          %p654 = scmp.lt.s32.totalorder %s653, 175
          %s655 = scalar_select %p654, %s653, 175
          %s656 = smul.addr %s655, 4
          %s657 = scalar_lea.vmem %s3, %s656
        $region60: #{net_forward.4} parent=55 // pred_fallthru
          _
      $region56: #{net_forward.4} parent=5 // pred_fallthru
        _
    $region6: #{net_forward.4} parent=1 // loop_footer
      %s15 = sadd.s32 1, %s11
    $region7: #{net_forward.4} parent=1 // loop_footer_branch
      %10 = sbr.rel target = $region3
    $region8: #{net_forward.4} parent=1 // loop_exit
      _
    %658 = vsyncpa [#allocation4], 1
    %s659 = scalar_lea.sflag [#allocation4], 1
    %660 = vsyncpa %s659, 1
    %661 = vsyncpa [#allocation6], 1

// kernel: net_forward.5
$region0: #{net_forward.5}
  #allocation0 [shape = 'u32[]', space=smem, size = 0x4, offset = 0x4, fixed_abs, tag = 'smem constant byte address 0x4 - core index']
  #allocation1 [shape = 'u32[144,128]{1,0:T(1,128)}', space=vmem, size = 0x12000, scoped, tag = 'internal scratch']
  #allocation2 [shape = 'f32[128,64]{1,0:T(8,128)}', space=vmem, size = 0x10000, scoped, tag = 'scratch operand']
  %s0 = inlined_call_operand.vmem [shape: bf16[1152,288], index: 0, kind: input, shape index: {}]
  %s1 = inlined_call_operand.vmem [shape: bf16[288,64], index: 1, kind: input, shape index: {}]
  %s2 = inlined_call_operand.vmem [shape: f32[1,64], index: 2, kind: input, shape index: {}]
  %s3 = inlined_call_operand.vmem [shape: bf16[1152,64], index: 3, kind: output, shape index: {}]
  %s4 = sld [smem:[#allocation0]]
  $region53: #{net_forward.5} parent=0
    _
  %s6 = ssub.s32 1, %s4
  %s7 = scalar_select 0, %s6, %s4
  loop: start=0, step=1, limit=11
  $region2: #{net_forward.5} parent=0 // loop_pre_header
    _
  $region3: #{net_forward.5} parent=0 // loop_header
    %s9 = sphi 0, %s13
    %p10 = scmp.ge.s32.totalorder %s9, 11
    %s16 = sphi 0, %s28
    %s17 = sphi 0, %s24
    %s18 = sphi 0, %s16
    %s19 = sphi 0, %s17
    %s20 = sphi 0, %s18
    %s21 = sphi 0, %s19
    %s33 = sphi 0, %s35
    %s36 = sphi 0, %s33
    %s37 = sphi 0, %s36
    %s53 = sphi 0, %s37
    %s59 = sphi 0, %s61
    %s62 = sphi 0, %s59
    %s63 = sphi 0, %s62
    %s79 = sphi 0, %s63
    %s83 = sphi 0, %s83
    %s85 = sphi 0, %s83
    %s86 = sphi 0, %s85
    %s100 = sphi 0, %s86
    %s106 = sphi 0, %s108
    %s109 = sphi 0, %s106
    %s110 = sphi 0, %s109
    %s126 = sphi 0, %s110
  $region4: #{net_forward.5} parent=0 // loop_header_branch
    %12 = sbr.rel (%p10) target = $region8
  $region5: #{net_forward.5} parent=0 // loop_body
    %s14 = ssub.s32 %s9, 1
    %s15 = ssub.s32 %s9, 2
    %s22 = sadd.s32 1, %s17
    %p23 = scmp.ge.s32.totalorder %s22, 1
    %s24 = scalar_select %p23, 0, %s22
    %s25 = sadd.s32 1, %s16
    %s26 = scalar_select %p23, %s25, %s16
    %p27 = scmp.ge.s32.totalorder %s26, 9
    %s28 = scalar_select %p27, 0, %s26
    %s29 = ssub.s32 %s16, %s28
    %s30 = ssub.s32 %s17, %s24
    %s31 = sor.u32 %s29, %s30
    %p32 = scmp.eq.s32.totalorder %s31, 0
    %s34 = sadd.s32 %s33, 1
    %s35 = scalar_select %p32, %s33, %s34
    %p38 = pneg %p32
    %p39 = scmp.eq.s32.totalorder %s9, 8
    %p40 = por %p38, %p39
    %p41 = scmp.ne.s32.totalorder %s33, %s36
    %p42 = scmp.eq.s32.totalorder %s9, 0
    %p43 = por %p41, %p42
    %p44 = scmp.ne.s32.totalorder %s33, %s36
    %p45 = scmp.eq.s32.totalorder %s14, 8
    %p46 = por %p44, %p45
    %p47 = scmp.ne.s32.totalorder %s36, %s37
    %p48 = scmp.eq.s32.totalorder %s14, 0
    %p49 = por %p47, %p48
    %p50 = scmp.ne.s32.totalorder %s36, %s37
    %p51 = scmp.eq.s32.totalorder %s15, 8
    %p52 = por %p50, %p51
    %p54 = scmp.ne.s32.totalorder %s37, %s53
    %p55 = scmp.eq.s32.totalorder %s15, 0
    %p56 = por %p54, %p55
    %s57 = ssub.s32 %s17, %s24
    %p58 = scmp.eq.s32.totalorder %s57, 0
    %s60 = sadd.s32 %s59, 1
    %s61 = scalar_select %p58, %s59, %s60
    %p64 = pneg %p58
    %p65 = scmp.eq.s32.totalorder %s9, 8
    %p66 = por %p64, %p65
    %p67 = scmp.ne.s32.totalorder %s59, %s62
    %p68 = scmp.eq.s32.totalorder %s9, 0
    %p69 = por %p67, %p68
    %p70 = scmp.ne.s32.totalorder %s59, %s62
    %p71 = scmp.eq.s32.totalorder %s14, 8
    %p72 = por %p70, %p71
    %p73 = scmp.ne.s32.totalorder %s62, %s63
    %p74 = scmp.eq.s32.totalorder %s14, 0
    %p75 = por %p73, %p74
    %p76 = scmp.ne.s32.totalorder %s62, %s63
    %p77 = scmp.eq.s32.totalorder %s15, 8
    %p78 = por %p76, %p77
    %p80 = scmp.ne.s32.totalorder %s63, %s79
    %p81 = scmp.eq.s32.totalorder %s15, 0
    %p82 = por %p80, %p81
    %s84 = sadd.s32 %s83, 1
    %p87 = scmp.eq.s32.totalorder %s9, 8
    %p88 = scmp.ne.s32.totalorder %s83, %s85
    %p89 = scmp.eq.s32.totalorder %s9, 0
    %p90 = por %p88, %p89
    %p91 = scmp.ne.s32.totalorder %s83, %s85
    %p92 = scmp.eq.s32.totalorder %s14, 8
    %p93 = por %p91, %p92
    %p94 = scmp.ne.s32.totalorder %s85, %s86
    %p95 = scmp.eq.s32.totalorder %s14, 0
    %p96 = por %p94, %p95
    %p97 = scmp.ne.s32.totalorder %s85, %s86
    %p98 = scmp.eq.s32.totalorder %s15, 8
    %p99 = por %p97, %p98
    %p101 = scmp.ne.s32.totalorder %s86, %s100
    %p102 = scmp.eq.s32.totalorder %s15, 0
    %p103 = por %p101, %p102
    %s104 = ssub.s32 %s16, %s28
    %p105 = scmp.eq.s32.totalorder %s104, 0
    %s107 = sadd.s32 %s106, 1
    %s108 = scalar_select %p105, %s106, %s107
    %p111 = pneg %p105
    %p112 = scmp.eq.s32.totalorder %s9, 8
    %p113 = por %p111, %p112
    %p114 = scmp.ne.s32.totalorder %s106, %s109
    %p115 = scmp.eq.s32.totalorder %s9, 0
    %p116 = por %p114, %p115
    %p117 = scmp.ne.s32.totalorder %s106, %s109
    %p118 = scmp.eq.s32.totalorder %s14, 8
    %p119 = por %p117, %p118
    %p120 = scmp.ne.s32.totalorder %s109, %s110
    %p121 = scmp.eq.s32.totalorder %s14, 0
    %p122 = por %p120, %p121
    %p123 = scmp.ne.s32.totalorder %s109, %s110
    %p124 = scmp.eq.s32.totalorder %s15, 8
    %p125 = por %p123, %p124
    %p127 = scmp.ne.s32.totalorder %s110, %s126
    %p128 = scmp.eq.s32.totalorder %s15, 0
    %p129 = por %p127, %p128
    %p130 = scmp.le.s32.totalorder 1, %s9
    %p131 = scmp.lt.s32.totalorder %s9, 10
    %p132 = pnand %p130, %p131
    %p133 = pneg %p132
    // Predicated region
    $region9: #{net_forward.5} parent=5 // pred_check
      _
    $region10: #{net_forward.5} parent=5 // pred_check_branch
      %135 = sbr.rel (%p132) target = $region12
    $region11: #{net_forward.5} parent=5 // pred_region
      %s136 = ssub.s32 %s9, 1
      // Predicated region
      $region13: #{net_forward.5} parent=11 // pred_check
        %p137 = pneg %p75
      $region14: #{net_forward.5} parent=11 // pred_check_branch
        %139 = sbr.rel (%p137) target = $region16
      $region15: #{net_forward.5} parent=11 // pred_region
        %s140 = smul.u32 36, %s19
        %p141 = scmp.lt.s32.totalorder %s140, 35
        %s142 = scalar_select %p141, %s140, 35
        %s143 = smul.addr %s142, 4
        %s144 = scalar_lea.vmem %s1, %s143
        %s145 = smul.u32 36, %s19
      $region16: #{net_forward.5} parent=11 // pred_fallthru
        _
      // Predicated region
      $region17: #{net_forward.5} parent=11 // pred_check
        %p146 = pneg %p96
      $region18: #{net_forward.5} parent=11 // pred_check_branch
        %148 = sbr.rel (%p146) target = $region20
      $region19: #{net_forward.5} parent=11 // pred_region
        _
      $region20: #{net_forward.5} parent=11 // pred_fallthru
        _
    $region12: #{net_forward.5} parent=5 // pred_fallthru
      _
    %p149 = scmp.lt.s32.totalorder %s9, 9
    // Predicated region
    $region21: #{net_forward.5} parent=5 // pred_check
      %p150 = pneg %p149
    $region22: #{net_forward.5} parent=5 // pred_check_branch
      %152 = sbr.rel (%p150) target = $region24
    $region23: #{net_forward.5} parent=5 // pred_region
      // Predicated region
      $region25: #{net_forward.5} parent=23 // pred_check
        %p153 = pneg %p43
      $region26: #{net_forward.5} parent=23 // pred_check_branch
        %155 = sbr.rel (%p153) target = $region28
      $region27: #{net_forward.5} parent=23 // pred_region
        %s156 = smul.u32 16, %s16
        %s157 = smul.u32 3, %s17
        %p158 = scmp.lt.s32.totalorder %s156, 143
        %s159 = scalar_select %p158, %s156, 143
        %p160 = scmp.lt.s32.totalorder %s157, 2
        %s161 = scalar_select %p160, %s157, 2
        %s162 = smul.addr %s159, 3
        %s163 = sadd.s32 %s161, %s162
        %s164 = smul.addr %s163, 4
        %s165 = scalar_lea.vmem %s0, %s164
        %s166 = smul.u32 16, %s16
        %s167 = smul.u32 3, %s17
      $region28: #{net_forward.5} parent=23 // pred_fallthru
        _
    $region24: #{net_forward.5} parent=5 // pred_fallthru
      _
    %p168 = scmp.le.s32.totalorder 1, %s9
    %p169 = scmp.lt.s32.totalorder %s9, 10
    %p170 = pnand %p168, %p169
    %p171 = pneg %p170
    // Predicated region
    $region29: #{net_forward.5} parent=5 // pred_check
      _
    $region30: #{net_forward.5} parent=5 // pred_check_branch
      %173 = sbr.rel (%p170) target = $region32
    $region31: #{net_forward.5} parent=5 // pred_region
      %s174 = ssub.s32 %s9, 1
      %s175 = smul.u32 16, %s18
      %s176 = smul.u32 3, %s19
      %p177 = scmp.lt.s32.totalorder %s175, 143
      %s178 = scalar_select %p177, %s175, 143
      %p179 = scmp.lt.s32.totalorder %s176, 2
      %s180 = scalar_select %p179, %s176, 2
      %s181 = smul.addr %s178, 3
      %s182 = sadd.s32 %s180, %s181
      %s183 = smul.addr %s182, 4
      %s184 = scalar_lea.vmem %s0, %s183
      %p185 = pneg %p49
      %p186 = pneg %p46
      %s187 = smul.u32 36, %s19
      %p188 = scmp.lt.s32.totalorder %s187, 35
      %s189 = scalar_select %p188, %s187, 35
      %s190 = smul.addr %s189, 4
      %s191 = scalar_lea.vmem %s1, %s190
      %p192 = pneg %p75
      %p193 = pneg %p72
      %p194 = pneg %p96
      %p195 = pneg %p93
      %p196 = pneg %p122
      %p197 = pneg %p119
      %s198 = smul.u32 16, %s18
      %p199 = scmp.lt.s32.totalorder %s198, 143
      %s200 = scalar_select %p199, %s198, 143
      %s201 = smul.addr %s200, 4
      %s202 = scalar_lea.vmem %s3, %s201
      %s203 = smul.u32 16, %s18
      %s204 = smul.u32 3, %s19
      %p205 = scmp.lt.s32.totalorder %s203, 143
      %s206 = scalar_select %p205, %s203, 143
      %p207 = scmp.lt.s32.totalorder %s204, 2
      %s208 = scalar_select %p207, %s204, 2
      %s209 = smul.addr %s206, 3
      %s210 = sadd.s32 %s208, %s209
      %s211 = smul.addr %s210, 4
      %s212 = scalar_lea.vmem %s0, %s211
      %s213 = smul.u32 16, %s18
      %s214 = smul.u32 3, %s19
      %s215 = smul.u32 36, %s19
      %p216 = scmp.lt.s32.totalorder %s215, 35
      %s217 = scalar_select %p216, %s215, 35
      %s218 = smul.addr %s217, 4
      %s219 = scalar_lea.vmem %s1, %s218
      %s220 = smul.u32 36, %s19
      %s221 = smul.u32 16, %s18
      %p222 = scmp.lt.s32.totalorder %s221, 143
      %s223 = scalar_select %p222, %s221, 143
      %s224 = smul.addr %s223, 4
      %s225 = scalar_lea.vmem %s3, %s224
      %s226 = smul.u32 16, %s18
      %p228 = scmp.eq.s32.totalorder %s19, 0
      // Predicated region
      $region33: #{net_forward.5} parent=31 // pred_check
        %p229 = pneg %p228
      $region34: #{net_forward.5} parent=31 // pred_check_branch
        %231 = sbr.rel (%p229) target = $region36
      $region35: #{net_forward.5} parent=31 // pred_region
        %vm232 = vcmask 523264
        %233 = vst.msk [vmem:[#allocation2] sm:$0xff] %vm232, 0.0
        %234 = vst.msk [vmem:[#allocation2 + $0x8] sm:$0xff] %vm232, 0.0
        %235 = vst.msk [vmem:[#allocation2 + $0x10] sm:$0xff] %vm232, 0.0
        %236 = vst.msk [vmem:[#allocation2 + $0x18] sm:$0xff] %vm232, 0.0
        %237 = vst.msk [vmem:[#allocation2 + $0x20] sm:$0xff] %vm232, 0.0
        %238 = vst.msk [vmem:[#allocation2 + $0x28] sm:$0xff] %vm232, 0.0
        %239 = vst.msk [vmem:[#allocation2 + $0x30] sm:$0xff] %vm232, 0.0
        %240 = vst.msk [vmem:[#allocation2 + $0x38] sm:$0xff] %vm232, 0.0
        %241 = vst.msk [vmem:[#allocation2 + $0x40] sm:$0xff] %vm232, 0.0
        %242 = vst.msk [vmem:[#allocation2 + $0x48] sm:$0xff] %vm232, 0.0
        %243 = vst.msk [vmem:[#allocation2 + $0x50] sm:$0xff] %vm232, 0.0
        %244 = vst.msk [vmem:[#allocation2 + $0x58] sm:$0xff] %vm232, 0.0
        %245 = vst.msk [vmem:[#allocation2 + $0x60] sm:$0xff] %vm232, 0.0
        %246 = vst.msk [vmem:[#allocation2 + $0x68] sm:$0xff] %vm232, 0.0
        %247 = vst.msk [vmem:[#allocation2 + $0x70] sm:$0xff] %vm232, 0.0
        %248 = vst.msk [vmem:[#allocation2 + $0x78] sm:$0xff] %vm232, 0.0
      $region36: #{net_forward.5} parent=31 // pred_fallthru
        _
      %v249 = vld [vmem:[#allocation2] sm:$0xff]
      %v250 = vld [vmem:[#allocation2 + $0x8] sm:$0xff]
      %v251 = vld [vmem:[#allocation2 + $0x10] sm:$0xff]
      %v252 = vld [vmem:[#allocation2 + $0x18] sm:$0xff]
      %v253 = vld [vmem:[#allocation2 + $0x20] sm:$0xff]
      %v254 = vld [vmem:[#allocation2 + $0x28] sm:$0xff]
      %v255 = vld [vmem:[#allocation2 + $0x30] sm:$0xff]
      %v256 = vld [vmem:[#allocation2 + $0x38] sm:$0xff]
      %v257 = vld [vmem:[#allocation2 + $0x40] sm:$0xff]
      %v258 = vld [vmem:[#allocation2 + $0x48] sm:$0xff]
      %v259 = vld [vmem:[#allocation2 + $0x50] sm:$0xff]
      %v260 = vld [vmem:[#allocation2 + $0x58] sm:$0xff]
      %v261 = vld [vmem:[#allocation2 + $0x60] sm:$0xff]
      %v262 = vld [vmem:[#allocation2 + $0x68] sm:$0xff]
      %v263 = vld [vmem:[#allocation2 + $0x70] sm:$0xff]
      %v264 = vld [vmem:[#allocation2 + $0x78] sm:$0xff]
      %v265 = vld [vmem:[%s212] sm:$0xff]
      %v266 = vld [vmem:[%s212 + $0x8] sm:$0xf]
      %v267 = vld [vmem:[%s212 + $0xc] sm:$0xff]
      %v268 = vld [vmem:[%s212 + $0x14] sm:$0xf]
      %v269 = vld [vmem:[%s212 + $0x18] sm:$0xff]
      %v270 = vld [vmem:[%s212 + $0x20] sm:$0xf]
      %v271 = vld [vmem:[%s212 + $0x24] sm:$0xff]
      %v272 = vld [vmem:[%s212 + $0x2c] sm:$0xf]
      %v273 = vld [vmem:[%s212 + $0x30] sm:$0xff]
      %v274 = vld [vmem:[%s212 + $0x38] sm:$0xf]
      %v275 = vld [vmem:[%s212 + $0x3c] sm:$0xff]
      %v276 = vld [vmem:[%s212 + $0x44] sm:$0xf]
      %v277 = vld [vmem:[%s212 + $0x48] sm:$0xff]
      %v278 = vld [vmem:[%s212 + $0x50] sm:$0xf]
      %v279 = vld [vmem:[%s212 + $0x54] sm:$0xff]
      %v280 = vld [vmem:[%s212 + $0x5c] sm:$0xf]
      %v281 = vld [vmem:[%s212 + $0x60] sm:$0xff]
      %v282 = vld [vmem:[%s212 + $0x68] sm:$0xf]
      %v283 = vld [vmem:[%s212 + $0x6c] sm:$0xff]
      %v284 = vld [vmem:[%s212 + $0x74] sm:$0xf]
      %v285 = vld [vmem:[%s212 + $0x78] sm:$0xff]
      %v286 = vld [vmem:[%s212 + $0x80] sm:$0xf]
      %v287 = vld [vmem:[%s212 + $0x84] sm:$0xff]
      %v288 = vld [vmem:[%s212 + $0x8c] sm:$0xf]
      %v289 = vld [vmem:[%s212 + $0x90] sm:$0xff]
      %v290 = vld [vmem:[%s212 + $0x98] sm:$0xf]
      %v291 = vld [vmem:[%s212 + $0x9c] sm:$0xff]
      %v292 = vld [vmem:[%s212 + $0xa4] sm:$0xf]
      %v293 = vld [vmem:[%s212 + $0xa8] sm:$0xff]
      %v294 = vld [vmem:[%s212 + $0xb0] sm:$0xf]
      %v295 = vld [vmem:[%s212 + $0xb4] sm:$0xff]
      %v296 = vld [vmem:[%s212 + $0xbc] sm:$0xf]
      %v297 = vld [vmem:[%s219] sm:$0xf]
      %v298 = vld [vmem:[%s219 + $0x4] sm:$0xf]
      %v299 = vld [vmem:[%s219 + $0x8] sm:$0xf]
      %v300 = vld [vmem:[%s219 + $0xc] sm:$0xf]
      %v301 = vld [vmem:[%s219 + $0x10] sm:$0xf]
      %v302 = vld [vmem:[%s219 + $0x14] sm:$0xf]
      %v303 = vld [vmem:[%s219 + $0x18] sm:$0xf]
      %v304 = vld [vmem:[%s219 + $0x1c] sm:$0xf]
      %v305 = vld [vmem:[%s219 + $0x20] sm:$0xf]
      %v306 = vld [vmem:[%s219 + $0x24] sm:$0xf]
      %v307 = vld [vmem:[%s219 + $0x28] sm:$0xf]
      %v308 = vld [vmem:[%s219 + $0x2c] sm:$0xf]
      %v309 = vld [vmem:[%s219 + $0x30] sm:$0xf]
      %v310 = vld [vmem:[%s219 + $0x34] sm:$0xf]
      %v311 = vld [vmem:[%s219 + $0x38] sm:$0xf]
      %v312 = vld [vmem:[%s219 + $0x3c] sm:$0xf]
      %v313 = vld [vmem:[%s219 + $0x40] sm:$0xf]
      %v314 = vld [vmem:[%s219 + $0x44] sm:$0xf]
      %v315 = vld [vmem:[%s219 + $0x48] sm:$0xf]
      %v316 = vld [vmem:[%s219 + $0x4c] sm:$0xf]
      %v317 = vld [vmem:[%s219 + $0x50] sm:$0xf]
      %v318 = vld [vmem:[%s219 + $0x54] sm:$0xf]
      %v319 = vld [vmem:[%s219 + $0x58] sm:$0xf]
      %v320 = vld [vmem:[%s219 + $0x5c] sm:$0xf]
      %v321 = vld [vmem:[%s219 + $0x60] sm:$0xf]
      %v322 = vld [vmem:[%s219 + $0x64] sm:$0xf]
      %v323 = vld [vmem:[%s219 + $0x68] sm:$0xf]
      %v324 = vld [vmem:[%s219 + $0x6c] sm:$0xf]
      %v325 = vld [vmem:[%s219 + $0x70] sm:$0xf]
      %v326 = vld [vmem:[%s219 + $0x74] sm:$0xf]
      %v327 = vld [vmem:[%s219 + $0x78] sm:$0xf]
      %v328 = vld [vmem:[%s219 + $0x7c] sm:$0xf]
      %v329 = vld [vmem:[%s219 + $0x80] sm:$0xf]
      %v330 = vld [vmem:[%s219 + $0x84] sm:$0xf]
      %v331 = vld [vmem:[%s219 + $0x88] sm:$0xf]
      %v332 = vld [vmem:[%s219 + $0x8c] sm:$0xf]
      %v365 = vunpack.c.l.b16 %v265
      %v366 = vunpack.c.h.b16 %v265
      %v367 = vunpack.c.l.b16 %v266
      %v368 = vunpack.c.l.b16 %v267
      %v369 = vunpack.c.h.b16 %v267
      %v370 = vunpack.c.l.b16 %v268
      %v371 = vunpack.c.l.b16 %v269
      %v372 = vunpack.c.h.b16 %v269
      %v373 = vunpack.c.l.b16 %v270
      %v374 = vunpack.c.l.b16 %v271
      %v375 = vunpack.c.h.b16 %v271
      %v376 = vunpack.c.l.b16 %v272
      %v377 = vunpack.c.l.b16 %v273
      %v378 = vunpack.c.h.b16 %v273
      %v379 = vunpack.c.l.b16 %v274
      %v380 = vunpack.c.l.b16 %v275
      %v381 = vunpack.c.h.b16 %v275
      %v382 = vunpack.c.l.b16 %v276
      %v383 = vunpack.c.l.b16 %v277
      %v384 = vunpack.c.h.b16 %v277
      %v385 = vunpack.c.l.b16 %v278
      %v386 = vunpack.c.l.b16 %v279
      %v387 = vunpack.c.h.b16 %v279
      %v388 = vunpack.c.l.b16 %v280
      %v389 = vunpack.c.l.b16 %v281
      %v390 = vunpack.c.h.b16 %v281
      %v391 = vunpack.c.l.b16 %v282
      %v392 = vunpack.c.l.b16 %v283
      %v393 = vunpack.c.h.b16 %v283
      %v394 = vunpack.c.l.b16 %v284
      %v395 = vunpack.c.l.b16 %v285
      %v396 = vunpack.c.h.b16 %v285
      %v397 = vunpack.c.l.b16 %v286
      %v398 = vunpack.c.l.b16 %v287
      %v399 = vunpack.c.h.b16 %v287
      %v400 = vunpack.c.l.b16 %v288
      %v401 = vunpack.c.l.b16 %v289
      %v402 = vunpack.c.h.b16 %v289
      %v403 = vunpack.c.l.b16 %v290
      %v404 = vunpack.c.l.b16 %v291
      %v405 = vunpack.c.h.b16 %v291
      %v406 = vunpack.c.l.b16 %v292
      %v407 = vunpack.c.l.b16 %v293
      %v408 = vunpack.c.h.b16 %v293
      %v409 = vunpack.c.l.b16 %v294
      %v410 = vunpack.c.l.b16 %v295
      %v411 = vunpack.c.h.b16 %v295
      %v412 = vunpack.c.l.b16 %v296
      %v413 = vpack.c.b16 %v368, %v365
      %v414 = vpack.c.b16 %v369, %v366
      %v415 = vpack.c.b16 %v370, %v367
      %v416 = vpack.c.b16 %v374, %v371
      %v417 = vpack.c.b16 %v375, %v372
      %v418 = vpack.c.b16 %v376, %v373
      %v419 = vpack.c.b16 %v380, %v377
      %v420 = vpack.c.b16 %v381, %v378
      %v421 = vpack.c.b16 %v382, %v379
      %v422 = vpack.c.b16 %v386, %v383
      %v423 = vpack.c.b16 %v387, %v384
      %v424 = vpack.c.b16 %v388, %v385
      %v425 = vpack.c.b16 %v392, %v389
      %v426 = vpack.c.b16 %v393, %v390
      %v427 = vpack.c.b16 %v394, %v391
      %v428 = vpack.c.b16 %v398, %v395
      %v429 = vpack.c.b16 %v399, %v396
      %v430 = vpack.c.b16 %v400, %v397
      %v431 = vpack.c.b16 %v404, %v401
      %v432 = vpack.c.b16 %v405, %v402
      %v433 = vpack.c.b16 %v406, %v403
      %v434 = vpack.c.b16 %v410, %v407
      %v435 = vpack.c.b16 %v411, %v408
      %v436 = vpack.c.b16 %v412, %v409
      %v489 = vunpack.c.l.b16 %v297
      %v490 = vunpack.c.l.b16 %v298
      %v491 = vunpack.c.l.b16 %v299
      %v492 = vunpack.c.l.b16 %v300
      %v493 = vunpack.c.l.b16 %v301
      %v494 = vunpack.c.l.b16 %v302
      %v495 = vunpack.c.l.b16 %v303
      %v496 = vunpack.c.l.b16 %v304
      %v497 = vunpack.c.l.b16 %v305
      %v498 = vunpack.c.l.b16 %v306
      %v499 = vunpack.c.l.b16 %v307
      %v500 = vunpack.c.l.b16 %v308
      %v501 = vunpack.c.l.b16 %v309
      %v502 = vunpack.c.l.b16 %v310
      %v503 = vunpack.c.l.b16 %v311
      %v504 = vunpack.c.l.b16 %v312
      %v505 = vunpack.c.l.b16 %v313
      %v506 = vunpack.c.l.b16 %v314
      %v507 = vunpack.c.l.b16 %v315
      %v508 = vunpack.c.l.b16 %v316
      %v509 = vunpack.c.l.b16 %v317
      %v510 = vunpack.c.l.b16 %v318
      %v511 = vunpack.c.l.b16 %v319
      %v512 = vunpack.c.l.b16 %v320
      %v513 = vunpack.c.l.b16 %v321
      %v514 = vunpack.c.l.b16 %v322
      %v515 = vunpack.c.l.b16 %v323
      %v516 = vunpack.c.l.b16 %v324
      %v517 = vunpack.c.l.b16 %v325
      %v518 = vunpack.c.l.b16 %v326
      %v519 = vunpack.c.l.b16 %v327
      %v520 = vunpack.c.l.b16 %v328
      %v521 = vunpack.c.l.b16 %v329
      %v522 = vunpack.c.l.b16 %v330
      %v523 = vunpack.c.l.b16 %v331
      %v524 = vunpack.c.l.b16 %v332
      %v525 = vpack.c.b16 %v490, %v489
      %v526 = vpack.c.b16 %v492, %v491
      %v527 = vpack.c.b16 %v494, %v493
      %v528 = vpack.c.b16 %v496, %v495
      %v529 = vpack.c.b16 %v498, %v497
      %v530 = vpack.c.b16 %v500, %v499
      %v531 = vpack.c.b16 %v502, %v501
      %v532 = vpack.c.b16 %v504, %v503
      %v533 = vpack.c.b16 %v506, %v505
      %v534 = vpack.c.b16 %v508, %v507
      %v535 = vpack.c.b16 %v510, %v509
      %v536 = vpack.c.b16 %v512, %v511
      %v537 = vpack.c.b16 %v514, %v513
      %v538 = vpack.c.b16 %v516, %v515
      %v539 = vpack.c.b16 %v518, %v517
      %v540 = vpack.c.b16 %v520, %v519
      %v541 = vpack.c.b16 %v522, %v521
      %v542 = vpack.c.b16 %v524, %v523
      %vm561 = vcmask 261120
      %v563 = vsel %vm561, %v415, 0
      %v566 = vsel %vm561, %v418, 0
      %v569 = vsel %vm561, %v421, 0
      %v572 = vsel %vm561, %v424, 0
      %v575 = vsel %vm561, %v427, 0
      %v578 = vsel %vm561, %v430, 0
      %v581 = vsel %vm561, %v433, 0
      %v584 = vsel %vm561, %v436, 0
      %586 = vmatprep.subr.bf16.mxu0 0
      %587 = vmatpush1.bf16.msra.mxu0 %v525
      %588 = vmatprep.subr.bf16.mxu0 0
      %589 = vmatpush1.bf16.msra.mxu0 %v526
      %590 = vmatprep.subr.bf16.mxu0 0
      %591 = vmatpush1.bf16.msra.mxu0 %v527
      %592 = vmatprep.subr.bf16.mxu0 0
      %593 = vmatpush1.bf16.msra.mxu0 %v528
      %594 = vmatprep.subr.bf16.mxu0 0
      %595 = vmatpush1.bf16.msra.mxu0 %v529
      %596 = vmatprep.subr.bf16.mxu0 0
      %597 = vmatpush1.bf16.msra.mxu0 %v530
      %598 = vmatprep.subr.bf16.mxu0 0
      %599 = vmatpush1.bf16.msra.mxu0 %v531
      %600 = vmatprep.subr.bf16.mxu0 0
      %601 = vmatpush1.bf16.msra.mxu0 %v532
      %602 = vmatprep.subr.bf16.mxu0 0
      %603 = vmatpush1.bf16.msra.mxu0 %v533
      %604 = vmatprep.subr.bf16.mxu0 0
      %605 = vmatpush1.bf16.msra.mxu0 %v534
      %606 = vmatprep.subr.bf16.mxu0 0
      %607 = vmatpush1.bf16.msra.mxu0 %v535
      %608 = vmatprep.subr.bf16.mxu0 0
      %609 = vmatpush1.bf16.msra.mxu0 %v536
      %610 = vmatprep.subr.bf16.mxu0 0
      %611 = vmatpush1.bf16.msra.mxu0 %v537
      %612 = vmatprep.subr.bf16.mxu0 0
      %613 = vmatpush1.bf16.msra.mxu0 %v538
      %614 = vmatprep.subr.bf16.mxu0 0
      %615 = vmatpush1.bf16.msra.mxu0 %v539
      %616 = vmatprep.subr.bf16.mxu0 0
      %617 = vmatpush1.bf16.msra.mxu0 %v540
      %618 = vmatprep.mubr.bf16.mxu0 %v414
      %619 = vmatmul.mubr.bf16.gmra.mrb[0].mxu0 %v413
      %v620 = vpop.f32.mrb[0].mxu0
      %v621 = vadd.f32 0.0, %v620
      %v622 = vpop.f32.mrb[0].mxu0
      %v623 = vpop.f32.mrb[0].mxu0
      %v624 = vadd.f32 0.0, %v623
      %v625 = vpop.f32.mrb[0].mxu0
      %626 = vmatprep.mubr.bf16.mxu0 %v417
      %627 = vmatmul.mubr.bf16.gmra.mrb[0].mxu0 %v416
      %v628 = vpop.f32.mrb[0].mxu0
      %v629 = vadd.f32 0.0, %v628
      %v630 = vpop.f32.mrb[0].mxu0
      %v631 = vpop.f32.mrb[0].mxu0
      %v632 = vadd.f32 0.0, %v631
      %v633 = vpop.f32.mrb[0].mxu0
      %634 = vmatprep.mubr.bf16.mxu0 %v420
      %635 = vmatmul.mubr.bf16.gmra.mrb[0].mxu0 %v419
      %v636 = vpop.f32.mrb[0].mxu0
      %v637 = vadd.f32 0.0, %v636
      %v638 = vpop.f32.mrb[0].mxu0
      %v639 = vpop.f32.mrb[0].mxu0
      %v640 = vadd.f32 0.0, %v639
      %v641 = vpop.f32.mrb[0].mxu0
      %642 = vmatprep.mubr.bf16.mxu0 %v423
      %643 = vmatmul.mubr.bf16.gmra.mrb[0].mxu0 %v422
      %v644 = vpop.f32.mrb[0].mxu0
      %v645 = vadd.f32 0.0, %v644
      %v646 = vpop.f32.mrb[0].mxu0
      %v647 = vpop.f32.mrb[0].mxu0
      %v648 = vadd.f32 0.0, %v647
      %v649 = vpop.f32.mrb[0].mxu0
      %650 = vmatprep.mubr.bf16.mxu0 %v426
      %651 = vmatmul.mubr.bf16.gmra.mrb[0].mxu0 %v425
      %v652 = vpop.f32.mrb[0].mxu0
      %v653 = vadd.f32 0.0, %v652
      %v654 = vpop.f32.mrb[0].mxu0
      %v655 = vpop.f32.mrb[0].mxu0
      %v656 = vadd.f32 0.0, %v655
      %v657 = vpop.f32.mrb[0].mxu0
      %658 = vmatprep.mubr.bf16.mxu0 %v429
      %659 = vmatmul.mubr.bf16.gmra.mrb[0].mxu0 %v428
      %v660 = vpop.f32.mrb[0].mxu0
      %v661 = vadd.f32 0.0, %v660
      %v662 = vpop.f32.mrb[0].mxu0
      %v663 = vpop.f32.mrb[0].mxu0
      %v664 = vadd.f32 0.0, %v663
      %v665 = vpop.f32.mrb[0].mxu0
      %666 = vmatprep.mubr.bf16.mxu0 %v432
      %667 = vmatmul.mubr.bf16.gmra.mrb[0].mxu0 %v431
      %v668 = vpop.f32.mrb[0].mxu0
      %v669 = vadd.f32 0.0, %v668
      %v670 = vpop.f32.mrb[0].mxu0
      %v671 = vpop.f32.mrb[0].mxu0
      %v672 = vadd.f32 0.0, %v671
      %v673 = vpop.f32.mrb[0].mxu0
      %674 = vmatprep.mubr.bf16.mxu0 %v435
      %675 = vmatmul.mubr.bf16.gmra.mrb[0].mxu0 %v434
      %v676 = vpop.f32.mrb[0].mxu0
      %v677 = vadd.f32 0.0, %v676
      %v678 = vpop.f32.mrb[0].mxu0
      %v679 = vpop.f32.mrb[0].mxu0
      %v680 = vadd.f32 0.0, %v679
      %v681 = vpop.f32.mrb[0].mxu0
      %682 = vdwg.mxu0
      %683 = vmatprep.subr.bf16.mxu0 0
      %684 = vmatpush1.bf16.msra.mxu0 %v541
      %685 = vmatprep.subr.bf16.mxu0 0
      %686 = vmatpush1.bf16.msra.mxu0 %v542
      %687 = vmatprep.subr.bf16.mxu0 0
      %688 = vmatpush1.bf16.msra.mxu0 0
      %689 = vmatprep.subr.bf16.mxu0 0
      %690 = vmatpush1.bf16.msra.mxu0 0
      %691 = vmatprep.subr.bf16.mxu0 0
      %692 = vmatpush1.bf16.msra.mxu0 0
      %693 = vmatprep.subr.bf16.mxu0 0
      %694 = vmatpush1.bf16.msra.mxu0 0
      %695 = vmatprep.subr.bf16.mxu0 0
      %696 = vmatpush1.bf16.msra.mxu0 0
      %697 = vmatprep.subr.bf16.mxu0 0
      %698 = vmatpush1.bf16.msra.mxu0 0
      %699 = vmatprep.subr.bf16.mxu0 0
      %700 = vmatpush1.bf16.msra.mxu0 0
      %701 = vmatprep.subr.bf16.mxu0 0
      %702 = vmatpush1.bf16.msra.mxu0 0
      %703 = vmatprep.subr.bf16.mxu0 0
      %704 = vmatpush1.bf16.msra.mxu0 0
      %705 = vmatprep.subr.bf16.mxu0 0
      %706 = vmatpush1.bf16.msra.mxu0 0
      %707 = vmatprep.subr.bf16.mxu0 0
      %708 = vmatpush1.bf16.msra.mxu0 0
      %709 = vmatprep.subr.bf16.mxu0 0
      %710 = vmatpush1.bf16.msra.mxu0 0
      %711 = vmatprep.subr.bf16.mxu0 0
      %712 = vmatpush1.bf16.msra.mxu0 0
      %713 = vmatprep.subr.bf16.mxu0 0
      %714 = vmatpush1.bf16.msra.mxu0 0
      %715 = vmatprep.mubr.bf16.mxu0 0
      %716 = vmatmul.mubr.bf16.gmra.mrb[0].mxu0 %v563
      %v717 = vpop.f32.mrb[0].mxu0
      %v718 = vadd.f32 %v621, %v717
      %v719 = vpop.f32.mrb[0].mxu0
      %v720 = vpop.f32.mrb[0].mxu0
      %v721 = vadd.f32 %v624, %v720
      %v722 = vpop.f32.mrb[0].mxu0
      %723 = vmatprep.mubr.bf16.mxu0 0
      %724 = vmatmul.mubr.bf16.gmra.mrb[0].mxu0 %v566
      %v725 = vpop.f32.mrb[0].mxu0
      %v726 = vadd.f32 %v629, %v725
      %v727 = vpop.f32.mrb[0].mxu0
      %v728 = vpop.f32.mrb[0].mxu0
      %v729 = vadd.f32 %v632, %v728
      %v730 = vpop.f32.mrb[0].mxu0
      %731 = vmatprep.mubr.bf16.mxu0 0
      %732 = vmatmul.mubr.bf16.gmra.mrb[0].mxu0 %v569
      %v733 = vpop.f32.mrb[0].mxu0
      %v734 = vadd.f32 %v637, %v733
      %v735 = vpop.f32.mrb[0].mxu0
      %v736 = vpop.f32.mrb[0].mxu0
      %v737 = vadd.f32 %v640, %v736
      %v738 = vpop.f32.mrb[0].mxu0
      %739 = vmatprep.mubr.bf16.mxu0 0
      %740 = vmatmul.mubr.bf16.gmra.mrb[0].mxu0 %v572
      %v741 = vpop.f32.mrb[0].mxu0
      %v742 = vadd.f32 %v645, %v741
      %v743 = vpop.f32.mrb[0].mxu0
      %v744 = vpop.f32.mrb[0].mxu0
      %v745 = vadd.f32 %v648, %v744
      %v746 = vpop.f32.mrb[0].mxu0
      %747 = vmatprep.mubr.bf16.mxu0 0
      %748 = vmatmul.mubr.bf16.gmra.mrb[0].mxu0 %v575
      %v749 = vpop.f32.mrb[0].mxu0
      %v750 = vadd.f32 %v653, %v749
      %v751 = vpop.f32.mrb[0].mxu0
      %v752 = vpop.f32.mrb[0].mxu0
      %v753 = vadd.f32 %v656, %v752
      %v754 = vpop.f32.mrb[0].mxu0
      %755 = vmatprep.mubr.bf16.mxu0 0
      %756 = vmatmul.mubr.bf16.gmra.mrb[0].mxu0 %v578
      %v757 = vpop.f32.mrb[0].mxu0
      %v758 = vadd.f32 %v661, %v757
      %v759 = vpop.f32.mrb[0].mxu0
      %v760 = vpop.f32.mrb[0].mxu0
      %v761 = vadd.f32 %v664, %v760
      %v762 = vpop.f32.mrb[0].mxu0
      %763 = vmatprep.mubr.bf16.mxu0 0
      %764 = vmatmul.mubr.bf16.gmra.mrb[0].mxu0 %v581
      %v765 = vpop.f32.mrb[0].mxu0
      %v766 = vadd.f32 %v669, %v765
      %v767 = vpop.f32.mrb[0].mxu0
      %v768 = vpop.f32.mrb[0].mxu0
      %v769 = vadd.f32 %v672, %v768
      %v770 = vpop.f32.mrb[0].mxu0
      %771 = vmatprep.mubr.bf16.mxu0 0
      %772 = vmatmul.mubr.bf16.gmra.mrb[0].mxu0 %v584
      %v773 = vpop.f32.mrb[0].mxu0
      %v774 = vadd.f32 %v677, %v773
      %v775 = vpop.f32.mrb[0].mxu0
      %v776 = vpop.f32.mrb[0].mxu0
      %v777 = vadd.f32 %v680, %v776
      %v778 = vpop.f32.mrb[0].mxu0
      %779 = vdwg.mxu0
      %v780 = vadd.f32 %v249, %v718
      %v781 = vadd.f32 %v250, %v721
      %v782 = vadd.f32 %v251, %v726
      %v783 = vadd.f32 %v252, %v729
      %v784 = vadd.f32 %v253, %v734
      %v785 = vadd.f32 %v254, %v737
      %v786 = vadd.f32 %v255, %v742
      %v787 = vadd.f32 %v256, %v745
      %v788 = vadd.f32 %v257, %v750
      %v789 = vadd.f32 %v258, %v753
      %v790 = vadd.f32 %v259, %v758
      %v791 = vadd.f32 %v260, %v761
      %v792 = vadd.f32 %v261, %v766
      %v793 = vadd.f32 %v262, %v769
      %v794 = vadd.f32 %v263, %v774
      %v795 = vadd.f32 %v264, %v777
      %vm796 = vcmask 523264
      %797 = vst.msk [vmem:[#allocation2] sm:$0xff] %vm796, %v780
      %798 = vst.msk [vmem:[#allocation2 + $0x8] sm:$0xff] %vm796, %v781
      %799 = vst.msk [vmem:[#allocation2 + $0x10] sm:$0xff] %vm796, %v782
      %800 = vst.msk [vmem:[#allocation2 + $0x18] sm:$0xff] %vm796, %v783
      %801 = vst.msk [vmem:[#allocation2 + $0x20] sm:$0xff] %vm796, %v784
      %802 = vst.msk [vmem:[#allocation2 + $0x28] sm:$0xff] %vm796, %v785
      %803 = vst.msk [vmem:[#allocation2 + $0x30] sm:$0xff] %vm796, %v786
      %804 = vst.msk [vmem:[#allocation2 + $0x38] sm:$0xff] %vm796, %v787
      %805 = vst.msk [vmem:[#allocation2 + $0x40] sm:$0xff] %vm796, %v788
      %806 = vst.msk [vmem:[#allocation2 + $0x48] sm:$0xff] %vm796, %v789
      %807 = vst.msk [vmem:[#allocation2 + $0x50] sm:$0xff] %vm796, %v790
      %808 = vst.msk [vmem:[#allocation2 + $0x58] sm:$0xff] %vm796, %v791
      %809 = vst.msk [vmem:[#allocation2 + $0x60] sm:$0xff] %vm796, %v792
      %810 = vst.msk [vmem:[#allocation2 + $0x68] sm:$0xff] %vm796, %v793
      %811 = vst.msk [vmem:[#allocation2 + $0x70] sm:$0xff] %vm796, %v794
      %812 = vst.msk [vmem:[#allocation2 + $0x78] sm:$0xff] %vm796, %v795
      // Predicated region
      $region37: #{net_forward.5} parent=31 // pred_check
        %p813 = pneg %p228
      $region38: #{net_forward.5} parent=31 // pred_check_branch
        %815 = sbr.rel (%p813) target = $region40
      $region39: #{net_forward.5} parent=31 // pred_region
        %v816 = vld [vmem:[#allocation2] sm:$0xff]
        %v817 = vld [vmem:[#allocation2 + $0x8] sm:$0xff]
        %v818 = vld [vmem:[#allocation2 + $0x10] sm:$0xff]
        %v819 = vld [vmem:[#allocation2 + $0x18] sm:$0xff]
        %v820 = vld [vmem:[#allocation2 + $0x20] sm:$0xff]
        %v821 = vld [vmem:[#allocation2 + $0x28] sm:$0xff]
        %v822 = vld [vmem:[#allocation2 + $0x30] sm:$0xff]
        %v823 = vld [vmem:[#allocation2 + $0x38] sm:$0xff]
        %v824 = vld [vmem:[#allocation2 + $0x40] sm:$0xff]
        %v825 = vld [vmem:[#allocation2 + $0x48] sm:$0xff]
        %v826 = vld [vmem:[#allocation2 + $0x50] sm:$0xff]
        %v827 = vld [vmem:[#allocation2 + $0x58] sm:$0xff]
        %v828 = vld [vmem:[#allocation2 + $0x60] sm:$0xff]
        %v829 = vld [vmem:[#allocation2 + $0x68] sm:$0xff]
        %v830 = vld [vmem:[#allocation2 + $0x70] sm:$0xff]
        %v831 = vld [vmem:[#allocation2 + $0x78] sm:$0xff]
        %v832 = vld [vmem:[%s2] sm:$0x1]
        %v834 = vlaneseq
        %v835 = vshrl.u32 %v834, 7
        %v836 = vsub.s32 0, %v835
        %v837 = vrot.slane %v832, %v836
        %v839 = vadd.f32 %v816, %v837
        %v840 = vadd.f32 %v817, %v837
        %v841 = vadd.f32 %v818, %v837
        %v842 = vadd.f32 %v819, %v837
        %v843 = vadd.f32 %v820, %v837
        %v844 = vadd.f32 %v821, %v837
        %v845 = vadd.f32 %v822, %v837
        %v846 = vadd.f32 %v823, %v837
        %v847 = vadd.f32 %v824, %v837
        %v848 = vadd.f32 %v825, %v837
        %v849 = vadd.f32 %v826, %v837
        %v850 = vadd.f32 %v827, %v837
        %v851 = vadd.f32 %v828, %v837
        %v852 = vadd.f32 %v829, %v837
        %v853 = vadd.f32 %v830, %v837
        %v854 = vadd.f32 %v831, %v837
        %v855 = vmax.f32 %v839, 0.0
        %v856 = vmax.f32 %v840, 0.0
        %v857 = vmax.f32 %v841, 0.0
        %v858 = vmax.f32 %v842, 0.0
        %v859 = vmax.f32 %v843, 0.0
        %v860 = vmax.f32 %v844, 0.0
        %v861 = vmax.f32 %v845, 0.0
        %v862 = vmax.f32 %v846, 0.0
        %v863 = vmax.f32 %v847, 0.0
        %v864 = vmax.f32 %v848, 0.0
        %v865 = vmax.f32 %v849, 0.0
        %v866 = vmax.f32 %v850, 0.0
        %v867 = vmax.f32 %v851, 0.0
        %v868 = vmax.f32 %v852, 0.0
        %v869 = vmax.f32 %v853, 0.0
        %v870 = vmax.f32 %v854, 0.0
        %v871 = vpack.c.bf16 %v856, %v855
        %v872 = vpack.c.bf16 %v858, %v857
        %v873 = vpack.c.bf16 %v860, %v859
        %v874 = vpack.c.bf16 %v862, %v861
        %v875 = vpack.c.bf16 %v864, %v863
        %v876 = vpack.c.bf16 %v866, %v865
        %v877 = vpack.c.bf16 %v868, %v867
        %v878 = vpack.c.bf16 %v870, %v869
        %v887 = vunpack.c.l.b16 %v871
        %v888 = vunpack.c.h.b16 %v871
        %v889 = vunpack.c.l.b16 %v872
        %v890 = vunpack.c.h.b16 %v872
        %v891 = vunpack.c.l.b16 %v873
        %v892 = vunpack.c.h.b16 %v873
        %v893 = vunpack.c.l.b16 %v874
        %v894 = vunpack.c.h.b16 %v874
        %v895 = vunpack.c.l.b16 %v875
        %v896 = vunpack.c.h.b16 %v875
        %v897 = vunpack.c.l.b16 %v876
        %v898 = vunpack.c.h.b16 %v876
        %v899 = vunpack.c.l.b16 %v877
        %v900 = vunpack.c.h.b16 %v877
        %v901 = vunpack.c.l.b16 %v878
        %v902 = vunpack.c.h.b16 %v878
        %v903 = vpack.c.b16 %v887, %v887
        %v904 = vpack.c.b16 %v888, %v888
        %v905 = vpack.c.b16 %v889, %v889
        %v906 = vpack.c.b16 %v890, %v890
        %v907 = vpack.c.b16 %v891, %v891
        %v908 = vpack.c.b16 %v892, %v892
        %v909 = vpack.c.b16 %v893, %v893
        %v910 = vpack.c.b16 %v894, %v894
        %v911 = vpack.c.b16 %v895, %v895
        %v912 = vpack.c.b16 %v896, %v896
        %v913 = vpack.c.b16 %v897, %v897
        %v914 = vpack.c.b16 %v898, %v898
        %v915 = vpack.c.b16 %v899, %v899
        %v916 = vpack.c.b16 %v900, %v900
        %v917 = vpack.c.b16 %v901, %v901
        %v918 = vpack.c.b16 %v902, %v902
        %vm935 = vcmask 519168
        %936 = vst.msk [vmem:[%s225] sm:$0xf] %vm935, %v903
        %937 = vst.msk [vmem:[%s225 + $0x4] sm:$0xf] %vm935, %v904
        %938 = vst.msk [vmem:[%s225 + $0x8] sm:$0xf] %vm935, %v905
        %939 = vst.msk [vmem:[%s225 + $0xc] sm:$0xf] %vm935, %v906
        %940 = vst.msk [vmem:[%s225 + $0x10] sm:$0xf] %vm935, %v907
        %941 = vst.msk [vmem:[%s225 + $0x14] sm:$0xf] %vm935, %v908
        %942 = vst.msk [vmem:[%s225 + $0x18] sm:$0xf] %vm935, %v909
        %943 = vst.msk [vmem:[%s225 + $0x1c] sm:$0xf] %vm935, %v910
        %944 = vst.msk [vmem:[%s225 + $0x20] sm:$0xf] %vm935, %v911
        %945 = vst.msk [vmem:[%s225 + $0x24] sm:$0xf] %vm935, %v912
        %946 = vst.msk [vmem:[%s225 + $0x28] sm:$0xf] %vm935, %v913
        %947 = vst.msk [vmem:[%s225 + $0x2c] sm:$0xf] %vm935, %v914
        %948 = vst.msk [vmem:[%s225 + $0x30] sm:$0xf] %vm935, %v915
        %949 = vst.msk [vmem:[%s225 + $0x34] sm:$0xf] %vm935, %v916
        %950 = vst.msk [vmem:[%s225 + $0x38] sm:$0xf] %vm935, %v917
        %951 = vst.msk [vmem:[%s225 + $0x3c] sm:$0xf] %vm935, %v918
      $region40: #{net_forward.5} parent=31 // pred_fallthru
        _
      %s952 = smul.u32 16, %s18
      %p953 = scmp.lt.s32.totalorder %s952, 143
      %s954 = scalar_select %p953, %s952, 143
      %s955 = smul.addr %s954, 4
      %s956 = scalar_lea.vmem %s3, %s955
      // Predicated region
      $region41: #{net_forward.5} parent=31 // pred_check
        %p957 = pneg %p119
      $region42: #{net_forward.5} parent=31 // pred_check_branch
        %959 = sbr.rel (%p957) target = $region44
      $region43: #{net_forward.5} parent=31 // pred_region
        %s960 = smul.u32 16, %s18
      $region44: #{net_forward.5} parent=31 // pred_fallthru
        _
    $region32: #{net_forward.5} parent=5 // pred_fallthru
      _
    %p961 = scmp.le.s32.totalorder 2, %s9
    // Predicated region
    $region45: #{net_forward.5} parent=5 // pred_check
      %p962 = pneg %p961
    $region46: #{net_forward.5} parent=5 // pred_check_branch
      %964 = sbr.rel (%p962) target = $region48
    $region47: #{net_forward.5} parent=5 // pred_region
      %s965 = ssub.s32 %s9, 2
      // Predicated region
      $region49: #{net_forward.5} parent=47 // pred_check
        %p966 = pneg %p125
      $region50: #{net_forward.5} parent=47 // pred_check_branch
        %968 = sbr.rel (%p966) target = $region52
      $region51: #{net_forward.5} parent=47 // pred_region
        %s969 = smul.u32 16, %s20
        %p970 = scmp.lt.s32.totalorder %s969, 143
        %s971 = scalar_select %p970, %s969, 143
        %s972 = smul.addr %s971, 4
        %s973 = scalar_lea.vmem %s3, %s972
      $region52: #{net_forward.5} parent=47 // pred_fallthru
        _
    $region48: #{net_forward.5} parent=5 // pred_fallthru
      _
  $region6: #{net_forward.5} parent=0 // loop_footer
    %s13 = sadd.s32 1, %s9
  $region7: #{net_forward.5} parent=0 // loop_footer_branch
    %8 = sbr.rel target = $region3
  $region8: #{net_forward.5} parent=0 // loop_exit
    _

// kernel: net_forward.6
$region0: #{net_forward.6}
  #allocation0 [shape = 'u32[]', space=smem, size = 0x4, offset = 0x4, fixed_abs, tag = 'smem constant byte address 0x4 - core index']
  #allocation1 [shape = 'u32[144,128]{1,0:T(1,128)}', space=vmem, size = 0x12000, scoped, tag = 'internal scratch']
  %s0 = inlined_call_operand.vmem [shape: bf16[4,24,768], index: 0, kind: input, shape index: {}]
  %s1 = inlined_call_operand.vmem [shape: bf16[24,768], index: 1, kind: output, shape index: {}]
  %s2 = sld [smem:[#allocation0]]
  $region14: #{net_forward.6} parent=0
    _
  %s4 = ssub.s32 1, %s2
  %s5 = scalar_select 0, %s4, %s2
  // Predicated region
  $region2: #{net_forward.6} parent=0 // pred_check
    _
  $region3: #{net_forward.6} parent=0 // pred_check_branch
    %7 = sbr.rel (0) target = $region5
  $region4: #{net_forward.6} parent=0 // pred_region
    _
  $region5: #{net_forward.6} parent=0 // pred_fallthru
    _
  %v8 = vld [vmem:[%s0] sm:$0xff]
  %v9 = vld [vmem:[%s0 + $0x8] sm:$0xff]
  %v10 = vld [vmem:[%s0 + $0x10] sm:$0xff]
  %v11 = vld [vmem:[%s0 + $0x18] sm:$0xff]
  %v12 = vld [vmem:[%s0 + $0x20] sm:$0xff]
  %v13 = vld [vmem:[%s0 + $0x28] sm:$0xff]
  %v14 = vld [vmem:[%s0 + $0x30] sm:$0xff]
  %v15 = vld [vmem:[%s0 + $0x38] sm:$0xff]
  %v16 = vld [vmem:[%s0 + $0x40] sm:$0xff]
  %s17 = scalar_lea.vmem %s0, 72
  %v18 = vld [vmem:[%s17] sm:$0xff]
  %v19 = vld [vmem:[%s17 + $0x8] sm:$0xff]
  %v20 = vld [vmem:[%s17 + $0x10] sm:$0xff]
  %v21 = vld [vmem:[%s17 + $0x18] sm:$0xff]
  %v22 = vld [vmem:[%s17 + $0x20] sm:$0xff]
  %v23 = vld [vmem:[%s17 + $0x28] sm:$0xff]
  %v24 = vld [vmem:[%s17 + $0x30] sm:$0xff]
  %v25 = vld [vmem:[%s17 + $0x38] sm:$0xff]
  %v26 = vld [vmem:[%s17 + $0x40] sm:$0xff]
  %v27 = vmax.bf16 %v8, %v18
  %v28 = vmax.bf16 %v9, %v19
  %v29 = vmax.bf16 %v10, %v20
  %v30 = vmax.bf16 %v11, %v21
  %v31 = vmax.bf16 %v12, %v22
  %v32 = vmax.bf16 %v13, %v23
  %v33 = vmax.bf16 %v14, %v24
  %v34 = vmax.bf16 %v15, %v25
  %v35 = vmax.bf16 %v16, %v26
  %s36 = scalar_lea.vmem %s0, 144
  %v37 = vld [vmem:[%s36] sm:$0xff]
  %v38 = vld [vmem:[%s36 + $0x8] sm:$0xff]
  %v39 = vld [vmem:[%s36 + $0x10] sm:$0xff]
  %v40 = vld [vmem:[%s36 + $0x18] sm:$0xff]
  %v41 = vld [vmem:[%s36 + $0x20] sm:$0xff]
  %v42 = vld [vmem:[%s36 + $0x28] sm:$0xff]
  %v43 = vld [vmem:[%s36 + $0x30] sm:$0xff]
  %v44 = vld [vmem:[%s36 + $0x38] sm:$0xff]
  %v45 = vld [vmem:[%s36 + $0x40] sm:$0xff]
  %s46 = scalar_lea.vmem %s0, 216
  %v47 = vld [vmem:[%s46] sm:$0xff]
  %v48 = vld [vmem:[%s46 + $0x8] sm:$0xff]
  %v49 = vld [vmem:[%s46 + $0x10] sm:$0xff]
  %v50 = vld [vmem:[%s46 + $0x18] sm:$0xff]
  %v51 = vld [vmem:[%s46 + $0x20] sm:$0xff]
  %v52 = vld [vmem:[%s46 + $0x28] sm:$0xff]
  %v53 = vld [vmem:[%s46 + $0x30] sm:$0xff]
  %v54 = vld [vmem:[%s46 + $0x38] sm:$0xff]
  %v55 = vld [vmem:[%s46 + $0x40] sm:$0xff]
  %v56 = vmax.bf16 %v37, %v47
  %v57 = vmax.bf16 %v38, %v48
  %v58 = vmax.bf16 %v39, %v49
  %v59 = vmax.bf16 %v40, %v50
  %v60 = vmax.bf16 %v41, %v51
  %v61 = vmax.bf16 %v42, %v52
  %v62 = vmax.bf16 %v43, %v53
  %v63 = vmax.bf16 %v44, %v54
  %v64 = vmax.bf16 %v45, %v55
  %v65 = vmax.bf16 %v27, %v56
  %v66 = vmax.bf16 %v28, %v57
  %v67 = vmax.bf16 %v29, %v58
  %v68 = vmax.bf16 %v30, %v59
  %v69 = vmax.bf16 %v31, %v60
  %v70 = vmax.bf16 %v32, %v61
  %v71 = vmax.bf16 %v33, %v62
  %v72 = vmax.bf16 %v34, %v63
  %v73 = vmax.bf16 %v35, %v64
  %74 = vst [vmem:[%s1] sm:$0xff] %v65
  %75 = vst [vmem:[%s1 + $0x8] sm:$0xff] %v66
  %76 = vst [vmem:[%s1 + $0x10] sm:$0xff] %v67
  %77 = vst [vmem:[%s1 + $0x18] sm:$0xff] %v68
  %78 = vst [vmem:[%s1 + $0x20] sm:$0xff] %v69
  %79 = vst [vmem:[%s1 + $0x28] sm:$0xff] %v70
  %80 = vst [vmem:[%s1 + $0x30] sm:$0xff] %v71
  %81 = vst [vmem:[%s1 + $0x38] sm:$0xff] %v72
  %82 = vst [vmem:[%s1 + $0x40] sm:$0xff] %v73
  // Predicated region
  $region6: #{net_forward.6} parent=0 // pred_check
    _
  $region7: #{net_forward.6} parent=0 // pred_check_branch
    %84 = sbr.rel (0) target = $region9
  $region8: #{net_forward.6} parent=0 // pred_region
    _
  $region9: #{net_forward.6} parent=0 // pred_fallthru
    _
  // Predicated region
  $region10: #{net_forward.6} parent=0 // pred_check
    _
  $region11: #{net_forward.6} parent=0 // pred_check_branch
    %86 = sbr.rel (0) target = $region13
  $region12: #{net_forward.6} parent=0 // pred_region
    _
  $region13: #{net_forward.6} parent=0 // pred_fallthru
    _

// kernel: net_forward.7
$region0: #{net_forward.7}
  #allocation0 [shape = 'u32[]', space=smem, size = 0x4, offset = 0x4, fixed_abs, tag = 'smem constant byte address 0x4 - core index']
  #allocation1 [shape = 'u32[144,128]{1,0:T(1,128)}', space=vmem, size = 0x12000, scoped, tag = 'internal scratch']
  #allocation2 [shape = 'f32[16,128]{1,0:T(8,128)}', space=vmem, size = 0x2000, scoped, tag = 'scratch operand']
  %s0 = inlined_call_operand.vmem [shape: bf16[16,9216], index: 0, kind: input, shape index: {}]
  %s1 = inlined_call_operand.vmem [shape: bf16[9216,128], index: 1, kind: input, shape index: {}]
  %s2 = inlined_call_operand.vmem [shape: f32[1,128], index: 2, kind: input, shape index: {}]
  %s3 = inlined_call_operand.vmem [shape: f32[128,128], index: 3, kind: input, shape index: {}]
  %s4 = inlined_call_operand.vmem [shape: f32[1,128], index: 4, kind: input, shape index: {}]
  %s5 = inlined_call_operand.vmem [shape: f32[16,128], index: 5, kind: output, shape index: {}]
  %s6 = sld [smem:[#allocation0]]
  $region84: #{net_forward.7} parent=0
    _
  %s8 = ssub.s32 1, %s6
  %s9 = scalar_select 0, %s8, %s6
  $region1: #{net_forward.7} parent=0
    #allocation3 [shape = 'u8[65536]{0}', space=vmem, size = 0x10000, scoped, tag = 'input window, operand 0']
    loop: start=0, step=1, limit=11
    $region2: #{net_forward.7} parent=1 // loop_pre_header
      _
    $region3: #{net_forward.7} parent=1 // loop_header
      %s11 = sphi 0, %s15
      %p12 = scmp.ge.s32.totalorder %s11, 11
      %s18 = sphi 0, %s30
      %s19 = sphi 0, %s26
      %s20 = sphi 0, %s18
      %s21 = sphi 0, %s19
      %s22 = sphi 0, %s20
      %s23 = sphi 0, %s21
      %s35 = sphi 0, %s37
      %s38 = sphi 0, %s35
      %s39 = sphi 0, %s38
      %s55 = sphi 0, %s39
      %s61 = sphi 0, %s63
      %s64 = sphi 0, %s61
      %s65 = sphi 0, %s64
      %s81 = sphi 0, %s65
      %s85 = sphi 0, %s85
      %s87 = sphi 0, %s85
      %s88 = sphi 0, %s87
      %s102 = sphi 0, %s88
      %s106 = sphi 0, %s106
      %s108 = sphi 0, %s106
      %s109 = sphi 0, %s108
      %s123 = sphi 0, %s109
      %s127 = sphi 0, %s127
      %s129 = sphi 0, %s127
      %s130 = sphi 0, %s129
      %s144 = sphi 0, %s130
      %s150 = sphi 0, %s152
      %s153 = sphi 0, %s150
      %s154 = sphi 0, %s153
      %s170 = sphi 0, %s154
    $region4: #{net_forward.7} parent=1 // loop_header_branch
      %14 = sbr.rel (%p12) target = $region8
    $region5: #{net_forward.7} parent=1 // loop_body
      %s16 = ssub.s32 %s11, 1
      %s17 = ssub.s32 %s11, 2
      %s24 = sadd.s32 1, %s19
      %p25 = scmp.ge.s32.totalorder %s24, 9
      %s26 = scalar_select %p25, 0, %s24
      %s27 = sadd.s32 1, %s18
      %s28 = scalar_select %p25, %s27, %s18
      %p29 = scmp.ge.s32.totalorder %s28, 1
      %s30 = scalar_select %p29, 0, %s28
      %s31 = ssub.s32 %s18, %s30
      %s32 = ssub.s32 %s19, %s26
      %s33 = sor.u32 %s31, %s32
      %p34 = scmp.eq.s32.totalorder %s33, 0
      %s36 = sadd.s32 %s35, 1
      %s37 = scalar_select %p34, %s35, %s36
      %p40 = pneg %p34
      %p41 = scmp.eq.s32.totalorder %s11, 8
      %p42 = por %p40, %p41
      %p43 = scmp.ne.s32.totalorder %s35, %s38
      %p44 = scmp.eq.s32.totalorder %s11, 0
      %p45 = por %p43, %p44
      %p46 = scmp.ne.s32.totalorder %s35, %s38
      %p47 = scmp.eq.s32.totalorder %s16, 8
      %p48 = por %p46, %p47
      %p49 = scmp.ne.s32.totalorder %s38, %s39
      %p50 = scmp.eq.s32.totalorder %s16, 0
      %p51 = por %p49, %p50
      %p52 = scmp.ne.s32.totalorder %s38, %s39
      %p53 = scmp.eq.s32.totalorder %s17, 8
      %p54 = por %p52, %p53
      %p56 = scmp.ne.s32.totalorder %s39, %s55
      %p57 = scmp.eq.s32.totalorder %s17, 0
      %p58 = por %p56, %p57
      %s59 = ssub.s32 %s19, %s26
      %p60 = scmp.eq.s32.totalorder %s59, 0
      %s62 = sadd.s32 %s61, 1
      %s63 = scalar_select %p60, %s61, %s62
      %p66 = pneg %p60
      %p67 = scmp.eq.s32.totalorder %s11, 8
      %p68 = por %p66, %p67
      %p69 = scmp.ne.s32.totalorder %s61, %s64
      %p70 = scmp.eq.s32.totalorder %s11, 0
      %p71 = por %p69, %p70
      %p72 = scmp.ne.s32.totalorder %s61, %s64
      %p73 = scmp.eq.s32.totalorder %s16, 8
      %p74 = por %p72, %p73
      %p75 = scmp.ne.s32.totalorder %s64, %s65
      %p76 = scmp.eq.s32.totalorder %s16, 0
      %p77 = por %p75, %p76
      %p78 = scmp.ne.s32.totalorder %s64, %s65
      %p79 = scmp.eq.s32.totalorder %s17, 8
      %p80 = por %p78, %p79
      %p82 = scmp.ne.s32.totalorder %s65, %s81
      %p83 = scmp.eq.s32.totalorder %s17, 0
      %p84 = por %p82, %p83
      %s86 = sadd.s32 %s85, 1
      %p89 = scmp.eq.s32.totalorder %s11, 8
      %p90 = scmp.ne.s32.totalorder %s85, %s87
      %p91 = scmp.eq.s32.totalorder %s11, 0
      %p92 = por %p90, %p91
      %p93 = scmp.ne.s32.totalorder %s85, %s87
      %p94 = scmp.eq.s32.totalorder %s16, 8
      %p95 = por %p93, %p94
      %p96 = scmp.ne.s32.totalorder %s87, %s88
      %p97 = scmp.eq.s32.totalorder %s16, 0
      %p98 = por %p96, %p97
      %p99 = scmp.ne.s32.totalorder %s87, %s88
      %p100 = scmp.eq.s32.totalorder %s17, 8
      %p101 = por %p99, %p100
      %p103 = scmp.ne.s32.totalorder %s88, %s102
      %p104 = scmp.eq.s32.totalorder %s17, 0
      %p105 = por %p103, %p104
      %s107 = sadd.s32 %s106, 1
      %p110 = scmp.eq.s32.totalorder %s11, 8
      %p111 = scmp.ne.s32.totalorder %s106, %s108
      %p112 = scmp.eq.s32.totalorder %s11, 0
      %p113 = por %p111, %p112
      %p114 = scmp.ne.s32.totalorder %s106, %s108
      %p115 = scmp.eq.s32.totalorder %s16, 8
      %p116 = por %p114, %p115
      %p117 = scmp.ne.s32.totalorder %s108, %s109
      %p118 = scmp.eq.s32.totalorder %s16, 0
      %p119 = por %p117, %p118
      %p120 = scmp.ne.s32.totalorder %s108, %s109
      %p121 = scmp.eq.s32.totalorder %s17, 8
      %p122 = por %p120, %p121
      %p124 = scmp.ne.s32.totalorder %s109, %s123
      %p125 = scmp.eq.s32.totalorder %s17, 0
      %p126 = por %p124, %p125
      %s128 = sadd.s32 %s127, 1
      %p131 = scmp.eq.s32.totalorder %s11, 8
      %p132 = scmp.ne.s32.totalorder %s127, %s129
      %p133 = scmp.eq.s32.totalorder %s11, 0
      %p134 = por %p132, %p133
      %p135 = scmp.ne.s32.totalorder %s127, %s129
      %p136 = scmp.eq.s32.totalorder %s16, 8
      %p137 = por %p135, %p136
      %p138 = scmp.ne.s32.totalorder %s129, %s130
      %p139 = scmp.eq.s32.totalorder %s16, 0
      %p140 = por %p138, %p139
      %p141 = scmp.ne.s32.totalorder %s129, %s130
      %p142 = scmp.eq.s32.totalorder %s17, 8
      %p143 = por %p141, %p142
      %p145 = scmp.ne.s32.totalorder %s130, %s144
      %p146 = scmp.eq.s32.totalorder %s17, 0
      %p147 = por %p145, %p146
      %s148 = ssub.s32 %s18, %s30
      %p149 = scmp.eq.s32.totalorder %s148, 0
      %s151 = sadd.s32 %s150, 1
      %s152 = scalar_select %p149, %s150, %s151
      %p155 = pneg %p149
      %p156 = scmp.eq.s32.totalorder %s11, 8
      %p157 = por %p155, %p156
      %p158 = scmp.ne.s32.totalorder %s150, %s153
      %p159 = scmp.eq.s32.totalorder %s11, 0
      %p160 = por %p158, %p159
      %p161 = scmp.ne.s32.totalorder %s150, %s153
      %p162 = scmp.eq.s32.totalorder %s16, 8
      %p163 = por %p161, %p162
      %p164 = scmp.ne.s32.totalorder %s153, %s154
      %p165 = scmp.eq.s32.totalorder %s16, 0
      %p166 = por %p164, %p165
      %p167 = scmp.ne.s32.totalorder %s153, %s154
      %p168 = scmp.eq.s32.totalorder %s17, 8
      %p169 = por %p167, %p168
      %p171 = scmp.ne.s32.totalorder %s154, %s170
      %p172 = scmp.eq.s32.totalorder %s17, 0
      %p173 = por %p171, %p172
      %p174 = scmp.le.s32.totalorder 1, %s11
      %p175 = scmp.lt.s32.totalorder %s11, 10
      %p176 = pnand %p174, %p175
      %p177 = pneg %p176
      // Predicated region
      $region9: #{net_forward.7} parent=5 // pred_check
        _
      $region10: #{net_forward.7} parent=5 // pred_check_branch
        %179 = sbr.rel (%p176) target = $region12
      $region11: #{net_forward.7} parent=5 // pred_region
        %s180 = ssub.s32 %s11, 1
        // Predicated region
        $region13: #{net_forward.7} parent=11 // pred_check
          %p181 = pneg %p98
        $region14: #{net_forward.7} parent=11 // pred_check_branch
          %183 = sbr.rel (%p181) target = $region16
        $region15: #{net_forward.7} parent=11 // pred_region
          _
        $region16: #{net_forward.7} parent=11 // pred_fallthru
          _
        // Predicated region
        $region17: #{net_forward.7} parent=11 // pred_check
          %p184 = pneg %p119
        $region18: #{net_forward.7} parent=11 // pred_check_branch
          %186 = sbr.rel (%p184) target = $region20
        $region19: #{net_forward.7} parent=11 // pred_region
          _
        $region20: #{net_forward.7} parent=11 // pred_fallthru
          _
        // Predicated region
        $region21: #{net_forward.7} parent=11 // pred_check
          %p187 = pneg %p140
        $region22: #{net_forward.7} parent=11 // pred_check_branch
          %189 = sbr.rel (%p187) target = $region24
        $region23: #{net_forward.7} parent=11 // pred_region
          _
        $region24: #{net_forward.7} parent=11 // pred_fallthru
          _
      $region12: #{net_forward.7} parent=5 // pred_fallthru
        _
      %p190 = scmp.lt.s32.totalorder %s11, 9
      // Predicated region
      $region25: #{net_forward.7} parent=5 // pred_check
        %p191 = pneg %p190
      $region26: #{net_forward.7} parent=5 // pred_check_branch
        %193 = sbr.rel (%p191) target = $region28
      $region27: #{net_forward.7} parent=5 // pred_region
        // Predicated region
        $region29: #{net_forward.7} parent=27 // pred_check
          %p194 = pneg %p45
        $region30: #{net_forward.7} parent=27 // pred_check_branch
          %196 = sbr.rel (%p194) target = $region32
        $region31: #{net_forward.7} parent=27 // pred_region
          %s197 = sand.u32 %s35, 1
          %s198 = sand.u32 %s35, 1
          %s199 = smul.addr %s198, 64
          %s200 = scalar_lea.vmem [#allocation3], %s199
          %s201 = smul.u32 2, %s18
          %s202 = smul.u32 8, %s19
          %s203 = smul.addr %s201, 72
          %s204 = sadd.s32 %s202, %s203
          %s205 = smul.addr %s204, 4
          %s206 = scalar_lea.vmem %s0, %s205
          // Predicated region
          $region33: #{net_forward.7} parent=31 // pred_check
            _
          $region34: #{net_forward.7} parent=31 // pred_check_branch
            %208 = sbr.rel (0) target = $region36
          $region35: #{net_forward.7} parent=31 // pred_region
            // Predicated region
            $region37: #{net_forward.7} parent=35 // pred_check
              _
            $region38: #{net_forward.7} parent=35 // pred_check_branch
              %210 = sbr.rel (0) target = $region40
            $region39: #{net_forward.7} parent=35 // pred_region
              loop: start=0, step=1, limit=1
              $region41: #{net_forward.7} parent=39 // loop_pre_header
                _
              $region42: #{net_forward.7} parent=39 // loop_header
                %s212 = sphi 0, %s216
                %p213 = scmp.ge.s32.totalorder %s212, 1
                %s217 = sphi %s206, %s206
                %s218 = sphi %s200, %s200
              $region43: #{net_forward.7} parent=39 // loop_header_branch
                %215 = sbr.rel (%p213) target = $region47
              $region44: #{net_forward.7} parent=39 // loop_body
                %v219 = vld [vmem:[%s217] sm:$0xff]
                %220 = vst [vmem:[%s218] sm:$0xff] %v219
                %v221 = vld [vmem:[%s217 + $0x8] sm:$0xff]
                %222 = vst [vmem:[%s218 + $0x8] sm:$0xff] %v221
                %v223 = vld [vmem:[%s217 + $0x10] sm:$0xff]
                %224 = vst [vmem:[%s218 + $0x10] sm:$0xff] %v223
                %v225 = vld [vmem:[%s217 + $0x18] sm:$0xff]
                %226 = vst [vmem:[%s218 + $0x18] sm:$0xff] %v225
                %v227 = vld [vmem:[%s217 + $0x120] sm:$0xff]
                %228 = vst [vmem:[%s218 + $0x20] sm:$0xff] %v227
                %v229 = vld [vmem:[%s217 + $0x128] sm:$0xff]
                %230 = vst [vmem:[%s218 + $0x28] sm:$0xff] %v229
                %v231 = vld [vmem:[%s217 + $0x130] sm:$0xff]
                %232 = vst [vmem:[%s218 + $0x30] sm:$0xff] %v231
                %v233 = vld [vmem:[%s217 + $0x138] sm:$0xff]
                %234 = vst [vmem:[%s218 + $0x38] sm:$0xff] %v233
              $region45: #{net_forward.7} parent=39 // loop_footer
                %s216 = sadd.s32 1, %s212
              $region46: #{net_forward.7} parent=39 // loop_footer_branch
                %211 = sbr.rel target = $region42
              $region47: #{net_forward.7} parent=39 // loop_exit
                _
            $region40: #{net_forward.7} parent=35 // pred_fallthru
              _
            // Predicated region
            $region48: #{net_forward.7} parent=35 // pred_check
              _
            $region49: #{net_forward.7} parent=35 // pred_check_branch
              %236 = sbr.rel target = $region51
            $region50: #{net_forward.7} parent=35 // pred_region
              _
            $region51: #{net_forward.7} parent=35 // pred_fallthru
              _
          $region36: #{net_forward.7} parent=31 // pred_fallthru
            _
          %237 = vnop
        $region32: #{net_forward.7} parent=27 // pred_fallthru
          _
        // Predicated region
        $region52: #{net_forward.7} parent=27 // pred_check
          %p238 = pneg %p71
        $region53: #{net_forward.7} parent=27 // pred_check_branch
          %240 = sbr.rel (%p238) target = $region55
        $region54: #{net_forward.7} parent=27 // pred_region
          %s241 = smul.u32 128, %s19
          %p242 = scmp.lt.s32.totalorder %s241, 1151
          %s243 = scalar_select %p242, %s241, 1151
          %s244 = smul.addr %s243, 4
          %s245 = scalar_lea.vmem %s1, %s244
          %s246 = smul.u32 128, %s19
        $region55: #{net_forward.7} parent=27 // pred_fallthru
          _
      $region28: #{net_forward.7} parent=5 // pred_fallthru
        _
      %p247 = scmp.le.s32.totalorder 1, %s11
      %p248 = scmp.lt.s32.totalorder %s11, 10
      %p249 = pnand %p247, %p248
      %p250 = pneg %p249
      // Predicated region
      $region56: #{net_forward.7} parent=5 // pred_check
        _
      $region57: #{net_forward.7} parent=5 // pred_check_branch
        %252 = sbr.rel (%p249) target = $region59
      $region58: #{net_forward.7} parent=5 // pred_region
        %s253 = ssub.s32 %s11, 1
        %s254 = sand.u32 %s38, 1
        %s255 = sand.u32 %s38, 1
        %s256 = smul.addr %s255, 64
        %s257 = scalar_lea.vmem [#allocation3], %s256
        // Predicated region
        $region60: #{net_forward.7} parent=58 // pred_check
          %p258 = pneg %p51
        $region61: #{net_forward.7} parent=58 // pred_check_branch
          %260 = sbr.rel (%p258) target = $region63
        $region62: #{net_forward.7} parent=58 // pred_region
          _
        $region63: #{net_forward.7} parent=58 // pred_fallthru
          _
        %s261 = sand.u32 %s38, 1
        %s262 = sand.u32 %s38, 1
        %s263 = smul.addr %s262, 64
        %s264 = scalar_lea.vmem [#allocation3], %s263
        %p265 = pneg %p51
        %p266 = pneg %p48
        %s267 = smul.u32 128, %s21
        %p268 = scmp.lt.s32.totalorder %s267, 1151
        %s269 = scalar_select %p268, %s267, 1151
        %s270 = smul.addr %s269, 4
        %s271 = scalar_lea.vmem %s1, %s270
        %p272 = pneg %p77
        %p273 = pneg %p74
        %p274 = pneg %p98
        %p275 = pneg %p95
        %p276 = pneg %p119
        %p277 = pneg %p116
        %p278 = pneg %p140
        %p279 = pneg %p137
        %p280 = pneg %p166
        %p281 = pneg %p163
        %s282 = smul.u32 2, %s20
        %p283 = scmp.lt.s32.totalorder %s282, 1
        %s284 = scalar_select %p283, %s282, 1
        %s285 = smul.addr %s284, 8
        %s286 = scalar_lea.vmem %s5, %s285
        %s287 = smul.u32 2, %s20
        %s288 = smul.u32 8, %s21
        %s289 = smul.u32 128, %s21
        %p290 = scmp.lt.s32.totalorder %s289, 1151
        %s291 = scalar_select %p290, %s289, 1151
        %s292 = smul.addr %s291, 4
        %s293 = scalar_lea.vmem %s1, %s292
        %s294 = smul.u32 128, %s21
        %s295 = smul.u32 2, %s20
        %p296 = scmp.lt.s32.totalorder %s295, 1
        %s297 = scalar_select %p296, %s295, 1
        %s298 = smul.addr %s297, 8
        %s299 = scalar_lea.vmem %s5, %s298
        %s300 = smul.u32 2, %s20
        %p302 = scmp.eq.s32.totalorder %s21, 0
        // Predicated region
        $region64: #{net_forward.7} parent=58 // pred_check
          %p303 = pneg %p302
        $region65: #{net_forward.7} parent=58 // pred_check_branch
          %305 = sbr.rel (%p303) target = $region67
        $region66: #{net_forward.7} parent=58 // pred_region
          %306 = vst [vmem:[#allocation2] sm:$0xff] 0.0
          %307 = vst [vmem:[#allocation2 + $0x8] sm:$0xff] 0.0
        $region67: #{net_forward.7} parent=58 // pred_fallthru
          _
        %v308 = vld [vmem:[#allocation2] sm:$0xff]
        %v309 = vld [vmem:[#allocation2 + $0x8] sm:$0xff]
        %v310 = vld [vmem:[%s257] sm:$0xff]
        %v311 = vld [vmem:[%s257 + $0x8] sm:$0xff]
        %v312 = vld [vmem:[%s257 + $0x10] sm:$0xff]
        %v313 = vld [vmem:[%s257 + $0x18] sm:$0xff]
        %v314 = vld [vmem:[%s257 + $0x20] sm:$0xff]
        %v315 = vld [vmem:[%s257 + $0x28] sm:$0xff]
        %v316 = vld [vmem:[%s257 + $0x30] sm:$0xff]
        %v317 = vld [vmem:[%s257 + $0x38] sm:$0xff]
        %v318 = vld [vmem:[%s293] sm:$0xf]
        %v319 = vld [vmem:[%s293 + $0x4] sm:$0xf]
        %v320 = vld [vmem:[%s293 + $0x8] sm:$0xf]
        %v321 = vld [vmem:[%s293 + $0xc] sm:$0xf]
        %v322 = vld [vmem:[%s293 + $0x10] sm:$0xf]
        %v323 = vld [vmem:[%s293 + $0x14] sm:$0xf]
        %v324 = vld [vmem:[%s293 + $0x18] sm:$0xf]
        %v325 = vld [vmem:[%s293 + $0x1c] sm:$0xf]
        %v326 = vld [vmem:[%s293 + $0x20] sm:$0xf]
        %v327 = vld [vmem:[%s293 + $0x24] sm:$0xf]
        %v328 = vld [vmem:[%s293 + $0x28] sm:$0xf]
        %v329 = vld [vmem:[%s293 + $0x2c] sm:$0xf]
        %v330 = vld [vmem:[%s293 + $0x30] sm:$0xf]
        %v331 = vld [vmem:[%s293 + $0x34] sm:$0xf]
        %v332 = vld [vmem:[%s293 + $0x38] sm:$0xf]
        %v333 = vld [vmem:[%s293 + $0x3c] sm:$0xf]
        %v334 = vld [vmem:[%s293 + $0x40] sm:$0xf]
        %v335 = vld [vmem:[%s293 + $0x44] sm:$0xf]
        %v336 = vld [vmem:[%s293 + $0x48] sm:$0xf]
        %v337 = vld [vmem:[%s293 + $0x4c] sm:$0xf]
        %v338 = vld [vmem:[%s293 + $0x50] sm:$0xf]
        %v339 = vld [vmem:[%s293 + $0x54] sm:$0xf]
        %v340 = vld [vmem:[%s293 + $0x58] sm:$0xf]
        %v341 = vld [vmem:[%s293 + $0x5c] sm:$0xf]
        %v342 = vld [vmem:[%s293 + $0x60] sm:$0xf]
        %v343 = vld [vmem:[%s293 + $0x64] sm:$0xf]
        %v344 = vld [vmem:[%s293 + $0x68] sm:$0xf]
        %v345 = vld [vmem:[%s293 + $0x6c] sm:$0xf]
        %v346 = vld [vmem:[%s293 + $0x70] sm:$0xf]
        %v347 = vld [vmem:[%s293 + $0x74] sm:$0xf]
        %v348 = vld [vmem:[%s293 + $0x78] sm:$0xf]
        %v349 = vld [vmem:[%s293 + $0x7c] sm:$0xf]
        %v350 = vld [vmem:[%s293 + $0x80] sm:$0xf]
        %v351 = vld [vmem:[%s293 + $0x84] sm:$0xf]
        %v352 = vld [vmem:[%s293 + $0x88] sm:$0xf]
        %v353 = vld [vmem:[%s293 + $0x8c] sm:$0xf]
        %v354 = vld [vmem:[%s293 + $0x90] sm:$0xf]
        %v355 = vld [vmem:[%s293 + $0x94] sm:$0xf]
        %v356 = vld [vmem:[%s293 + $0x98] sm:$0xf]
        %v357 = vld [vmem:[%s293 + $0x9c] sm:$0xf]
        %v358 = vld [vmem:[%s293 + $0xa0] sm:$0xf]
        %v359 = vld [vmem:[%s293 + $0xa4] sm:$0xf]
        %v360 = vld [vmem:[%s293 + $0xa8] sm:$0xf]
        %v361 = vld [vmem:[%s293 + $0xac] sm:$0xf]
        %v362 = vld [vmem:[%s293 + $0xb0] sm:$0xf]
        %v363 = vld [vmem:[%s293 + $0xb4] sm:$0xf]
        %v364 = vld [vmem:[%s293 + $0xb8] sm:$0xf]
        %v365 = vld [vmem:[%s293 + $0xbc] sm:$0xf]
        %v366 = vld [vmem:[%s293 + $0xc0] sm:$0xf]
        %v367 = vld [vmem:[%s293 + $0xc4] sm:$0xf]
        %v368 = vld [vmem:[%s293 + $0xc8] sm:$0xf]
        %v369 = vld [vmem:[%s293 + $0xcc] sm:$0xf]
        %v370 = vld [vmem:[%s293 + $0xd0] sm:$0xf]
        %v371 = vld [vmem:[%s293 + $0xd4] sm:$0xf]
        %v372 = vld [vmem:[%s293 + $0xd8] sm:$0xf]
        %v373 = vld [vmem:[%s293 + $0xdc] sm:$0xf]
        %v374 = vld [vmem:[%s293 + $0xe0] sm:$0xf]
        %v375 = vld [vmem:[%s293 + $0xe4] sm:$0xf]
        %v376 = vld [vmem:[%s293 + $0xe8] sm:$0xf]
        %v377 = vld [vmem:[%s293 + $0xec] sm:$0xf]
        %v378 = vld [vmem:[%s293 + $0xf0] sm:$0xf]
        %v379 = vld [vmem:[%s293 + $0xf4] sm:$0xf]
        %v380 = vld [vmem:[%s293 + $0xf8] sm:$0xf]
        %v381 = vld [vmem:[%s293 + $0xfc] sm:$0xf]
        %v382 = vld [vmem:[%s293 + $0x100] sm:$0xf]
        %v383 = vld [vmem:[%s293 + $0x104] sm:$0xf]
        %v384 = vld [vmem:[%s293 + $0x108] sm:$0xf]
        %v385 = vld [vmem:[%s293 + $0x10c] sm:$0xf]
        %v386 = vld [vmem:[%s293 + $0x110] sm:$0xf]
        %v387 = vld [vmem:[%s293 + $0x114] sm:$0xf]
        %v388 = vld [vmem:[%s293 + $0x118] sm:$0xf]
        %v389 = vld [vmem:[%s293 + $0x11c] sm:$0xf]
        %v390 = vld [vmem:[%s293 + $0x120] sm:$0xf]
        %v391 = vld [vmem:[%s293 + $0x124] sm:$0xf]
        %v392 = vld [vmem:[%s293 + $0x128] sm:$0xf]
        %v393 = vld [vmem:[%s293 + $0x12c] sm:$0xf]
        %v394 = vld [vmem:[%s293 + $0x130] sm:$0xf]
        %v395 = vld [vmem:[%s293 + $0x134] sm:$0xf]
        %v396 = vld [vmem:[%s293 + $0x138] sm:$0xf]
        %v397 = vld [vmem:[%s293 + $0x13c] sm:$0xf]
        %v398 = vld [vmem:[%s293 + $0x140] sm:$0xf]
        %v399 = vld [vmem:[%s293 + $0x144] sm:$0xf]
        %v400 = vld [vmem:[%s293 + $0x148] sm:$0xf]
        %v401 = vld [vmem:[%s293 + $0x14c] sm:$0xf]
        %v402 = vld [vmem:[%s293 + $0x150] sm:$0xf]
        %v403 = vld [vmem:[%s293 + $0x154] sm:$0xf]
        %v404 = vld [vmem:[%s293 + $0x158] sm:$0xf]
        %v405 = vld [vmem:[%s293 + $0x15c] sm:$0xf]
        %v406 = vld [vmem:[%s293 + $0x160] sm:$0xf]
        %v407 = vld [vmem:[%s293 + $0x164] sm:$0xf]
        %v408 = vld [vmem:[%s293 + $0x168] sm:$0xf]
        %v409 = vld [vmem:[%s293 + $0x16c] sm:$0xf]
        %v410 = vld [vmem:[%s293 + $0x170] sm:$0xf]
        %v411 = vld [vmem:[%s293 + $0x174] sm:$0xf]
        %v412 = vld [vmem:[%s293 + $0x178] sm:$0xf]
        %v413 = vld [vmem:[%s293 + $0x17c] sm:$0xf]
        %v414 = vld [vmem:[%s293 + $0x180] sm:$0xf]
        %v415 = vld [vmem:[%s293 + $0x184] sm:$0xf]
        %v416 = vld [vmem:[%s293 + $0x188] sm:$0xf]
        %v417 = vld [vmem:[%s293 + $0x18c] sm:$0xf]
        %v418 = vld [vmem:[%s293 + $0x190] sm:$0xf]
        %v419 = vld [vmem:[%s293 + $0x194] sm:$0xf]
        %v420 = vld [vmem:[%s293 + $0x198] sm:$0xf]
        %v421 = vld [vmem:[%s293 + $0x19c] sm:$0xf]
        %v422 = vld [vmem:[%s293 + $0x1a0] sm:$0xf]
        %v423 = vld [vmem:[%s293 + $0x1a4] sm:$0xf]
        %v424 = vld [vmem:[%s293 + $0x1a8] sm:$0xf]
        %v425 = vld [vmem:[%s293 + $0x1ac] sm:$0xf]
        %v426 = vld [vmem:[%s293 + $0x1b0] sm:$0xf]
        %v427 = vld [vmem:[%s293 + $0x1b4] sm:$0xf]
        %v428 = vld [vmem:[%s293 + $0x1b8] sm:$0xf]
        %v429 = vld [vmem:[%s293 + $0x1bc] sm:$0xf]
        %v430 = vld [vmem:[%s293 + $0x1c0] sm:$0xf]
        %v431 = vld [vmem:[%s293 + $0x1c4] sm:$0xf]
        %v432 = vld [vmem:[%s293 + $0x1c8] sm:$0xf]
        %v433 = vld [vmem:[%s293 + $0x1cc] sm:$0xf]
        %v434 = vld [vmem:[%s293 + $0x1d0] sm:$0xf]
        %v435 = vld [vmem:[%s293 + $0x1d4] sm:$0xf]
        %v436 = vld [vmem:[%s293 + $0x1d8] sm:$0xf]
        %v437 = vld [vmem:[%s293 + $0x1dc] sm:$0xf]
        %v438 = vld [vmem:[%s293 + $0x1e0] sm:$0xf]
        %v439 = vld [vmem:[%s293 + $0x1e4] sm:$0xf]
        %v440 = vld [vmem:[%s293 + $0x1e8] sm:$0xf]
        %v441 = vld [vmem:[%s293 + $0x1ec] sm:$0xf]
        %v442 = vld [vmem:[%s293 + $0x1f0] sm:$0xf]
        %v443 = vld [vmem:[%s293 + $0x1f4] sm:$0xf]
        %v444 = vld [vmem:[%s293 + $0x1f8] sm:$0xf]
        %v445 = vld [vmem:[%s293 + $0x1fc] sm:$0xf]
        %v454 = vunpack.c.l.b16 %v310
        %v455 = vunpack.c.h.b16 %v310
        %v456 = vunpack.c.l.b16 %v311
        %v457 = vunpack.c.h.b16 %v311
        %v458 = vunpack.c.l.b16 %v312
        %v459 = vunpack.c.h.b16 %v312
        %v460 = vunpack.c.l.b16 %v313
        %v461 = vunpack.c.h.b16 %v313
        %v462 = vunpack.c.l.b16 %v314
        %v463 = vunpack.c.h.b16 %v314
        %v464 = vunpack.c.l.b16 %v315
        %v465 = vunpack.c.h.b16 %v315
        %v466 = vunpack.c.l.b16 %v316
        %v467 = vunpack.c.h.b16 %v316
        %v468 = vunpack.c.l.b16 %v317
        %v469 = vunpack.c.h.b16 %v317
        %v470 = vpack.c.b16 %v462, %v454
        %v471 = vpack.c.b16 %v463, %v455
        %v472 = vpack.c.b16 %v464, %v456
        %v473 = vpack.c.b16 %v465, %v457
        %v474 = vpack.c.b16 %v466, %v458
        %v475 = vpack.c.b16 %v467, %v459
        %v476 = vpack.c.b16 %v468, %v460
        %v477 = vpack.c.b16 %v469, %v461
        %v614 = vunpack.c.l.b16 %v318
        %v615 = vunpack.c.l.b16 %v319
        %v616 = vunpack.c.l.b16 %v320
        %v617 = vunpack.c.l.b16 %v321
        %v618 = vunpack.c.l.b16 %v322
        %v619 = vunpack.c.l.b16 %v323
        %v620 = vunpack.c.l.b16 %v324
        %v621 = vunpack.c.l.b16 %v325
        %v622 = vunpack.c.l.b16 %v326
        %v623 = vunpack.c.l.b16 %v327
        %v624 = vunpack.c.l.b16 %v328
        %v625 = vunpack.c.l.b16 %v329
        %v626 = vunpack.c.l.b16 %v330
        %v627 = vunpack.c.l.b16 %v331
        %v628 = vunpack.c.l.b16 %v332
        %v629 = vunpack.c.l.b16 %v333
        %v630 = vunpack.c.l.b16 %v334
        %v631 = vunpack.c.l.b16 %v335
        %v632 = vunpack.c.l.b16 %v336
        %v633 = vunpack.c.l.b16 %v337
        %v634 = vunpack.c.l.b16 %v338
        %v635 = vunpack.c.l.b16 %v339
        %v636 = vunpack.c.l.b16 %v340
        %v637 = vunpack.c.l.b16 %v341
        %v638 = vunpack.c.l.b16 %v342
        %v639 = vunpack.c.l.b16 %v343
        %v640 = vunpack.c.l.b16 %v344
        %v641 = vunpack.c.l.b16 %v345
        %v642 = vunpack.c.l.b16 %v346
        %v643 = vunpack.c.l.b16 %v347
        %v644 = vunpack.c.l.b16 %v348
        %v645 = vunpack.c.l.b16 %v349
        %v646 = vunpack.c.l.b16 %v350
        %v647 = vunpack.c.l.b16 %v351
        %v648 = vunpack.c.l.b16 %v352
        %v649 = vunpack.c.l.b16 %v353
        %v650 = vunpack.c.l.b16 %v354
        %v651 = vunpack.c.l.b16 %v355
        %v652 = vunpack.c.l.b16 %v356
        %v653 = vunpack.c.l.b16 %v357
        %v654 = vunpack.c.l.b16 %v358
        %v655 = vunpack.c.l.b16 %v359
        %v656 = vunpack.c.l.b16 %v360
        %v657 = vunpack.c.l.b16 %v361
        %v658 = vunpack.c.l.b16 %v362
        %v659 = vunpack.c.l.b16 %v363
        %v660 = vunpack.c.l.b16 %v364
        %v661 = vunpack.c.l.b16 %v365
        %v662 = vunpack.c.l.b16 %v366
        %v663 = vunpack.c.l.b16 %v367
        %v664 = vunpack.c.l.b16 %v368
        %v665 = vunpack.c.l.b16 %v369
        %v666 = vunpack.c.l.b16 %v370
        %v667 = vunpack.c.l.b16 %v371
        %v668 = vunpack.c.l.b16 %v372
        %v669 = vunpack.c.l.b16 %v373
        %v670 = vunpack.c.l.b16 %v374
        %v671 = vunpack.c.l.b16 %v375
        %v672 = vunpack.c.l.b16 %v376
        %v673 = vunpack.c.l.b16 %v377
        %v674 = vunpack.c.l.b16 %v378
        %v675 = vunpack.c.l.b16 %v379
        %v676 = vunpack.c.l.b16 %v380
        %v677 = vunpack.c.l.b16 %v381
        %v678 = vunpack.c.l.b16 %v382
        %v679 = vunpack.c.l.b16 %v383
        %v680 = vunpack.c.l.b16 %v384
        %v681 = vunpack.c.l.b16 %v385
        %v682 = vunpack.c.l.b16 %v386
        %v683 = vunpack.c.l.b16 %v387
        %v684 = vunpack.c.l.b16 %v388
        %v685 = vunpack.c.l.b16 %v389
        %v686 = vunpack.c.l.b16 %v390
        %v687 = vunpack.c.l.b16 %v391
        %v688 = vunpack.c.l.b16 %v392
        %v689 = vunpack.c.l.b16 %v393
        %v690 = vunpack.c.l.b16 %v394
        %v691 = vunpack.c.l.b16 %v395
        %v692 = vunpack.c.l.b16 %v396
        %v693 = vunpack.c.l.b16 %v397
        %v694 = vunpack.c.l.b16 %v398
        %v695 = vunpack.c.l.b16 %v399
        %v696 = vunpack.c.l.b16 %v400
        %v697 = vunpack.c.l.b16 %v401
        %v698 = vunpack.c.l.b16 %v402
        %v699 = vunpack.c.l.b16 %v403
        %v700 = vunpack.c.l.b16 %v404
        %v701 = vunpack.c.l.b16 %v405
        %v702 = vunpack.c.l.b16 %v406
        %v703 = vunpack.c.l.b16 %v407
        %v704 = vunpack.c.l.b16 %v408
        %v705 = vunpack.c.l.b16 %v409
        %v706 = vunpack.c.l.b16 %v410
        %v707 = vunpack.c.l.b16 %v411
        %v708 = vunpack.c.l.b16 %v412
        %v709 = vunpack.c.l.b16 %v413
        %v710 = vunpack.c.l.b16 %v414
        %v711 = vunpack.c.l.b16 %v415
        %v712 = vunpack.c.l.b16 %v416
        %v713 = vunpack.c.l.b16 %v417
        %v714 = vunpack.c.l.b16 %v418
        %v715 = vunpack.c.l.b16 %v419
        %v716 = vunpack.c.l.b16 %v420
        %v717 = vunpack.c.l.b16 %v421
        %v718 = vunpack.c.l.b16 %v422
        %v719 = vunpack.c.l.b16 %v423
        %v720 = vunpack.c.l.b16 %v424
        %v721 = vunpack.c.l.b16 %v425
        %v722 = vunpack.c.l.b16 %v426
        %v723 = vunpack.c.l.b16 %v427
        %v724 = vunpack.c.l.b16 %v428
        %v725 = vunpack.c.l.b16 %v429
        %v726 = vunpack.c.l.b16 %v430
        %v727 = vunpack.c.l.b16 %v431
        %v728 = vunpack.c.l.b16 %v432
        %v729 = vunpack.c.l.b16 %v433
        %v730 = vunpack.c.l.b16 %v434
        %v731 = vunpack.c.l.b16 %v435
        %v732 = vunpack.c.l.b16 %v436
        %v733 = vunpack.c.l.b16 %v437
        %v734 = vunpack.c.l.b16 %v438
        %v735 = vunpack.c.l.b16 %v439
        %v736 = vunpack.c.l.b16 %v440
        %v737 = vunpack.c.l.b16 %v441
        %v738 = vunpack.c.l.b16 %v442
        %v739 = vunpack.c.l.b16 %v443
        %v740 = vunpack.c.l.b16 %v444
        %v741 = vunpack.c.l.b16 %v445
        %v742 = vpack.c.b16 %v615, %v614
        %v743 = vpack.c.b16 %v617, %v616
        %v744 = vpack.c.b16 %v619, %v618
        %v745 = vpack.c.b16 %v621, %v620
        %v746 = vpack.c.b16 %v623, %v622
        %v747 = vpack.c.b16 %v625, %v624
        %v748 = vpack.c.b16 %v627, %v626
        %v749 = vpack.c.b16 %v629, %v628
        %v750 = vpack.c.b16 %v631, %v630
        %v751 = vpack.c.b16 %v633, %v632
        %v752 = vpack.c.b16 %v635, %v634
        %v753 = vpack.c.b16 %v637, %v636
        %v754 = vpack.c.b16 %v639, %v638
        %v755 = vpack.c.b16 %v641, %v640
        %v756 = vpack.c.b16 %v643, %v642
        %v757 = vpack.c.b16 %v645, %v644
        %v758 = vpack.c.b16 %v647, %v646
        %v759 = vpack.c.b16 %v649, %v648
        %v760 = vpack.c.b16 %v651, %v650
        %v761 = vpack.c.b16 %v653, %v652
        %v762 = vpack.c.b16 %v655, %v654
        %v763 = vpack.c.b16 %v657, %v656
        %v764 = vpack.c.b16 %v659, %v658
        %v765 = vpack.c.b16 %v661, %v660
        %v766 = vpack.c.b16 %v663, %v662
        %v767 = vpack.c.b16 %v665, %v664
        %v768 = vpack.c.b16 %v667, %v666
        %v769 = vpack.c.b16 %v669, %v668
        %v770 = vpack.c.b16 %v671, %v670
        %v771 = vpack.c.b16 %v673, %v672
        %v772 = vpack.c.b16 %v675, %v674
        %v773 = vpack.c.b16 %v677, %v676
        %v774 = vpack.c.b16 %v679, %v678
        %v775 = vpack.c.b16 %v681, %v680
        %v776 = vpack.c.b16 %v683, %v682
        %v777 = vpack.c.b16 %v685, %v684
        %v778 = vpack.c.b16 %v687, %v686
        %v779 = vpack.c.b16 %v689, %v688
        %v780 = vpack.c.b16 %v691, %v690
        %v781 = vpack.c.b16 %v693, %v692
        %v782 = vpack.c.b16 %v695, %v694
        %v783 = vpack.c.b16 %v697, %v696
        %v784 = vpack.c.b16 %v699, %v698
        %v785 = vpack.c.b16 %v701, %v700
        %v786 = vpack.c.b16 %v703, %v702
        %v787 = vpack.c.b16 %v705, %v704
        %v788 = vpack.c.b16 %v707, %v706
        %v789 = vpack.c.b16 %v709, %v708
        %v790 = vpack.c.b16 %v711, %v710
        %v791 = vpack.c.b16 %v713, %v712
        %v792 = vpack.c.b16 %v715, %v714
        %v793 = vpack.c.b16 %v717, %v716
        %v794 = vpack.c.b16 %v719, %v718
        %v795 = vpack.c.b16 %v721, %v720
        %v796 = vpack.c.b16 %v723, %v722
        %v797 = vpack.c.b16 %v725, %v724
        %v798 = vpack.c.b16 %v727, %v726
        %v799 = vpack.c.b16 %v729, %v728
        %v800 = vpack.c.b16 %v731, %v730
        %v801 = vpack.c.b16 %v733, %v732
        %v802 = vpack.c.b16 %v735, %v734
        %v803 = vpack.c.b16 %v737, %v736
        %v804 = vpack.c.b16 %v739, %v738
        %v805 = vpack.c.b16 %v741, %v740
        %870 = vmatprep.subr.bf16.mxu0 0
        %871 = vmatpush1.bf16.msra.mxu0 %v742
        %872 = vmatprep.subr.bf16.mxu0 0
        %873 = vmatpush1.bf16.msra.mxu0 %v743
        %874 = vmatprep.subr.bf16.mxu0 0
        %875 = vmatpush1.bf16.msra.mxu0 %v744
        %876 = vmatprep.subr.bf16.mxu0 0
        %877 = vmatpush1.bf16.msra.mxu0 %v745
        %878 = vmatprep.subr.bf16.mxu0 0
        %879 = vmatpush1.bf16.msra.mxu0 %v746
        %880 = vmatprep.subr.bf16.mxu0 0
        %881 = vmatpush1.bf16.msra.mxu0 %v747
        %882 = vmatprep.subr.bf16.mxu0 0
        %883 = vmatpush1.bf16.msra.mxu0 %v748
        %884 = vmatprep.subr.bf16.mxu0 0
        %885 = vmatpush1.bf16.msra.mxu0 %v749
        %886 = vmatprep.subr.bf16.mxu0 0
        %887 = vmatpush1.bf16.msra.mxu0 %v750
        %888 = vmatprep.subr.bf16.mxu0 0
        %889 = vmatpush1.bf16.msra.mxu0 %v751
        %890 = vmatprep.subr.bf16.mxu0 0
        %891 = vmatpush1.bf16.msra.mxu0 %v752
        %892 = vmatprep.subr.bf16.mxu0 0
        %893 = vmatpush1.bf16.msra.mxu0 %v753
        %894 = vmatprep.subr.bf16.mxu0 0
        %895 = vmatpush1.bf16.msra.mxu0 %v754
        %896 = vmatprep.subr.bf16.mxu0 0
        %897 = vmatpush1.bf16.msra.mxu0 %v755
        %898 = vmatprep.subr.bf16.mxu0 0
        %899 = vmatpush1.bf16.msra.mxu0 %v756
        %900 = vmatprep.subr.bf16.mxu0 0
        %901 = vmatpush1.bf16.msra.mxu0 %v757
        %902 = vmatprep.mubr.bf16.mxu0 %v471
        %903 = vmatmul.mubr.bf16.gmra.mrb[0].mxu0 %v470
        %v904 = vpop.f32.mrb[0].mxu0
        %v905 = vadd.f32 0.0, %v904
        %v906 = vpop.f32.mrb[0].mxu0
        %v907 = vpop.f32.mrb[0].mxu0
        %v908 = vadd.f32 0.0, %v907
        %v909 = vpop.f32.mrb[0].mxu0
        %910 = vdwg.mxu0
        %911 = vmatprep.subr.bf16.mxu0 0
        %912 = vmatpush1.bf16.msra.mxu0 %v758
        %913 = vmatprep.subr.bf16.mxu0 0
        %914 = vmatpush1.bf16.msra.mxu0 %v759
        %915 = vmatprep.subr.bf16.mxu0 0
        %916 = vmatpush1.bf16.msra.mxu0 %v760
        %917 = vmatprep.subr.bf16.mxu0 0
        %918 = vmatpush1.bf16.msra.mxu0 %v761
        %919 = vmatprep.subr.bf16.mxu0 0
        %920 = vmatpush1.bf16.msra.mxu0 %v762
        %921 = vmatprep.subr.bf16.mxu0 0
        %922 = vmatpush1.bf16.msra.mxu0 %v763
        %923 = vmatprep.subr.bf16.mxu0 0
        %924 = vmatpush1.bf16.msra.mxu0 %v764
        %925 = vmatprep.subr.bf16.mxu0 0
        %926 = vmatpush1.bf16.msra.mxu0 %v765
        %927 = vmatprep.subr.bf16.mxu0 0
        %928 = vmatpush1.bf16.msra.mxu0 %v766
        %929 = vmatprep.subr.bf16.mxu0 0
        %930 = vmatpush1.bf16.msra.mxu0 %v767
        %931 = vmatprep.subr.bf16.mxu0 0
        %932 = vmatpush1.bf16.msra.mxu0 %v768
        %933 = vmatprep.subr.bf16.mxu0 0
        %934 = vmatpush1.bf16.msra.mxu0 %v769
        %935 = vmatprep.subr.bf16.mxu0 0
        %936 = vmatpush1.bf16.msra.mxu0 %v770
        %937 = vmatprep.subr.bf16.mxu0 0
        %938 = vmatpush1.bf16.msra.mxu0 %v771
        %939 = vmatprep.subr.bf16.mxu0 0
        %940 = vmatpush1.bf16.msra.mxu0 %v772
        %941 = vmatprep.subr.bf16.mxu0 0
        %942 = vmatpush1.bf16.msra.mxu0 %v773
        %943 = vmatprep.mubr.bf16.mxu0 %v473
        %944 = vmatmul.mubr.bf16.gmra.mrb[0].mxu0 %v472
        %v945 = vpop.f32.mrb[0].mxu0
        %v946 = vadd.f32 %v905, %v945
        %v947 = vpop.f32.mrb[0].mxu0
        %v948 = vpop.f32.mrb[0].mxu0
        %v949 = vadd.f32 %v908, %v948
        %v950 = vpop.f32.mrb[0].mxu0
        %951 = vdwg.mxu0
        %952 = vmatprep.subr.bf16.mxu0 0
        %953 = vmatpush1.bf16.msra.mxu0 %v774
        %954 = vmatprep.subr.bf16.mxu0 0
        %955 = vmatpush1.bf16.msra.mxu0 %v775
        %956 = vmatprep.subr.bf16.mxu0 0
        %957 = vmatpush1.bf16.msra.mxu0 %v776
        %958 = vmatprep.subr.bf16.mxu0 0
        %959 = vmatpush1.bf16.msra.mxu0 %v777
        %960 = vmatprep.subr.bf16.mxu0 0
        %961 = vmatpush1.bf16.msra.mxu0 %v778
        %962 = vmatprep.subr.bf16.mxu0 0
        %963 = vmatpush1.bf16.msra.mxu0 %v779
        %964 = vmatprep.subr.bf16.mxu0 0
        %965 = vmatpush1.bf16.msra.mxu0 %v780
        %966 = vmatprep.subr.bf16.mxu0 0
        %967 = vmatpush1.bf16.msra.mxu0 %v781
        %968 = vmatprep.subr.bf16.mxu0 0
        %969 = vmatpush1.bf16.msra.mxu0 %v782
        %970 = vmatprep.subr.bf16.mxu0 0
        %971 = vmatpush1.bf16.msra.mxu0 %v783
        %972 = vmatprep.subr.bf16.mxu0 0
        %973 = vmatpush1.bf16.msra.mxu0 %v784
        %974 = vmatprep.subr.bf16.mxu0 0
        %975 = vmatpush1.bf16.msra.mxu0 %v785
        %976 = vmatprep.subr.bf16.mxu0 0
        %977 = vmatpush1.bf16.msra.mxu0 %v786
        %978 = vmatprep.subr.bf16.mxu0 0
        %979 = vmatpush1.bf16.msra.mxu0 %v787
        %980 = vmatprep.subr.bf16.mxu0 0
        %981 = vmatpush1.bf16.msra.mxu0 %v788
        %982 = vmatprep.subr.bf16.mxu0 0
        %983 = vmatpush1.bf16.msra.mxu0 %v789
        %984 = vmatprep.mubr.bf16.mxu0 %v475
        %985 = vmatmul.mubr.bf16.gmra.mrb[0].mxu0 %v474
        %v986 = vpop.f32.mrb[0].mxu0
        %v987 = vadd.f32 %v946, %v986
        %v988 = vpop.f32.mrb[0].mxu0
        %v989 = vpop.f32.mrb[0].mxu0
        %v990 = vadd.f32 %v949, %v989
        %v991 = vpop.f32.mrb[0].mxu0
        %992 = vdwg.mxu0
        %993 = vmatprep.subr.bf16.mxu0 0
        %994 = vmatpush1.bf16.msra.mxu0 %v790
        %995 = vmatprep.subr.bf16.mxu0 0
        %996 = vmatpush1.bf16.msra.mxu0 %v791
        %997 = vmatprep.subr.bf16.mxu0 0
        %998 = vmatpush1.bf16.msra.mxu0 %v792
        %999 = vmatprep.subr.bf16.mxu0 0
        %1000 = vmatpush1.bf16.msra.mxu0 %v793
        %1001 = vmatprep.subr.bf16.mxu0 0
        %1002 = vmatpush1.bf16.msra.mxu0 %v794
        %1003 = vmatprep.subr.bf16.mxu0 0
        %1004 = vmatpush1.bf16.msra.mxu0 %v795
        %1005 = vmatprep.subr.bf16.mxu0 0
        %1006 = vmatpush1.bf16.msra.mxu0 %v796
        %1007 = vmatprep.subr.bf16.mxu0 0
        %1008 = vmatpush1.bf16.msra.mxu0 %v797
        %1009 = vmatprep.subr.bf16.mxu0 0
        %1010 = vmatpush1.bf16.msra.mxu0 %v798
        %1011 = vmatprep.subr.bf16.mxu0 0
        %1012 = vmatpush1.bf16.msra.mxu0 %v799
        %1013 = vmatprep.subr.bf16.mxu0 0
        %1014 = vmatpush1.bf16.msra.mxu0 %v800
        %1015 = vmatprep.subr.bf16.mxu0 0
        %1016 = vmatpush1.bf16.msra.mxu0 %v801
        %1017 = vmatprep.subr.bf16.mxu0 0
        %1018 = vmatpush1.bf16.msra.mxu0 %v802
        %1019 = vmatprep.subr.bf16.mxu0 0
        %1020 = vmatpush1.bf16.msra.mxu0 %v803
        %1021 = vmatprep.subr.bf16.mxu0 0
        %1022 = vmatpush1.bf16.msra.mxu0 %v804
        %1023 = vmatprep.subr.bf16.mxu0 0
        %1024 = vmatpush1.bf16.msra.mxu0 %v805
        %1025 = vmatprep.mubr.bf16.mxu0 %v477
        %1026 = vmatmul.mubr.bf16.gmra.mrb[0].mxu0 %v476
        %v1027 = vpop.f32.mrb[0].mxu0
        %v1028 = vadd.f32 %v987, %v1027
        %v1029 = vpop.f32.mrb[0].mxu0
        %v1030 = vpop.f32.mrb[0].mxu0
        %v1031 = vadd.f32 %v990, %v1030
        %v1032 = vpop.f32.mrb[0].mxu0
        %1033 = vdwg.mxu0
        %v1034 = vadd.f32 %v308, %v1028
        %v1035 = vadd.f32 %v309, %v1031
        %1036 = vst [vmem:[#allocation2] sm:$0xff] %v1034
        %1037 = vst [vmem:[#allocation2 + $0x8] sm:$0xff] %v1035
        %p1038 = scmp.eq.s32.totalorder %s21, 8
        // Predicated region
        $region68: #{net_forward.7} parent=58 // pred_check
          %p1039 = pneg %p1038
        $region69: #{net_forward.7} parent=58 // pred_check_branch
          %1041 = sbr.rel (%p1039) target = $region71
        $region70: #{net_forward.7} parent=58 // pred_region
          %v1042 = vld [vmem:[#allocation2] sm:$0xff]
          %v1043 = vld [vmem:[#allocation2 + $0x8] sm:$0xff]
          %v1044 = vld [vmem:[%s2] sm:$0x1]
          %v1046 = vlaneseq
          %v1047 = vshrl.u32 %v1046, 7
          %v1048 = vsub.s32 0, %v1047
          %v1049 = vrot.slane %v1044, %v1048
          %v1051 = vadd.f32 %v1042, %v1049
          %v1052 = vadd.f32 %v1043, %v1049
          %v1053 = vmax.f32 %v1051, 0.0
          %v1054 = vmax.f32 %v1052, 0.0
          %v1055 = vld [vmem:[%s3] sm:$0xff]
          %v1056 = vld [vmem:[%s3 + $0x8] sm:$0xff]
          %v1057 = vld [vmem:[%s3 + $0x10] sm:$0xff]
          %v1058 = vld [vmem:[%s3 + $0x18] sm:$0xff]
          %v1059 = vld [vmem:[%s3 + $0x20] sm:$0xff]
          %v1060 = vld [vmem:[%s3 + $0x28] sm:$0xff]
          %v1061 = vld [vmem:[%s3 + $0x30] sm:$0xff]
          %v1062 = vld [vmem:[%s3 + $0x38] sm:$0xff]
          %v1063 = vld [vmem:[%s3 + $0x40] sm:$0xff]
          %v1064 = vld [vmem:[%s3 + $0x48] sm:$0xff]
          %v1065 = vld [vmem:[%s3 + $0x50] sm:$0xff]
          %v1066 = vld [vmem:[%s3 + $0x58] sm:$0xff]
          %v1067 = vld [vmem:[%s3 + $0x60] sm:$0xff]
          %v1068 = vld [vmem:[%s3 + $0x68] sm:$0xff]
          %v1069 = vld [vmem:[%s3 + $0x70] sm:$0xff]
          %v1070 = vld [vmem:[%s3 + $0x78] sm:$0xff]
          %v1071 = vld [vmem:[%s4] sm:$0x1]
          %v1073 = vlaneseq
          %v1074 = vshrl.u32 %v1073, 7
          %v1075 = vsub.s32 0, %v1074
          %v1076 = vrot.slane %v1071, %v1075
          %1078 = vmatprep.subr.mxu0 0.0
          %1079 = vmatpush1.msra.mxu0 %v1055
          %1080 = vmatprep.subr.mxu0 0.0
          %1081 = vmatpush1.msra.mxu0 %v1056
          %1082 = vmatprep.subr.mxu0 0.0
          %1083 = vmatpush1.msra.mxu0 %v1057
          %1084 = vmatprep.subr.mxu0 0.0
          %1085 = vmatpush1.msra.mxu0 %v1058
          %1086 = vmatprep.subr.mxu0 0.0
          %1087 = vmatpush1.msra.mxu0 %v1059
          %1088 = vmatprep.subr.mxu0 0.0
          %1089 = vmatpush1.msra.mxu0 %v1060
          %1090 = vmatprep.subr.mxu0 0.0
          %1091 = vmatpush1.msra.mxu0 %v1061
          %1092 = vmatprep.subr.mxu0 0.0
          %1093 = vmatpush1.msra.mxu0 %v1062
          %1094 = vmatprep.subr.mxu0 0.0
          %1095 = vmatpush1.msra.mxu0 %v1063
          %1096 = vmatprep.subr.mxu0 0.0
          %1097 = vmatpush1.msra.mxu0 %v1064
          %1098 = vmatprep.subr.mxu0 0.0
          %1099 = vmatpush1.msra.mxu0 %v1065
          %1100 = vmatprep.subr.mxu0 0.0
          %1101 = vmatpush1.msra.mxu0 %v1066
          %1102 = vmatprep.subr.mxu0 0.0
          %1103 = vmatpush1.msra.mxu0 %v1067
          %1104 = vmatprep.subr.mxu0 0.0
          %1105 = vmatpush1.msra.mxu0 %v1068
          %1106 = vmatprep.subr.mxu0 0.0
          %1107 = vmatpush1.msra.mxu0 %v1069
          %1108 = vmatprep.subr.mxu0 0.0
          %1109 = vmatpush1.msra.mxu0 %v1070
          %1110 = vmatprep.subr.mxu0 0.0
          %1111 = vmatpush1.msra.mxu0 0.0
          %1112 = vmatprep.subr.mxu0 0.0
          %1113 = vmatpush1.msra.mxu0 0.0
          %1114 = vmatprep.subr.mxu0 0.0
          %1115 = vmatpush1.msra.mxu0 0.0
          %1116 = vmatprep.subr.mxu0 0.0
          %1117 = vmatpush1.msra.mxu0 0.0
          %1118 = vmatprep.subr.mxu0 0.0
          %1119 = vmatpush1.msra.mxu0 0.0
          %1120 = vmatprep.subr.mxu0 0.0
          %1121 = vmatpush1.msra.mxu0 0.0
          %1122 = vmatprep.subr.mxu0 0.0
          %1123 = vmatpush1.msra.mxu0 0.0
          %1124 = vmatprep.subr.mxu0 0.0
          %1125 = vmatpush1.msra.mxu0 0.0
          %1126 = vmatprep.subr.mxu0 0.0
          %1127 = vmatpush1.msra.mxu0 0.0
          %1128 = vmatprep.subr.mxu0 0.0
          %1129 = vmatpush1.msra.mxu0 0.0
          %1130 = vmatprep.subr.mxu0 0.0
          %1131 = vmatpush1.msra.mxu0 0.0
          %1132 = vmatprep.subr.mxu0 0.0
          %1133 = vmatpush1.msra.mxu0 0.0
          %1134 = vmatprep.subr.mxu0 0.0
          %1135 = vmatpush1.msra.mxu0 0.0
          %1136 = vmatprep.subr.mxu0 0.0
          %1137 = vmatpush1.msra.mxu0 0.0
          %1138 = vmatprep.subr.mxu0 0.0
          %1139 = vmatpush1.msra.mxu0 0.0
          %1140 = vmatprep.subr.mxu0 0.0
          %1141 = vmatpush1.msra.mxu0 0.0
          %1142 = vmatprep.mubr.f32.mxu0 0.0
          %1143 = vmatmul.mubr.f32.gmra.mrb[0].mxu0 %v1053
          %v1144 = vpop.f32.mrb[0].mxu0
          %v1145 = vadd.f32 %v1076, %v1144
          %v1146 = vpop.f32.mrb[0].mxu0
          %1147 = vmatprep.mubr.f32.mxu0 0.0
          %1148 = vmatmul.mubr.f32.gmra.mrb[0].mxu0 %v1054
          %v1149 = vpop.f32.mrb[0].mxu0
          %v1150 = vadd.f32 %v1076, %v1149
          %v1151 = vpop.f32.mrb[0].mxu0
          %1152 = vdwg.mxu0
          %1153 = vmax.xlane.f32.xlu0 %v1145
          %v1154 = vpop.xlane.xlu0 %1153
          %1155 = vmax.xlane.f32.xlu0 %v1150
          %v1156 = vpop.xlane.xlu0 %1155
          %v1157 = vsub.f32 %v1145, %v1154
          %v1158 = vsub.f32 %v1150, %v1156
          %v1159 = vmul.f32 %v1157, 1.442695
          %v1160 = vpow.pop %v1159
          %v1161 = vmul.f32 %v1158, 1.442695
          %v1162 = vpow.pop %v1161
          %1163 = vadd.xlane.f32.xlu0 %v1160
          %v1164 = vpop.xlane.xlu0 %1163
          %1165 = vadd.xlane.f32.xlu0 %v1162
          %v1166 = vpop.xlane.xlu0 %1165
          %v1167 = vrcp.pop %v1164
          %v1168 = vmul.f32 %v1160, %v1167
          %v1169 = vrcp.pop %v1166
          %v1170 = vmul.f32 %v1162, %v1169
          %1171 = vst [vmem:[%s299] sm:$0xff] %v1168
          %1172 = vst [vmem:[%s299 + $0x8] sm:$0xff] %v1170
        $region71: #{net_forward.7} parent=58 // pred_fallthru
          _
        %s1173 = smul.u32 2, %s20
        %p1174 = scmp.lt.s32.totalorder %s1173, 1
        %s1175 = scalar_select %p1174, %s1173, 1
        %s1176 = smul.addr %s1175, 8
        %s1177 = scalar_lea.vmem %s5, %s1176
        // Predicated region
        $region72: #{net_forward.7} parent=58 // pred_check
          %p1178 = pneg %p163
        $region73: #{net_forward.7} parent=58 // pred_check_branch
          %1180 = sbr.rel (%p1178) target = $region75
        $region74: #{net_forward.7} parent=58 // pred_region
          %s1181 = smul.u32 2, %s20
        $region75: #{net_forward.7} parent=58 // pred_fallthru
          _
        // Predicated region
        $region76: #{net_forward.7} parent=58 // pred_check
          %p1182 = pneg %p163
        $region77: #{net_forward.7} parent=58 // pred_check_branch
          %1184 = sbr.rel (%p1182) target = $region79
        $region78: #{net_forward.7} parent=58 // pred_region
          %s1185 = smul.u32 2, %s20
          %p1186 = scmp.lt.s32.totalorder %s1185, 1
          %s1187 = scalar_select %p1186, %s1185, 1
          %s1188 = smul.addr %s1187, 8
          %s1189 = scalar_lea.vmem %s5, %s1188
        $region79: #{net_forward.7} parent=58 // pred_fallthru
          _
      $region59: #{net_forward.7} parent=5 // pred_fallthru
        _
      %p1190 = scmp.le.s32.totalorder 2, %s11
      // Predicated region
      $region80: #{net_forward.7} parent=5 // pred_check
        %p1191 = pneg %p1190
      $region81: #{net_forward.7} parent=5 // pred_check_branch
        %1193 = sbr.rel (%p1191) target = $region83
      $region82: #{net_forward.7} parent=5 // pred_region
        %s1194 = ssub.s32 %s11, 2
      $region83: #{net_forward.7} parent=5 // pred_fallthru
        _
    $region6: #{net_forward.7} parent=1 // loop_footer
      %s15 = sadd.s32 1, %s11
    $region7: #{net_forward.7} parent=1 // loop_footer_branch
      %10 = sbr.rel target = $region3
    $region8: #{net_forward.7} parent=1 // loop_exit
      _

</llo_original>
